<compile_context>
chip_gen: v7x
topology: tpu7x:2x2x1
jax: 0.10.0
libtpu: 0.0.40
codegen_flags: <defaults>
</compile_context>

<pallas_src>
import math
import numpy as np
import jax
import jax.numpy as jnp
from jax.experimental import pallas as pl
from jax.experimental.pallas import tpu as pltpu


def _round_up(x: int, m: int) -> int:
    return ((x + m - 1) // m) * m


def _cdiv(a: int, b: int) -> int:
    return -(-a // b)


def _num_tensorcores() -> int:
    """Best-effort TensorCores-per-device (for megacore-aware grid sizing)."""
    try:
        info = pltpu.get_tpu_info()
        for attr in ("num_cores", "core_count", "tensorcore_count", "num_tensorcores"):
            v = getattr(info, attr, None)
            if isinstance(v, int) and v > 0:
                return v
    except Exception:
        pass
    try:
        kind = jax.devices()[0].device_kind.lower()
    except Exception:
        return 1
    if "v7" in kind:
        return 2                       # 2 TCs per chip
    if "lite" in kind or "v5e" in kind or "v6" in kind:
        return 1                       # single TensorCore
    if "v4" in kind or "v5p" in kind or "v5" in kind:
        return 2                       # megacore
    return 1


def _make_rope_kernel(r: int, dim: int, half_compute: bool, fused_sincos: bool):
    half = dim // 2

    # --- fused sincos constants -------------------------------------------------
    # 3-part Cody-Waite split of pi/2 (P1 has 8 mantissa bits, P2 has ~11, so
    # k*P1 / k*P2 are exact for k <= 2^16 / 2^13; k = angle*2/pi stays well below
    # that for typical RoPE tables -- guarded by `fused_sincos`).
    TWO_OVER_PI = 0.6366197723675814
    P1 = 1.5703125
    P2 = 4.837512969970703125e-4
    P3 = 7.549789948768648e-8
    # Cephes single-precision minimax coefficients on [0, pi/4].
    S1, S2, S3 = -1.6666654611e-1, 8.3321608736e-3, -1.9515295891e-4
    C1, C2, C3 = 4.166664568298827e-2, -1.388731625493765e-3, 2.443315711809948e-5

    def kernel(inv_freq_ref, toff_ref, cos_ref, sin_ref):
        # inv_freq_ref / toff_ref : (1, lanes)  -- per-lane frequency / t-offset
        # cos_ref / sin_ref       : (tile_rows, out_lanes) folded output tiles
        tile_rows = cos_ref.shape[0]
        lanes = inv_freq_ref.shape[1]  # compute width

        row0 = pl.program_id(0) * tile_rows
        rows = row0 + jax.lax.broadcasted_iota(jnp.int32, (tile_rows, lanes), 0)
        # Exact integer position, then a single f32 multiply (matches reference).
        t = (rows * r + toff_ref[...]).astype(jnp.float32)
        x = t * inv_freq_ref[...]

        if fused_sincos:
            # One range reduction feeds both polynomials.
            k = jnp.floor(x * TWO_OVER_PI + 0.5)           # nearest quadrant
            rr = ((x - k * P1) - k * P2) - k * P3          # |rr| <~ pi/4
            z = rr * rr
            sin_r = ((S3 * z + S2) * z + S1) * z * rr + rr
            cos_r = ((C3 * z + C2) * z + C1) * z * z - 0.5 * z + 1.0

            q = k.astype(jnp.int32) & 3
            swap = (q & 1) == 1
            s_base = jnp.where(swap, cos_r, sin_r)
            c_base = jnp.where(swap, sin_r, cos_r)
            sin_v = jnp.where(q >= 2, -s_base, s_base)
            cos_v = jnp.where((q == 1) | (q == 2), -c_base, c_base)
        else:
            cos_v = jnp.cos(x)
            sin_v = jnp.sin(x)

        c = cos_v.astype(cos_ref.dtype)
        s = sin_v.astype(sin_ref.dtype)

        if half_compute:
            # cat(freqs, freqs): both lane halves identical -> compute once, store
            # twice (both stores are 128-lane aligned).  NOTE(v5e): single vst slot;
            # with the sincos fusion stores may become the binding slot there.
            cos_ref[:, :half] = c
            cos_ref[:, half:] = c
            sin_ref[:, :half] = s
            sin_ref[:, half:] = s
        else:
            cos_ref[...] = c
            sin_ref[...] = s

    return kernel


def build_rope_tables(max_seq_len: int, dim: int, out_dtype=jnp.float32):
    """Returns (cos, sin) cached tables, each of shape (max_seq_len, 1, dim)."""
    assert dim % 2 == 0
    half = dim // 2
    itemsize = np.dtype(out_dtype).itemsize

    # Same buffer formula as the PyTorch module.
    inv_freq = 1.0 / (10000.0 ** (jnp.arange(0, dim, 2, dtype=jnp.float32) / dim))

    half_compute = (half % 128 == 0)  # dim is a multiple of 256
    if half_compute:
        r = 1
        lanes = half                                   # compute width
        inv_lane = inv_freq                            # (half,)
        toff = jnp.zeros((half,), jnp.int32)
        out_lanes = dim
    else:
        # Fold r sequence rows into the lane axis so stores are 128-lane dense
        # for any even dim (48, 80, 96, 160, ... all get a multiple-of-128 width).
        l = math.lcm(dim, 128)
        r = l // dim if l <= 16384 else 1
        lanes = r * dim
        out_lanes = lanes
        inv_full = jnp.concatenate([inv_freq, inv_freq], axis=0)       # (dim,)
        inv_lane = jnp.tile(inv_full, r)                               # (r*dim,)
        toff = jnp.repeat(jnp.arange(r, dtype=jnp.int32), dim)         # lane // dim

    inv_lane = inv_lane.reshape(1, lanes).astype(jnp.float32)
    toff = toff.reshape(1, lanes)

    # ---- tile sizing ---------------------------------------------------------
    s_f = _cdiv(max_seq_len, r)                 # folded row count
    num_cores = _num_tensorcores()
    # ~1 MiB per output block (2 outputs x 2 pipeline buffers => ~4 MiB VMEM,
    # safe on all gens including v7x's 64 MiB physical / 32 MiB scoped VMEM).
    target_rows = max(8, (1 << 20) // max(1, out_lanes * itemsize))
    tile_rows = _round_up(min(target_rows, max(1, s_f)), 8)
    if num_cores > 1:
        # >= 2 grid steps per TensorCore so the output writeback of block i-1
        # overlaps block i compute; on single-TC chips grid=1 is preferred.
        per_core = _round_up(max(1, _cdiv(s_f, 2 * num_cores)), 8)
        tile_rows = min(tile_rows, per_core)
    tile_rows = max(8, tile_rows)
    s_f_pad = _round_up(s_f, tile_rows)
    grid = (s_f_pad // tile_rows,)

    # Fused sincos validity: k = angle*2/pi must stay <= 2^16 for exact k*P1.
    max_pos = s_f_pad * r
    fused_sincos = (max_pos * 0.6366197723675814) < 65000.0

    kernel = _make_rope_kernel(r, dim, half_compute, fused_sincos)

    cos_f, sin_f = pl.pallas_call(
        kernel,
        out_shape=(
            jax.ShapeDtypeStruct((s_f_pad, out_lanes), out_dtype),
            jax.ShapeDtypeStruct((s_f_pad, out_lanes), out_dtype),
        ),
        grid_spec=pltpu.PrefetchScalarGridSpec(
            num_scalar_prefetch=0,
            grid=grid,
            in_specs=[
                pl.BlockSpec((1, lanes), lambda i: (0, 0)),
                pl.BlockSpec((1, lanes), lambda i: (0, 0)),
            ],
            out_specs=[
                pl.BlockSpec((tile_rows, out_lanes), lambda i: (i, 0)),
                pl.BlockSpec((tile_rows, out_lanes), lambda i: (i, 0)),
            ],
        ),
        compiler_params=pltpu.CompilerParams(
            dimension_semantics=("parallel",),
        ),
        cost_estimate=pl.CostEstimate(
            # ~40 VPU ops/element for the polynomial sincos + addressing.
            flops=40 * s_f_pad * lanes,
            transcendentals=0 if fused_sincos else 2 * s_f_pad * lanes,
            bytes_accessed=2 * s_f_pad * out_lanes * itemsize,
        ),
    )(inv_lane, toff)

    # Un-fold (s_f_pad, r*dim) -> (s_f_pad*r, dim), trim padding, add unit axis.
    # Row-major contiguous -> these reshapes/slice stay copy-free views.
    cos = cos_f.reshape(s_f_pad * r, dim)[:max_seq_len].reshape(max_seq_len, 1, dim)
    sin = sin_f.reshape(s_f_pad * r, dim)[:max_seq_len].reshape(max_seq_len, 1, dim)
    return cos, sin


class RotaryEmbedding:
    """JAX/Pallas equivalent of the PyTorch RotaryEmbedding module."""

    def __init__(self, dim, max_seq_len=2048, out_dtype=jnp.float32):
        self.dim = dim
        self.max_seq_len = max_seq_len
        # TODO(synk): pass out_dtype=jnp.bfloat16 when the consuming attention
        # kernel accepts bf16 tables -- halves the writeback here and every
        # downstream table read; kept f32 to match the PyTorch reference bits.
        self.cos_cached, self.sin_cached = build_rope_tables(max_seq_len, dim, out_dtype)

    def __call__(self, seq_len: int):
        return self.cos_cached[:seq_len, ...], self.sin_cached[:seq_len, ...]


if __name__ == "__main__":
    # forward(seq_len) takes only an integer; no tensor inputs are needed.
    _ = jax.random.PRNGKey(0)
    dim = 32
    max_seq_len = 2048
    seq_len = 8

    rope = RotaryEmbedding(dim, max_seq_len=max_seq_len)
    cos, sin = rope(seq_len)
    cos = jax.block_until_ready(cos)
    sin = jax.block_until_ready(sin)

    # Plain-JAX reference (same math as the PyTorch module).
    inv_freq = 1.0 / (10000.0 ** (jnp.arange(0, dim, 2, dtype=jnp.float32) / dim))
    t = jnp.arange(max_seq_len, dtype=jnp.float32)
    freqs = jnp.einsum("i,j->ij", t, inv_freq)
    emb = jnp.concatenate([freqs, freqs], axis=-1)
    ref_cos_full = jnp.cos(emb).reshape(max_seq_len, 1, dim)
    ref_sin_full = jnp.sin(emb).reshape(max_seq_len, 1, dim)

    assert cos.shape == (seq_len, 1, dim) and sin.shape == (seq_len, 1, dim)
    assert jnp.allclose(cos, ref_cos_full[:seq_len], atol=1e-5)
    assert jnp.allclose(sin, ref_sin_full[:seq_len], atol=1e-5)

    # Validate the whole cached table (exercises fold + fused sincos end to end).
    cos_full, sin_full = rope(max_seq_len)
    assert jnp.allclose(cos_full, ref_cos_full, atol=1e-5)
    assert jnp.allclose(sin_full, ref_sin_full, atol=1e-5)

    print("KERNEL_OK")
</pallas_src>

<mosaic_0001>
module attributes {stable_mosaic.version = 11 : i64} {
  func.func @kernel(%arg0: i32, %arg1: memref<1x128xf32, #tpu.memory_space<vmem>>, %arg2: memref<1x128xi32, #tpu.memory_space<vmem>>, %arg3: memref<512x128xf32, #tpu.memory_space<vmem>>, %arg4: memref<512x128xf32, #tpu.memory_space<vmem>>) attributes {dimension_semantics = [#tpu.dimension_semantics<parallel>], iteration_bounds = array<i64: 1>, scalar_prefetch = 0 : i64, scratch_operands = 0 : i64, tpu.core_type = #tpu.core_type<tc>, window_params = [{pipeline_mode = #tpu.pipeline_mode<synchronous>, transform_indices = @transform_0, window_bounds = array<i64: 1, 128>}, {pipeline_mode = #tpu.pipeline_mode<synchronous>, transform_indices = @transform_1, window_bounds = array<i64: 1, 128>}, {transform_indices = @transform_2, window_bounds = array<i64: 512, 128>}, {transform_indices = @transform_3, window_bounds = array<i64: 512, 128>}]} {
    %c512_i32 = arith.constant 512 : i32
    %0 = arith.muli %arg0, %c512_i32 : i32
    %1 = tpu.iota {dimensions = array<i32: 0>} : vector<512x128xi32>
    %2 = vector.broadcast %0 : i32 to vector<512x128xi32>
    %3 = arith.addi %2, %1 : vector<512x128xi32>
    %c4_i32 = arith.constant 4 : i32
    %4 = vector.broadcast %c4_i32 : i32 to vector<512x128xi32>
    %5 = arith.muli %3, %4 : vector<512x128xi32>
    %c0 = arith.constant 0 : index
    %c0_0 = arith.constant 0 : index
    %6 = vector.load %arg2[%c0, %c0_0] : memref<1x128xi32, #tpu.memory_space<vmem>>, vector<1x128xi32>
    %7 = vector.broadcast %6 : vector<1x128xi32> to vector<512x128xi32>
    %8 = arith.addi %5, %7 : vector<512x128xi32>
    %9 = arith.sitofp %8 : vector<512x128xi32> to vector<512x128xf32>
    %c0_1 = arith.constant 0 : index
    %c0_2 = arith.constant 0 : index
    %10 = vector.load %arg1[%c0_1, %c0_2] : memref<1x128xf32, #tpu.memory_space<vmem>>, vector<1x128xf32>
    %11 = vector.broadcast %10 : vector<1x128xf32> to vector<512x128xf32>
    %12 = arith.mulf %9, %11 : vector<512x128xf32>
    %cst = arith.constant 0.636619746 : f32
    %13 = vector.broadcast %cst : f32 to vector<512x128xf32>
    %14 = arith.mulf %12, %13 : vector<512x128xf32>
    %cst_3 = arith.constant 5.000000e-01 : f32
    %15 = vector.broadcast %cst_3 : f32 to vector<512x128xf32>
    %16 = arith.addf %14, %15 : vector<512x128xf32>
    %17 = math.floor %16 : vector<512x128xf32>
    %cst_4 = arith.constant 1.5703125 : f32
    %18 = vector.broadcast %cst_4 : f32 to vector<512x128xf32>
    %19 = arith.mulf %17, %18 : vector<512x128xf32>
    %20 = arith.subf %12, %19 : vector<512x128xf32>
    %cst_5 = arith.constant 4.83751297E-4 : f32
    %21 = vector.broadcast %cst_5 : f32 to vector<512x128xf32>
    %22 = arith.mulf %17, %21 : vector<512x128xf32>
    %23 = arith.subf %20, %22 : vector<512x128xf32>
    %cst_6 = arith.constant 7.549790e-08 : f32
    %24 = vector.broadcast %cst_6 : f32 to vector<512x128xf32>
    %25 = arith.mulf %17, %24 : vector<512x128xf32>
    %26 = arith.subf %23, %25 : vector<512x128xf32>
    %27 = arith.mulf %26, %26 : vector<512x128xf32>
    %cst_7 = arith.constant -1.95152956E-4 : f32
    %28 = vector.broadcast %cst_7 : f32 to vector<512x128xf32>
    %29 = arith.mulf %28, %27 : vector<512x128xf32>
    %cst_8 = arith.constant 0.00833216123 : f32
    %30 = vector.broadcast %cst_8 : f32 to vector<512x128xf32>
    %31 = arith.addf %29, %30 : vector<512x128xf32>
    %32 = arith.mulf %31, %27 : vector<512x128xf32>
    %cst_9 = arith.constant -0.166666552 : f32
    %33 = vector.broadcast %cst_9 : f32 to vector<512x128xf32>
    %34 = arith.addf %32, %33 : vector<512x128xf32>
    %35 = arith.mulf %34, %27 : vector<512x128xf32>
    %36 = arith.mulf %35, %26 : vector<512x128xf32>
    %37 = arith.addf %36, %26 : vector<512x128xf32>
    %cst_10 = arith.constant 2.44331568E-5 : f32
    %38 = vector.broadcast %cst_10 : f32 to vector<512x128xf32>
    %39 = arith.mulf %38, %27 : vector<512x128xf32>
    %cst_11 = arith.constant -0.00138873165 : f32
    %40 = vector.broadcast %cst_11 : f32 to vector<512x128xf32>
    %41 = arith.addf %39, %40 : vector<512x128xf32>
    %42 = arith.mulf %41, %27 : vector<512x128xf32>
    %cst_12 = arith.constant 0.0416666456 : f32
    %43 = vector.broadcast %cst_12 : f32 to vector<512x128xf32>
    %44 = arith.addf %42, %43 : vector<512x128xf32>
    %45 = arith.mulf %44, %27 : vector<512x128xf32>
    %46 = arith.mulf %45, %27 : vector<512x128xf32>
    %cst_13 = arith.constant 5.000000e-01 : f32
    %47 = vector.broadcast %cst_13 : f32 to vector<512x128xf32>
    %48 = arith.mulf %47, %27 : vector<512x128xf32>
    %49 = arith.subf %46, %48 : vector<512x128xf32>
    %cst_14 = arith.constant 1.000000e+00 : f32
    %50 = vector.broadcast %cst_14 : f32 to vector<512x128xf32>
    %51 = arith.addf %49, %50 : vector<512x128xf32>
    %52 = arith.fptosi %17 : vector<512x128xf32> to vector<512x128xi32>
    %c3_i32 = arith.constant 3 : i32
    %53 = vector.broadcast %c3_i32 : i32 to vector<512x128xi32>
    %54 = arith.andi %52, %53 : vector<512x128xi32>
    %c1_i32 = arith.constant 1 : i32
    %55 = vector.broadcast %c1_i32 : i32 to vector<512x128xi32>
    %56 = arith.andi %54, %55 : vector<512x128xi32>
    %c1_i32_15 = arith.constant 1 : i32
    %57 = vector.broadcast %c1_i32_15 : i32 to vector<512x128xi32>
    %58 = arith.cmpi eq, %56, %57 : vector<512x128xi32>
    %59 = arith.select %58, %51, %37 : vector<512x128xi1>, vector<512x128xf32>
    %60 = arith.select %58, %37, %51 : vector<512x128xi1>, vector<512x128xf32>
    %c2_i32 = arith.constant 2 : i32
    %61 = vector.broadcast %c2_i32 : i32 to vector<512x128xi32>
    %62 = arith.cmpi sge, %54, %61 : vector<512x128xi32>
    %cst_16 = arith.constant 0.000000e+00 : f32
    %63 = vector.broadcast %cst_16 : f32 to vector<512x128xf32>
    %64 = arith.subf %63, %59 : vector<512x128xf32>
    %65 = arith.select %62, %64, %59 : vector<512x128xi1>, vector<512x128xf32>
    %c1_i32_17 = arith.constant 1 : i32
    %66 = vector.broadcast %c1_i32_17 : i32 to vector<512x128xi32>
    %67 = arith.cmpi eq, %54, %66 : vector<512x128xi32>
    %c2_i32_18 = arith.constant 2 : i32
    %68 = vector.broadcast %c2_i32_18 : i32 to vector<512x128xi32>
    %69 = arith.cmpi eq, %54, %68 : vector<512x128xi32>
    %70 = arith.ori %67, %69 : vector<512x128xi1>
    %cst_19 = arith.constant 0.000000e+00 : f32
    %71 = vector.broadcast %cst_19 : f32 to vector<512x128xf32>
    %72 = arith.subf %71, %60 : vector<512x128xf32>
    %73 = arith.select %70, %72, %60 : vector<512x128xi1>, vector<512x128xf32>
    %c0_20 = arith.constant 0 : index
    %c0_21 = arith.constant 0 : index
    %74 = vector.load %arg3[%c0_20, %c0_21] : memref<512x128xf32, #tpu.memory_space<vmem>>, vector<512x128xf32>
    tpu.vector_store %arg3[%c0_20, %c0_21], %73 {strides = array<i32>} : memref<512x128xf32, #tpu.memory_space<vmem>>, vector<512x128xf32>,
    %c0_22 = arith.constant 0 : index
    %c0_23 = arith.constant 0 : index
    %75 = vector.load %arg4[%c0_22, %c0_23] : memref<512x128xf32, #tpu.memory_space<vmem>>, vector<512x128xf32>
    tpu.vector_store %arg4[%c0_22, %c0_23], %65 {strides = array<i32>} : memref<512x128xf32, #tpu.memory_space<vmem>>, vector<512x128xf32>,
    return
  }
  func.func @transform_0(%arg0: i32) -> (i32, i32) {
    %c0_i32 = arith.constant 0 : i32
    %c0_i32_0 = arith.constant 0 : i32
    %c0_i32_1 = arith.constant 0 : i32
    return %c0_i32, %c0_i32_0 : i32, i32
  }
  func.func @transform_1(%arg0: i32) -> (i32, i32) {
    %c0_i32 = arith.constant 0 : i32
    %c0_i32_0 = arith.constant 0 : i32
    %c0_i32_1 = arith.constant 0 : i32
    return %c0_i32, %c0_i32_0 : i32, i32
  }
  func.func @transform_2(%arg0: i32) -> (i32, i32) {
    %c0_i32 = arith.constant 0 : i32
    %c0_i32_0 = arith.constant 0 : i32
    return %arg0, %c0_i32 : i32, i32
  }
  func.func @transform_3(%arg0: i32) -> (i32, i32) {
    %c0_i32 = arith.constant 0 : i32
    %c0_i32_0 = arith.constant 0 : i32
    return %arg0, %c0_i32 : i32, i32
  }
}

</mosaic_0001>

<llo_original>
// kernel: tpu_custom_call.1
$region0: #{tpu_custom_call.1}
  #allocation0 [shape = 'u32[]', space=smem, size = 0x4, offset = 0x4, fixed_abs, tag = 'smem constant byte address 0x4 - core index']
  #allocation1 [shape = 'u32[144,128]{1,0:T(1,128)}', space=vmem, size = 0x12000, scoped, tag = 'internal scratch']
  %s0 = inlined_call_operand.hbm [shape: f32[1,128], index: 0, kind: input, shape index: {}]
  %s1 = inlined_call_operand.vmem [shape: s32[1,128], index: 1, kind: input, shape index: {}]
  %s2 = inlined_call_operand.hbm [shape: f32[512,128], index: 2, kind: output, shape index: {0}]
  %s3 = inlined_call_operand.hbm [shape: f32[512,128], index: 3, kind: output, shape index: {1}]
  %4 = xla_tuple %s2, %s3
  %s5 = sld [smem:[#allocation0]]
  $region30: #{tpu_custom_call.1} parent=0
    _
  %s7 = ssub.s32 1, %s5
  %s8 = scalar_select 0, %s7, %s5
  $region1: #{tpu_custom_call.1} parent=0
    #allocation2 [shape = 'u8[512]{0}', space=vmem, size = 0x400, scoped, tag = 'input window, operand 0, single buffered']
    #allocation3 [shape = 's32[1]{0}', space=sflag, size = 0x4, scoped, tag = 'scoped memory for tpu_custom_call.1']
    #allocation4 [shape = 's32[1]{0}', space=sflag, size = 0x4, scoped, tag = 'scoped memory for tpu_custom_call.1']
    #allocation5 [shape = 'u8[262144]{0}', space=vmem, size = 0x40000, scoped, tag = 'output window, operand 0, single buffered']
    #allocation6 [shape = 'u8[262144]{0}', space=vmem, size = 0x40000, scoped, tag = 'output window, operand 1, single buffered']
    #allocation7 [shape = 's32[1]{0}', space=sflag, size = 0x4, scoped, tag = 'scoped memory for tpu_custom_call.1']
    %9 = vsyncpa [#allocation3], 0
    %10 = vsyncpa [#allocation4], 0
    %11 = vsyncpa [#allocation7], 0
    // Predicated region
    $region2: #{tpu_custom_call.1} parent=1 // pred_check
      _
    $region3: #{tpu_custom_call.1} parent=1 // pred_check_branch
      %13 = sbr.rel (0) target = $region5
    $region4: #{tpu_custom_call.1} parent=1 // pred_region
      %s15 = ssub.s32 16, 16
      %16 = vsyncadd [#allocation3], %s15
      %s18 = sshll.u32 [#allocation2], 4
      %s19 = int_to_ptr.vmem [resolvable:$true] %s18
      %21 = dma.hbm_to_vmem [thread:$0]  %s0, 16, %s19, [#allocation3]
    $region5: #{tpu_custom_call.1} parent=1 // pred_fallthru
      _
    // Predicated region
    $region6: #{tpu_custom_call.1} parent=1 // pred_check
      _
    $region7: #{tpu_custom_call.1} parent=1 // pred_check_branch
      %23 = sbr.rel (0) target = $region9
    $region8: #{tpu_custom_call.1} parent=1 // pred_region
      _
    $region9: #{tpu_custom_call.1} parent=1 // pred_fallthru
      _
    // Predicated region
    $region10: #{tpu_custom_call.1} parent=1 // pred_check
      _
    $region11: #{tpu_custom_call.1} parent=1 // pred_check_branch
      %25 = sbr.rel (0) target = $region13
    $region12: #{tpu_custom_call.1} parent=1 // pred_region
      %26 = dma.done [#allocation3], 16
    $region13: #{tpu_custom_call.1} parent=1 // pred_fallthru
      _
    %s27 = smul.u32 0, 512
    %v28 = vlaneseq
    %v29 = vshrl.u32 %v28, 7
    %v30 = vadd.s32 %v29, 8
    %v31 = vadd.s32 %v29, 16
    %v32 = vadd.s32 %v29, 24
    %v33 = vadd.s32 %v29, 32
    %v34 = vadd.s32 %v29, 40
    %v35 = vadd.s32 %v29, 48
    %v36 = vadd.s32 %v29, 56
    %v37 = vadd.s32 %v29, 64
    %v38 = vadd.s32 %v29, 72
    %v39 = vadd.s32 %v29, 80
    %v40 = vadd.s32 %v29, 88
    %v41 = vadd.s32 %v29, 96
    %v42 = vadd.s32 %v29, 104
    %v43 = vadd.s32 %v29, 112
    %v44 = vadd.s32 %v29, 120
    %v45 = vadd.s32 %v29, 128
    %v46 = vadd.s32 %v29, 136
    %v47 = vadd.s32 %v29, 144
    %v48 = vadd.s32 %v29, 152
    %v49 = vadd.s32 %v29, 160
    %v50 = vadd.s32 %v29, 168
    %v51 = vadd.s32 %v29, 176
    %v52 = vadd.s32 %v29, 184
    %v53 = vadd.s32 %v29, 192
    %v54 = vadd.s32 %v29, 200
    %v55 = vadd.s32 %v29, 208
    %v56 = vadd.s32 %v29, 216
    %v57 = vadd.s32 %v29, 224
    %v58 = vadd.s32 %v29, 232
    %v59 = vadd.s32 %v29, 240
    %v60 = vadd.s32 %v29, 248
    %v61 = vadd.s32 %v29, 256
    %v62 = vadd.s32 %v29, 264
    %v63 = vadd.s32 %v29, 272
    %v64 = vadd.s32 %v29, 280
    %v65 = vadd.s32 %v29, 288
    %v66 = vadd.s32 %v29, 296
    %v67 = vadd.s32 %v29, 304
    %v68 = vadd.s32 %v29, 312
    %v69 = vadd.s32 %v29, 320
    %v70 = vadd.s32 %v29, 328
    %v71 = vadd.s32 %v29, 336
    %v72 = vadd.s32 %v29, 344
    %v73 = vadd.s32 %v29, 352
    %v74 = vadd.s32 %v29, 360
    %v75 = vadd.s32 %v29, 368
    %v76 = vadd.s32 %v29, 376
    %v77 = vadd.s32 %v29, 384
    %v78 = vadd.s32 %v29, 392
    %v79 = vadd.s32 %v29, 400
    %v80 = vadd.s32 %v29, 408
    %v81 = vadd.s32 %v29, 416
    %v82 = vadd.s32 %v29, 424
    %v83 = vadd.s32 %v29, 432
    %v84 = vadd.s32 %v29, 440
    %v85 = vadd.s32 %v29, 448
    %v86 = vadd.s32 %v29, 456
    %v87 = vadd.s32 %v29, 464
    %v88 = vadd.s32 %v29, 472
    %v89 = vadd.s32 %v29, 480
    %v90 = vadd.s32 %v29, 488
    %v91 = vadd.s32 %v29, 496
    %v92 = vadd.s32 %v29, 504
    %v93 = vstv %s27
    %v94 = vadd.s32 %v93, %v29
    %v95 = vadd.s32 %v93, %v30
    %v96 = vadd.s32 %v93, %v31
    %v97 = vadd.s32 %v93, %v32
    %v98 = vadd.s32 %v93, %v33
    %v99 = vadd.s32 %v93, %v34
    %v100 = vadd.s32 %v93, %v35
    %v101 = vadd.s32 %v93, %v36
    %v102 = vadd.s32 %v93, %v37
    %v103 = vadd.s32 %v93, %v38
    %v104 = vadd.s32 %v93, %v39
    %v105 = vadd.s32 %v93, %v40
    %v106 = vadd.s32 %v93, %v41
    %v107 = vadd.s32 %v93, %v42
    %v108 = vadd.s32 %v93, %v43
    %v109 = vadd.s32 %v93, %v44
    %v110 = vadd.s32 %v93, %v45
    %v111 = vadd.s32 %v93, %v46
    %v112 = vadd.s32 %v93, %v47
    %v113 = vadd.s32 %v93, %v48
    %v114 = vadd.s32 %v93, %v49
    %v115 = vadd.s32 %v93, %v50
    %v116 = vadd.s32 %v93, %v51
    %v117 = vadd.s32 %v93, %v52
    %v118 = vadd.s32 %v93, %v53
    %v119 = vadd.s32 %v93, %v54
    %v120 = vadd.s32 %v93, %v55
    %v121 = vadd.s32 %v93, %v56
    %v122 = vadd.s32 %v93, %v57
    %v123 = vadd.s32 %v93, %v58
    %v124 = vadd.s32 %v93, %v59
    %v125 = vadd.s32 %v93, %v60
    %v126 = vadd.s32 %v93, %v61
    %v127 = vadd.s32 %v93, %v62
    %v128 = vadd.s32 %v93, %v63
    %v129 = vadd.s32 %v93, %v64
    %v130 = vadd.s32 %v93, %v65
    %v131 = vadd.s32 %v93, %v66
    %v132 = vadd.s32 %v93, %v67
    %v133 = vadd.s32 %v93, %v68
    %v134 = vadd.s32 %v93, %v69
    %v135 = vadd.s32 %v93, %v70
    %v136 = vadd.s32 %v93, %v71
    %v137 = vadd.s32 %v93, %v72
    %v138 = vadd.s32 %v93, %v73
    %v139 = vadd.s32 %v93, %v74
    %v140 = vadd.s32 %v93, %v75
    %v141 = vadd.s32 %v93, %v76
    %v142 = vadd.s32 %v93, %v77
    %v143 = vadd.s32 %v93, %v78
    %v144 = vadd.s32 %v93, %v79
    %v145 = vadd.s32 %v93, %v80
    %v146 = vadd.s32 %v93, %v81
    %v147 = vadd.s32 %v93, %v82
    %v148 = vadd.s32 %v93, %v83
    %v149 = vadd.s32 %v93, %v84
    %v150 = vadd.s32 %v93, %v85
    %v151 = vadd.s32 %v93, %v86
    %v152 = vadd.s32 %v93, %v87
    %v153 = vadd.s32 %v93, %v88
    %v154 = vadd.s32 %v93, %v89
    %v155 = vadd.s32 %v93, %v90
    %v156 = vadd.s32 %v93, %v91
    %v157 = vadd.s32 %v93, %v92
    %v158 = vmul.u32 %v94, 4
    %v159 = vmul.u32 %v95, 4
    %v160 = vmul.u32 %v96, 4
    %v161 = vmul.u32 %v97, 4
    %v162 = vmul.u32 %v98, 4
    %v163 = vmul.u32 %v99, 4
    %v164 = vmul.u32 %v100, 4
    %v165 = vmul.u32 %v101, 4
    %v166 = vmul.u32 %v102, 4
    %v167 = vmul.u32 %v103, 4
    %v168 = vmul.u32 %v104, 4
    %v169 = vmul.u32 %v105, 4
    %v170 = vmul.u32 %v106, 4
    %v171 = vmul.u32 %v107, 4
    %v172 = vmul.u32 %v108, 4
    %v173 = vmul.u32 %v109, 4
    %v174 = vmul.u32 %v110, 4
    %v175 = vmul.u32 %v111, 4
    %v176 = vmul.u32 %v112, 4
    %v177 = vmul.u32 %v113, 4
    %v178 = vmul.u32 %v114, 4
    %v179 = vmul.u32 %v115, 4
    %v180 = vmul.u32 %v116, 4
    %v181 = vmul.u32 %v117, 4
    %v182 = vmul.u32 %v118, 4
    %v183 = vmul.u32 %v119, 4
    %v184 = vmul.u32 %v120, 4
    %v185 = vmul.u32 %v121, 4
    %v186 = vmul.u32 %v122, 4
    %v187 = vmul.u32 %v123, 4
    %v188 = vmul.u32 %v124, 4
    %v189 = vmul.u32 %v125, 4
    %v190 = vmul.u32 %v126, 4
    %v191 = vmul.u32 %v127, 4
    %v192 = vmul.u32 %v128, 4
    %v193 = vmul.u32 %v129, 4
    %v194 = vmul.u32 %v130, 4
    %v195 = vmul.u32 %v131, 4
    %v196 = vmul.u32 %v132, 4
    %v197 = vmul.u32 %v133, 4
    %v198 = vmul.u32 %v134, 4
    %v199 = vmul.u32 %v135, 4
    %v200 = vmul.u32 %v136, 4
    %v201 = vmul.u32 %v137, 4
    %v202 = vmul.u32 %v138, 4
    %v203 = vmul.u32 %v139, 4
    %v204 = vmul.u32 %v140, 4
    %v205 = vmul.u32 %v141, 4
    %v206 = vmul.u32 %v142, 4
    %v207 = vmul.u32 %v143, 4
    %v208 = vmul.u32 %v144, 4
    %v209 = vmul.u32 %v145, 4
    %v210 = vmul.u32 %v146, 4
    %v211 = vmul.u32 %v147, 4
    %v212 = vmul.u32 %v148, 4
    %v213 = vmul.u32 %v149, 4
    %v214 = vmul.u32 %v150, 4
    %v215 = vmul.u32 %v151, 4
    %v216 = vmul.u32 %v152, 4
    %v217 = vmul.u32 %v153, 4
    %v218 = vmul.u32 %v154, 4
    %v219 = vmul.u32 %v155, 4
    %v220 = vmul.u32 %v156, 4
    %v221 = vmul.u32 %v157, 4
    %v222 = vld [vmem:[%s1] sm:$0x1]
    %v223 = vlaneseq
    %v224 = vshrl.u32 %v223, 7
    %v225 = vsub.s32 0, %v224
    %v226 = vrot.slane %v222, %v225
    %v227 = vadd.s32 %v158, %v226
    %v228 = vadd.s32 %v159, %v226
    %v229 = vadd.s32 %v160, %v226
    %v230 = vadd.s32 %v161, %v226
    %v231 = vadd.s32 %v162, %v226
    %v232 = vadd.s32 %v163, %v226
    %v233 = vadd.s32 %v164, %v226
    %v234 = vadd.s32 %v165, %v226
    %v235 = vadd.s32 %v166, %v226
    %v236 = vadd.s32 %v167, %v226
    %v237 = vadd.s32 %v168, %v226
    %v238 = vadd.s32 %v169, %v226
    %v239 = vadd.s32 %v170, %v226
    %v240 = vadd.s32 %v171, %v226
    %v241 = vadd.s32 %v172, %v226
    %v242 = vadd.s32 %v173, %v226
    %v243 = vadd.s32 %v174, %v226
    %v244 = vadd.s32 %v175, %v226
    %v245 = vadd.s32 %v176, %v226
    %v246 = vadd.s32 %v177, %v226
    %v247 = vadd.s32 %v178, %v226
    %v248 = vadd.s32 %v179, %v226
    %v249 = vadd.s32 %v180, %v226
    %v250 = vadd.s32 %v181, %v226
    %v251 = vadd.s32 %v182, %v226
    %v252 = vadd.s32 %v183, %v226
    %v253 = vadd.s32 %v184, %v226
    %v254 = vadd.s32 %v185, %v226
    %v255 = vadd.s32 %v186, %v226
    %v256 = vadd.s32 %v187, %v226
    %v257 = vadd.s32 %v188, %v226
    %v258 = vadd.s32 %v189, %v226
    %v259 = vadd.s32 %v190, %v226
    %v260 = vadd.s32 %v191, %v226
    %v261 = vadd.s32 %v192, %v226
    %v262 = vadd.s32 %v193, %v226
    %v263 = vadd.s32 %v194, %v226
    %v264 = vadd.s32 %v195, %v226
    %v265 = vadd.s32 %v196, %v226
    %v266 = vadd.s32 %v197, %v226
    %v267 = vadd.s32 %v198, %v226
    %v268 = vadd.s32 %v199, %v226
    %v269 = vadd.s32 %v200, %v226
    %v270 = vadd.s32 %v201, %v226
    %v271 = vadd.s32 %v202, %v226
    %v272 = vadd.s32 %v203, %v226
    %v273 = vadd.s32 %v204, %v226
    %v274 = vadd.s32 %v205, %v226
    %v275 = vadd.s32 %v206, %v226
    %v276 = vadd.s32 %v207, %v226
    %v277 = vadd.s32 %v208, %v226
    %v278 = vadd.s32 %v209, %v226
    %v279 = vadd.s32 %v210, %v226
    %v280 = vadd.s32 %v211, %v226
    %v281 = vadd.s32 %v212, %v226
    %v282 = vadd.s32 %v213, %v226
    %v283 = vadd.s32 %v214, %v226
    %v284 = vadd.s32 %v215, %v226
    %v285 = vadd.s32 %v216, %v226
    %v286 = vadd.s32 %v217, %v226
    %v287 = vadd.s32 %v218, %v226
    %v288 = vadd.s32 %v219, %v226
    %v289 = vadd.s32 %v220, %v226
    %v290 = vadd.s32 %v221, %v226
    %v291 = vcvt.s32.f32 %v227
    %v292 = vcvt.s32.f32 %v228
    %v293 = vcvt.s32.f32 %v229
    %v294 = vcvt.s32.f32 %v230
    %v295 = vcvt.s32.f32 %v231
    %v296 = vcvt.s32.f32 %v232
    %v297 = vcvt.s32.f32 %v233
    %v298 = vcvt.s32.f32 %v234
    %v299 = vcvt.s32.f32 %v235
    %v300 = vcvt.s32.f32 %v236
    %v301 = vcvt.s32.f32 %v237
    %v302 = vcvt.s32.f32 %v238
    %v303 = vcvt.s32.f32 %v239
    %v304 = vcvt.s32.f32 %v240
    %v305 = vcvt.s32.f32 %v241
    %v306 = vcvt.s32.f32 %v242
    %v307 = vcvt.s32.f32 %v243
    %v308 = vcvt.s32.f32 %v244
    %v309 = vcvt.s32.f32 %v245
    %v310 = vcvt.s32.f32 %v246
    %v311 = vcvt.s32.f32 %v247
    %v312 = vcvt.s32.f32 %v248
    %v313 = vcvt.s32.f32 %v249
    %v314 = vcvt.s32.f32 %v250
    %v315 = vcvt.s32.f32 %v251
    %v316 = vcvt.s32.f32 %v252
    %v317 = vcvt.s32.f32 %v253
    %v318 = vcvt.s32.f32 %v254
    %v319 = vcvt.s32.f32 %v255
    %v320 = vcvt.s32.f32 %v256
    %v321 = vcvt.s32.f32 %v257
    %v322 = vcvt.s32.f32 %v258
    %v323 = vcvt.s32.f32 %v259
    %v324 = vcvt.s32.f32 %v260
    %v325 = vcvt.s32.f32 %v261
    %v326 = vcvt.s32.f32 %v262
    %v327 = vcvt.s32.f32 %v263
    %v328 = vcvt.s32.f32 %v264
    %v329 = vcvt.s32.f32 %v265
    %v330 = vcvt.s32.f32 %v266
    %v331 = vcvt.s32.f32 %v267
    %v332 = vcvt.s32.f32 %v268
    %v333 = vcvt.s32.f32 %v269
    %v334 = vcvt.s32.f32 %v270
    %v335 = vcvt.s32.f32 %v271
    %v336 = vcvt.s32.f32 %v272
    %v337 = vcvt.s32.f32 %v273
    %v338 = vcvt.s32.f32 %v274
    %v339 = vcvt.s32.f32 %v275
    %v340 = vcvt.s32.f32 %v276
    %v341 = vcvt.s32.f32 %v277
    %v342 = vcvt.s32.f32 %v278
    %v343 = vcvt.s32.f32 %v279
    %v344 = vcvt.s32.f32 %v280
    %v345 = vcvt.s32.f32 %v281
    %v346 = vcvt.s32.f32 %v282
    %v347 = vcvt.s32.f32 %v283
    %v348 = vcvt.s32.f32 %v284
    %v349 = vcvt.s32.f32 %v285
    %v350 = vcvt.s32.f32 %v286
    %v351 = vcvt.s32.f32 %v287
    %v352 = vcvt.s32.f32 %v288
    %v353 = vcvt.s32.f32 %v289
    %v354 = vcvt.s32.f32 %v290
    %v355 = vld [vmem:[#allocation2] sm:$0x1]
    %v357 = vlaneseq
    %v358 = vshrl.u32 %v357, 7
    %v359 = vsub.s32 0, %v358
    %v360 = vrot.slane %v355, %v359
    %v362 = vmul.f32 %v291, %v360
    %v363 = vmul.f32 %v292, %v360
    %v364 = vmul.f32 %v293, %v360
    %v365 = vmul.f32 %v294, %v360
    %v366 = vmul.f32 %v295, %v360
    %v367 = vmul.f32 %v296, %v360
    %v368 = vmul.f32 %v297, %v360
    %v369 = vmul.f32 %v298, %v360
    %v370 = vmul.f32 %v299, %v360
    %v371 = vmul.f32 %v300, %v360
    %v372 = vmul.f32 %v301, %v360
    %v373 = vmul.f32 %v302, %v360
    %v374 = vmul.f32 %v303, %v360
    %v375 = vmul.f32 %v304, %v360
    %v376 = vmul.f32 %v305, %v360
    %v377 = vmul.f32 %v306, %v360
    %v378 = vmul.f32 %v307, %v360
    %v379 = vmul.f32 %v308, %v360
    %v380 = vmul.f32 %v309, %v360
    %v381 = vmul.f32 %v310, %v360
    %v382 = vmul.f32 %v311, %v360
    %v383 = vmul.f32 %v312, %v360
    %v384 = vmul.f32 %v313, %v360
    %v385 = vmul.f32 %v314, %v360
    %v386 = vmul.f32 %v315, %v360
    %v387 = vmul.f32 %v316, %v360
    %v388 = vmul.f32 %v317, %v360
    %v389 = vmul.f32 %v318, %v360
    %v390 = vmul.f32 %v319, %v360
    %v391 = vmul.f32 %v320, %v360
    %v392 = vmul.f32 %v321, %v360
    %v393 = vmul.f32 %v322, %v360
    %v394 = vmul.f32 %v323, %v360
    %v395 = vmul.f32 %v324, %v360
    %v396 = vmul.f32 %v325, %v360
    %v397 = vmul.f32 %v326, %v360
    %v398 = vmul.f32 %v327, %v360
    %v399 = vmul.f32 %v328, %v360
    %v400 = vmul.f32 %v329, %v360
    %v401 = vmul.f32 %v330, %v360
    %v402 = vmul.f32 %v331, %v360
    %v403 = vmul.f32 %v332, %v360
    %v404 = vmul.f32 %v333, %v360
    %v405 = vmul.f32 %v334, %v360
    %v406 = vmul.f32 %v335, %v360
    %v407 = vmul.f32 %v336, %v360
    %v408 = vmul.f32 %v337, %v360
    %v409 = vmul.f32 %v338, %v360
    %v410 = vmul.f32 %v339, %v360
    %v411 = vmul.f32 %v340, %v360
    %v412 = vmul.f32 %v341, %v360
    %v413 = vmul.f32 %v342, %v360
    %v414 = vmul.f32 %v343, %v360
    %v415 = vmul.f32 %v344, %v360
    %v416 = vmul.f32 %v345, %v360
    %v417 = vmul.f32 %v346, %v360
    %v418 = vmul.f32 %v347, %v360
    %v419 = vmul.f32 %v348, %v360
    %v420 = vmul.f32 %v349, %v360
    %v421 = vmul.f32 %v350, %v360
    %v422 = vmul.f32 %v351, %v360
    %v423 = vmul.f32 %v352, %v360
    %v424 = vmul.f32 %v353, %v360
    %v425 = vmul.f32 %v354, %v360
    %v426 = vmul.f32 %v362, 0.63661975
    %v427 = vmul.f32 %v363, 0.63661975
    %v428 = vmul.f32 %v364, 0.63661975
    %v429 = vmul.f32 %v365, 0.63661975
    %v430 = vmul.f32 %v366, 0.63661975
    %v431 = vmul.f32 %v367, 0.63661975
    %v432 = vmul.f32 %v368, 0.63661975
    %v433 = vmul.f32 %v369, 0.63661975
    %v434 = vmul.f32 %v370, 0.63661975
    %v435 = vmul.f32 %v371, 0.63661975
    %v436 = vmul.f32 %v372, 0.63661975
    %v437 = vmul.f32 %v373, 0.63661975
    %v438 = vmul.f32 %v374, 0.63661975
    %v439 = vmul.f32 %v375, 0.63661975
    %v440 = vmul.f32 %v376, 0.63661975
    %v441 = vmul.f32 %v377, 0.63661975
    %v442 = vmul.f32 %v378, 0.63661975
    %v443 = vmul.f32 %v379, 0.63661975
    %v444 = vmul.f32 %v380, 0.63661975
    %v445 = vmul.f32 %v381, 0.63661975
    %v446 = vmul.f32 %v382, 0.63661975
    %v447 = vmul.f32 %v383, 0.63661975
    %v448 = vmul.f32 %v384, 0.63661975
    %v449 = vmul.f32 %v385, 0.63661975
    %v450 = vmul.f32 %v386, 0.63661975
    %v451 = vmul.f32 %v387, 0.63661975
    %v452 = vmul.f32 %v388, 0.63661975
    %v453 = vmul.f32 %v389, 0.63661975
    %v454 = vmul.f32 %v390, 0.63661975
    %v455 = vmul.f32 %v391, 0.63661975
    %v456 = vmul.f32 %v392, 0.63661975
    %v457 = vmul.f32 %v393, 0.63661975
    %v458 = vmul.f32 %v394, 0.63661975
    %v459 = vmul.f32 %v395, 0.63661975
    %v460 = vmul.f32 %v396, 0.63661975
    %v461 = vmul.f32 %v397, 0.63661975
    %v462 = vmul.f32 %v398, 0.63661975
    %v463 = vmul.f32 %v399, 0.63661975
    %v464 = vmul.f32 %v400, 0.63661975
    %v465 = vmul.f32 %v401, 0.63661975
    %v466 = vmul.f32 %v402, 0.63661975
    %v467 = vmul.f32 %v403, 0.63661975
    %v468 = vmul.f32 %v404, 0.63661975
    %v469 = vmul.f32 %v405, 0.63661975
    %v470 = vmul.f32 %v406, 0.63661975
    %v471 = vmul.f32 %v407, 0.63661975
    %v472 = vmul.f32 %v408, 0.63661975
    %v473 = vmul.f32 %v409, 0.63661975
    %v474 = vmul.f32 %v410, 0.63661975
    %v475 = vmul.f32 %v411, 0.63661975
    %v476 = vmul.f32 %v412, 0.63661975
    %v477 = vmul.f32 %v413, 0.63661975
    %v478 = vmul.f32 %v414, 0.63661975
    %v479 = vmul.f32 %v415, 0.63661975
    %v480 = vmul.f32 %v416, 0.63661975
    %v481 = vmul.f32 %v417, 0.63661975
    %v482 = vmul.f32 %v418, 0.63661975
    %v483 = vmul.f32 %v419, 0.63661975
    %v484 = vmul.f32 %v420, 0.63661975
    %v485 = vmul.f32 %v421, 0.63661975
    %v486 = vmul.f32 %v422, 0.63661975
    %v487 = vmul.f32 %v423, 0.63661975
    %v488 = vmul.f32 %v424, 0.63661975
    %v489 = vmul.f32 %v425, 0.63661975
    %v490 = vadd.f32 %v426, 0.5
    %v491 = vadd.f32 %v427, 0.5
    %v492 = vadd.f32 %v428, 0.5
    %v493 = vadd.f32 %v429, 0.5
    %v494 = vadd.f32 %v430, 0.5
    %v495 = vadd.f32 %v431, 0.5
    %v496 = vadd.f32 %v432, 0.5
    %v497 = vadd.f32 %v433, 0.5
    %v498 = vadd.f32 %v434, 0.5
    %v499 = vadd.f32 %v435, 0.5
    %v500 = vadd.f32 %v436, 0.5
    %v501 = vadd.f32 %v437, 0.5
    %v502 = vadd.f32 %v438, 0.5
    %v503 = vadd.f32 %v439, 0.5
    %v504 = vadd.f32 %v440, 0.5
    %v505 = vadd.f32 %v441, 0.5
    %v506 = vadd.f32 %v442, 0.5
    %v507 = vadd.f32 %v443, 0.5
    %v508 = vadd.f32 %v444, 0.5
    %v509 = vadd.f32 %v445, 0.5
    %v510 = vadd.f32 %v446, 0.5
    %v511 = vadd.f32 %v447, 0.5
    %v512 = vadd.f32 %v448, 0.5
    %v513 = vadd.f32 %v449, 0.5
    %v514 = vadd.f32 %v450, 0.5
    %v515 = vadd.f32 %v451, 0.5
    %v516 = vadd.f32 %v452, 0.5
    %v517 = vadd.f32 %v453, 0.5
    %v518 = vadd.f32 %v454, 0.5
    %v519 = vadd.f32 %v455, 0.5
    %v520 = vadd.f32 %v456, 0.5
    %v521 = vadd.f32 %v457, 0.5
    %v522 = vadd.f32 %v458, 0.5
    %v523 = vadd.f32 %v459, 0.5
    %v524 = vadd.f32 %v460, 0.5
    %v525 = vadd.f32 %v461, 0.5
    %v526 = vadd.f32 %v462, 0.5
    %v527 = vadd.f32 %v463, 0.5
    %v528 = vadd.f32 %v464, 0.5
    %v529 = vadd.f32 %v465, 0.5
    %v530 = vadd.f32 %v466, 0.5
    %v531 = vadd.f32 %v467, 0.5
    %v532 = vadd.f32 %v468, 0.5
    %v533 = vadd.f32 %v469, 0.5
    %v534 = vadd.f32 %v470, 0.5
    %v535 = vadd.f32 %v471, 0.5
    %v536 = vadd.f32 %v472, 0.5
    %v537 = vadd.f32 %v473, 0.5
    %v538 = vadd.f32 %v474, 0.5
    %v539 = vadd.f32 %v475, 0.5
    %v540 = vadd.f32 %v476, 0.5
    %v541 = vadd.f32 %v477, 0.5
    %v542 = vadd.f32 %v478, 0.5
    %v543 = vadd.f32 %v479, 0.5
    %v544 = vadd.f32 %v480, 0.5
    %v545 = vadd.f32 %v481, 0.5
    %v546 = vadd.f32 %v482, 0.5
    %v547 = vadd.f32 %v483, 0.5
    %v548 = vadd.f32 %v484, 0.5
    %v549 = vadd.f32 %v485, 0.5
    %v550 = vadd.f32 %v486, 0.5
    %v551 = vadd.f32 %v487, 0.5
    %v552 = vadd.f32 %v488, 0.5
    %v553 = vadd.f32 %v489, 0.5
    %v554 = vfloor.f32 %v490
    %v555 = vfloor.f32 %v491
    %v556 = vfloor.f32 %v492
    %v557 = vfloor.f32 %v493
    %v558 = vfloor.f32 %v494
    %v559 = vfloor.f32 %v495
    %v560 = vfloor.f32 %v496
    %v561 = vfloor.f32 %v497
    %v562 = vfloor.f32 %v498
    %v563 = vfloor.f32 %v499
    %v564 = vfloor.f32 %v500
    %v565 = vfloor.f32 %v501
    %v566 = vfloor.f32 %v502
    %v567 = vfloor.f32 %v503
    %v568 = vfloor.f32 %v504
    %v569 = vfloor.f32 %v505
    %v570 = vfloor.f32 %v506
    %v571 = vfloor.f32 %v507
    %v572 = vfloor.f32 %v508
    %v573 = vfloor.f32 %v509
    %v574 = vfloor.f32 %v510
    %v575 = vfloor.f32 %v511
    %v576 = vfloor.f32 %v512
    %v577 = vfloor.f32 %v513
    %v578 = vfloor.f32 %v514
    %v579 = vfloor.f32 %v515
    %v580 = vfloor.f32 %v516
    %v581 = vfloor.f32 %v517
    %v582 = vfloor.f32 %v518
    %v583 = vfloor.f32 %v519
    %v584 = vfloor.f32 %v520
    %v585 = vfloor.f32 %v521
    %v586 = vfloor.f32 %v522
    %v587 = vfloor.f32 %v523
    %v588 = vfloor.f32 %v524
    %v589 = vfloor.f32 %v525
    %v590 = vfloor.f32 %v526
    %v591 = vfloor.f32 %v527
    %v592 = vfloor.f32 %v528
    %v593 = vfloor.f32 %v529
    %v594 = vfloor.f32 %v530
    %v595 = vfloor.f32 %v531
    %v596 = vfloor.f32 %v532
    %v597 = vfloor.f32 %v533
    %v598 = vfloor.f32 %v534
    %v599 = vfloor.f32 %v535
    %v600 = vfloor.f32 %v536
    %v601 = vfloor.f32 %v537
    %v602 = vfloor.f32 %v538
    %v603 = vfloor.f32 %v539
    %v604 = vfloor.f32 %v540
    %v605 = vfloor.f32 %v541
    %v606 = vfloor.f32 %v542
    %v607 = vfloor.f32 %v543
    %v608 = vfloor.f32 %v544
    %v609 = vfloor.f32 %v545
    %v610 = vfloor.f32 %v546
    %v611 = vfloor.f32 %v547
    %v612 = vfloor.f32 %v548
    %v613 = vfloor.f32 %v549
    %v614 = vfloor.f32 %v550
    %v615 = vfloor.f32 %v551
    %v616 = vfloor.f32 %v552
    %v617 = vfloor.f32 %v553
    %v618 = vmul.f32 %v554, 1.5703125
    %v619 = vmul.f32 %v555, 1.5703125
    %v620 = vmul.f32 %v556, 1.5703125
    %v621 = vmul.f32 %v557, 1.5703125
    %v622 = vmul.f32 %v558, 1.5703125
    %v623 = vmul.f32 %v559, 1.5703125
    %v624 = vmul.f32 %v560, 1.5703125
    %v625 = vmul.f32 %v561, 1.5703125
    %v626 = vmul.f32 %v562, 1.5703125
    %v627 = vmul.f32 %v563, 1.5703125
    %v628 = vmul.f32 %v564, 1.5703125
    %v629 = vmul.f32 %v565, 1.5703125
    %v630 = vmul.f32 %v566, 1.5703125
    %v631 = vmul.f32 %v567, 1.5703125
    %v632 = vmul.f32 %v568, 1.5703125
    %v633 = vmul.f32 %v569, 1.5703125
    %v634 = vmul.f32 %v570, 1.5703125
    %v635 = vmul.f32 %v571, 1.5703125
    %v636 = vmul.f32 %v572, 1.5703125
    %v637 = vmul.f32 %v573, 1.5703125
    %v638 = vmul.f32 %v574, 1.5703125
    %v639 = vmul.f32 %v575, 1.5703125
    %v640 = vmul.f32 %v576, 1.5703125
    %v641 = vmul.f32 %v577, 1.5703125
    %v642 = vmul.f32 %v578, 1.5703125
    %v643 = vmul.f32 %v579, 1.5703125
    %v644 = vmul.f32 %v580, 1.5703125
    %v645 = vmul.f32 %v581, 1.5703125
    %v646 = vmul.f32 %v582, 1.5703125
    %v647 = vmul.f32 %v583, 1.5703125
    %v648 = vmul.f32 %v584, 1.5703125
    %v649 = vmul.f32 %v585, 1.5703125
    %v650 = vmul.f32 %v586, 1.5703125
    %v651 = vmul.f32 %v587, 1.5703125
    %v652 = vmul.f32 %v588, 1.5703125
    %v653 = vmul.f32 %v589, 1.5703125
    %v654 = vmul.f32 %v590, 1.5703125
    %v655 = vmul.f32 %v591, 1.5703125
    %v656 = vmul.f32 %v592, 1.5703125
    %v657 = vmul.f32 %v593, 1.5703125
    %v658 = vmul.f32 %v594, 1.5703125
    %v659 = vmul.f32 %v595, 1.5703125
    %v660 = vmul.f32 %v596, 1.5703125
    %v661 = vmul.f32 %v597, 1.5703125
    %v662 = vmul.f32 %v598, 1.5703125
    %v663 = vmul.f32 %v599, 1.5703125
    %v664 = vmul.f32 %v600, 1.5703125
    %v665 = vmul.f32 %v601, 1.5703125
    %v666 = vmul.f32 %v602, 1.5703125
    %v667 = vmul.f32 %v603, 1.5703125
    %v668 = vmul.f32 %v604, 1.5703125
    %v669 = vmul.f32 %v605, 1.5703125
    %v670 = vmul.f32 %v606, 1.5703125
    %v671 = vmul.f32 %v607, 1.5703125
    %v672 = vmul.f32 %v608, 1.5703125
    %v673 = vmul.f32 %v609, 1.5703125
    %v674 = vmul.f32 %v610, 1.5703125
    %v675 = vmul.f32 %v611, 1.5703125
    %v676 = vmul.f32 %v612, 1.5703125
    %v677 = vmul.f32 %v613, 1.5703125
    %v678 = vmul.f32 %v614, 1.5703125
    %v679 = vmul.f32 %v615, 1.5703125
    %v680 = vmul.f32 %v616, 1.5703125
    %v681 = vmul.f32 %v617, 1.5703125
    %v682 = vsub.f32 %v362, %v618
    %v683 = vsub.f32 %v363, %v619
    %v684 = vsub.f32 %v364, %v620
    %v685 = vsub.f32 %v365, %v621
    %v686 = vsub.f32 %v366, %v622
    %v687 = vsub.f32 %v367, %v623
    %v688 = vsub.f32 %v368, %v624
    %v689 = vsub.f32 %v369, %v625
    %v690 = vsub.f32 %v370, %v626
    %v691 = vsub.f32 %v371, %v627
    %v692 = vsub.f32 %v372, %v628
    %v693 = vsub.f32 %v373, %v629
    %v694 = vsub.f32 %v374, %v630
    %v695 = vsub.f32 %v375, %v631
    %v696 = vsub.f32 %v376, %v632
    %v697 = vsub.f32 %v377, %v633
    %v698 = vsub.f32 %v378, %v634
    %v699 = vsub.f32 %v379, %v635
    %v700 = vsub.f32 %v380, %v636
    %v701 = vsub.f32 %v381, %v637
    %v702 = vsub.f32 %v382, %v638
    %v703 = vsub.f32 %v383, %v639
    %v704 = vsub.f32 %v384, %v640
    %v705 = vsub.f32 %v385, %v641
    %v706 = vsub.f32 %v386, %v642
    %v707 = vsub.f32 %v387, %v643
    %v708 = vsub.f32 %v388, %v644
    %v709 = vsub.f32 %v389, %v645
    %v710 = vsub.f32 %v390, %v646
    %v711 = vsub.f32 %v391, %v647
    %v712 = vsub.f32 %v392, %v648
    %v713 = vsub.f32 %v393, %v649
    %v714 = vsub.f32 %v394, %v650
    %v715 = vsub.f32 %v395, %v651
    %v716 = vsub.f32 %v396, %v652
    %v717 = vsub.f32 %v397, %v653
    %v718 = vsub.f32 %v398, %v654
    %v719 = vsub.f32 %v399, %v655
    %v720 = vsub.f32 %v400, %v656
    %v721 = vsub.f32 %v401, %v657
    %v722 = vsub.f32 %v402, %v658
    %v723 = vsub.f32 %v403, %v659
    %v724 = vsub.f32 %v404, %v660
    %v725 = vsub.f32 %v405, %v661
    %v726 = vsub.f32 %v406, %v662
    %v727 = vsub.f32 %v407, %v663
    %v728 = vsub.f32 %v408, %v664
    %v729 = vsub.f32 %v409, %v665
    %v730 = vsub.f32 %v410, %v666
    %v731 = vsub.f32 %v411, %v667
    %v732 = vsub.f32 %v412, %v668
    %v733 = vsub.f32 %v413, %v669
    %v734 = vsub.f32 %v414, %v670
    %v735 = vsub.f32 %v415, %v671
    %v736 = vsub.f32 %v416, %v672
    %v737 = vsub.f32 %v417, %v673
    %v738 = vsub.f32 %v418, %v674
    %v739 = vsub.f32 %v419, %v675
    %v740 = vsub.f32 %v420, %v676
    %v741 = vsub.f32 %v421, %v677
    %v742 = vsub.f32 %v422, %v678
    %v743 = vsub.f32 %v423, %v679
    %v744 = vsub.f32 %v424, %v680
    %v745 = vsub.f32 %v425, %v681
    %v746 = vmul.f32 %v554, 0.0004837513
    %v747 = vmul.f32 %v555, 0.0004837513
    %v748 = vmul.f32 %v556, 0.0004837513
    %v749 = vmul.f32 %v557, 0.0004837513
    %v750 = vmul.f32 %v558, 0.0004837513
    %v751 = vmul.f32 %v559, 0.0004837513
    %v752 = vmul.f32 %v560, 0.0004837513
    %v753 = vmul.f32 %v561, 0.0004837513
    %v754 = vmul.f32 %v562, 0.0004837513
    %v755 = vmul.f32 %v563, 0.0004837513
    %v756 = vmul.f32 %v564, 0.0004837513
    %v757 = vmul.f32 %v565, 0.0004837513
    %v758 = vmul.f32 %v566, 0.0004837513
    %v759 = vmul.f32 %v567, 0.0004837513
    %v760 = vmul.f32 %v568, 0.0004837513
    %v761 = vmul.f32 %v569, 0.0004837513
    %v762 = vmul.f32 %v570, 0.0004837513
    %v763 = vmul.f32 %v571, 0.0004837513
    %v764 = vmul.f32 %v572, 0.0004837513
    %v765 = vmul.f32 %v573, 0.0004837513
    %v766 = vmul.f32 %v574, 0.0004837513
    %v767 = vmul.f32 %v575, 0.0004837513
    %v768 = vmul.f32 %v576, 0.0004837513
    %v769 = vmul.f32 %v577, 0.0004837513
    %v770 = vmul.f32 %v578, 0.0004837513
    %v771 = vmul.f32 %v579, 0.0004837513
    %v772 = vmul.f32 %v580, 0.0004837513
    %v773 = vmul.f32 %v581, 0.0004837513
    %v774 = vmul.f32 %v582, 0.0004837513
    %v775 = vmul.f32 %v583, 0.0004837513
    %v776 = vmul.f32 %v584, 0.0004837513
    %v777 = vmul.f32 %v585, 0.0004837513
    %v778 = vmul.f32 %v586, 0.0004837513
    %v779 = vmul.f32 %v587, 0.0004837513
    %v780 = vmul.f32 %v588, 0.0004837513
    %v781 = vmul.f32 %v589, 0.0004837513
    %v782 = vmul.f32 %v590, 0.0004837513
    %v783 = vmul.f32 %v591, 0.0004837513
    %v784 = vmul.f32 %v592, 0.0004837513
    %v785 = vmul.f32 %v593, 0.0004837513
    %v786 = vmul.f32 %v594, 0.0004837513
    %v787 = vmul.f32 %v595, 0.0004837513
    %v788 = vmul.f32 %v596, 0.0004837513
    %v789 = vmul.f32 %v597, 0.0004837513
    %v790 = vmul.f32 %v598, 0.0004837513
    %v791 = vmul.f32 %v599, 0.0004837513
    %v792 = vmul.f32 %v600, 0.0004837513
    %v793 = vmul.f32 %v601, 0.0004837513
    %v794 = vmul.f32 %v602, 0.0004837513
    %v795 = vmul.f32 %v603, 0.0004837513
    %v796 = vmul.f32 %v604, 0.0004837513
    %v797 = vmul.f32 %v605, 0.0004837513
    %v798 = vmul.f32 %v606, 0.0004837513
    %v799 = vmul.f32 %v607, 0.0004837513
    %v800 = vmul.f32 %v608, 0.0004837513
    %v801 = vmul.f32 %v609, 0.0004837513
    %v802 = vmul.f32 %v610, 0.0004837513
    %v803 = vmul.f32 %v611, 0.0004837513
    %v804 = vmul.f32 %v612, 0.0004837513
    %v805 = vmul.f32 %v613, 0.0004837513
    %v806 = vmul.f32 %v614, 0.0004837513
    %v807 = vmul.f32 %v615, 0.0004837513
    %v808 = vmul.f32 %v616, 0.0004837513
    %v809 = vmul.f32 %v617, 0.0004837513
    %v810 = vsub.f32 %v682, %v746
    %v811 = vsub.f32 %v683, %v747
    %v812 = vsub.f32 %v684, %v748
    %v813 = vsub.f32 %v685, %v749
    %v814 = vsub.f32 %v686, %v750
    %v815 = vsub.f32 %v687, %v751
    %v816 = vsub.f32 %v688, %v752
    %v817 = vsub.f32 %v689, %v753
    %v818 = vsub.f32 %v690, %v754
    %v819 = vsub.f32 %v691, %v755
    %v820 = vsub.f32 %v692, %v756
    %v821 = vsub.f32 %v693, %v757
    %v822 = vsub.f32 %v694, %v758
    %v823 = vsub.f32 %v695, %v759
    %v824 = vsub.f32 %v696, %v760
    %v825 = vsub.f32 %v697, %v761
    %v826 = vsub.f32 %v698, %v762
    %v827 = vsub.f32 %v699, %v763
    %v828 = vsub.f32 %v700, %v764
    %v829 = vsub.f32 %v701, %v765
    %v830 = vsub.f32 %v702, %v766
    %v831 = vsub.f32 %v703, %v767
    %v832 = vsub.f32 %v704, %v768
    %v833 = vsub.f32 %v705, %v769
    %v834 = vsub.f32 %v706, %v770
    %v835 = vsub.f32 %v707, %v771
    %v836 = vsub.f32 %v708, %v772
    %v837 = vsub.f32 %v709, %v773
    %v838 = vsub.f32 %v710, %v774
    %v839 = vsub.f32 %v711, %v775
    %v840 = vsub.f32 %v712, %v776
    %v841 = vsub.f32 %v713, %v777
    %v842 = vsub.f32 %v714, %v778
    %v843 = vsub.f32 %v715, %v779
    %v844 = vsub.f32 %v716, %v780
    %v845 = vsub.f32 %v717, %v781
    %v846 = vsub.f32 %v718, %v782
    %v847 = vsub.f32 %v719, %v783
    %v848 = vsub.f32 %v720, %v784
    %v849 = vsub.f32 %v721, %v785
    %v850 = vsub.f32 %v722, %v786
    %v851 = vsub.f32 %v723, %v787
    %v852 = vsub.f32 %v724, %v788
    %v853 = vsub.f32 %v725, %v789
    %v854 = vsub.f32 %v726, %v790
    %v855 = vsub.f32 %v727, %v791
    %v856 = vsub.f32 %v728, %v792
    %v857 = vsub.f32 %v729, %v793
    %v858 = vsub.f32 %v730, %v794
    %v859 = vsub.f32 %v731, %v795
    %v860 = vsub.f32 %v732, %v796
    %v861 = vsub.f32 %v733, %v797
    %v862 = vsub.f32 %v734, %v798
    %v863 = vsub.f32 %v735, %v799
    %v864 = vsub.f32 %v736, %v800
    %v865 = vsub.f32 %v737, %v801
    %v866 = vsub.f32 %v738, %v802
    %v867 = vsub.f32 %v739, %v803
    %v868 = vsub.f32 %v740, %v804
    %v869 = vsub.f32 %v741, %v805
    %v870 = vsub.f32 %v742, %v806
    %v871 = vsub.f32 %v743, %v807
    %v872 = vsub.f32 %v744, %v808
    %v873 = vsub.f32 %v745, %v809
    %v874 = vmul.f32 %v554, 7.54979e-08
    %v875 = vmul.f32 %v555, 7.54979e-08
    %v876 = vmul.f32 %v556, 7.54979e-08
    %v877 = vmul.f32 %v557, 7.54979e-08
    %v878 = vmul.f32 %v558, 7.54979e-08
    %v879 = vmul.f32 %v559, 7.54979e-08
    %v880 = vmul.f32 %v560, 7.54979e-08
    %v881 = vmul.f32 %v561, 7.54979e-08
    %v882 = vmul.f32 %v562, 7.54979e-08
    %v883 = vmul.f32 %v563, 7.54979e-08
    %v884 = vmul.f32 %v564, 7.54979e-08
    %v885 = vmul.f32 %v565, 7.54979e-08
    %v886 = vmul.f32 %v566, 7.54979e-08
    %v887 = vmul.f32 %v567, 7.54979e-08
    %v888 = vmul.f32 %v568, 7.54979e-08
    %v889 = vmul.f32 %v569, 7.54979e-08
    %v890 = vmul.f32 %v570, 7.54979e-08
    %v891 = vmul.f32 %v571, 7.54979e-08
    %v892 = vmul.f32 %v572, 7.54979e-08
    %v893 = vmul.f32 %v573, 7.54979e-08
    %v894 = vmul.f32 %v574, 7.54979e-08
    %v895 = vmul.f32 %v575, 7.54979e-08
    %v896 = vmul.f32 %v576, 7.54979e-08
    %v897 = vmul.f32 %v577, 7.54979e-08
    %v898 = vmul.f32 %v578, 7.54979e-08
    %v899 = vmul.f32 %v579, 7.54979e-08
    %v900 = vmul.f32 %v580, 7.54979e-08
    %v901 = vmul.f32 %v581, 7.54979e-08
    %v902 = vmul.f32 %v582, 7.54979e-08
    %v903 = vmul.f32 %v583, 7.54979e-08
    %v904 = vmul.f32 %v584, 7.54979e-08
    %v905 = vmul.f32 %v585, 7.54979e-08
    %v906 = vmul.f32 %v586, 7.54979e-08
    %v907 = vmul.f32 %v587, 7.54979e-08
    %v908 = vmul.f32 %v588, 7.54979e-08
    %v909 = vmul.f32 %v589, 7.54979e-08
    %v910 = vmul.f32 %v590, 7.54979e-08
    %v911 = vmul.f32 %v591, 7.54979e-08
    %v912 = vmul.f32 %v592, 7.54979e-08
    %v913 = vmul.f32 %v593, 7.54979e-08
    %v914 = vmul.f32 %v594, 7.54979e-08
    %v915 = vmul.f32 %v595, 7.54979e-08
    %v916 = vmul.f32 %v596, 7.54979e-08
    %v917 = vmul.f32 %v597, 7.54979e-08
    %v918 = vmul.f32 %v598, 7.54979e-08
    %v919 = vmul.f32 %v599, 7.54979e-08
    %v920 = vmul.f32 %v600, 7.54979e-08
    %v921 = vmul.f32 %v601, 7.54979e-08
    %v922 = vmul.f32 %v602, 7.54979e-08
    %v923 = vmul.f32 %v603, 7.54979e-08
    %v924 = vmul.f32 %v604, 7.54979e-08
    %v925 = vmul.f32 %v605, 7.54979e-08
    %v926 = vmul.f32 %v606, 7.54979e-08
    %v927 = vmul.f32 %v607, 7.54979e-08
    %v928 = vmul.f32 %v608, 7.54979e-08
    %v929 = vmul.f32 %v609, 7.54979e-08
    %v930 = vmul.f32 %v610, 7.54979e-08
    %v931 = vmul.f32 %v611, 7.54979e-08
    %v932 = vmul.f32 %v612, 7.54979e-08
    %v933 = vmul.f32 %v613, 7.54979e-08
    %v934 = vmul.f32 %v614, 7.54979e-08
    %v935 = vmul.f32 %v615, 7.54979e-08
    %v936 = vmul.f32 %v616, 7.54979e-08
    %v937 = vmul.f32 %v617, 7.54979e-08
    %v938 = vsub.f32 %v810, %v874
    %v939 = vsub.f32 %v811, %v875
    %v940 = vsub.f32 %v812, %v876
    %v941 = vsub.f32 %v813, %v877
    %v942 = vsub.f32 %v814, %v878
    %v943 = vsub.f32 %v815, %v879
    %v944 = vsub.f32 %v816, %v880
    %v945 = vsub.f32 %v817, %v881
    %v946 = vsub.f32 %v818, %v882
    %v947 = vsub.f32 %v819, %v883
    %v948 = vsub.f32 %v820, %v884
    %v949 = vsub.f32 %v821, %v885
    %v950 = vsub.f32 %v822, %v886
    %v951 = vsub.f32 %v823, %v887
    %v952 = vsub.f32 %v824, %v888
    %v953 = vsub.f32 %v825, %v889
    %v954 = vsub.f32 %v826, %v890
    %v955 = vsub.f32 %v827, %v891
    %v956 = vsub.f32 %v828, %v892
    %v957 = vsub.f32 %v829, %v893
    %v958 = vsub.f32 %v830, %v894
    %v959 = vsub.f32 %v831, %v895
    %v960 = vsub.f32 %v832, %v896
    %v961 = vsub.f32 %v833, %v897
    %v962 = vsub.f32 %v834, %v898
    %v963 = vsub.f32 %v835, %v899
    %v964 = vsub.f32 %v836, %v900
    %v965 = vsub.f32 %v837, %v901
    %v966 = vsub.f32 %v838, %v902
    %v967 = vsub.f32 %v839, %v903
    %v968 = vsub.f32 %v840, %v904
    %v969 = vsub.f32 %v841, %v905
    %v970 = vsub.f32 %v842, %v906
    %v971 = vsub.f32 %v843, %v907
    %v972 = vsub.f32 %v844, %v908
    %v973 = vsub.f32 %v845, %v909
    %v974 = vsub.f32 %v846, %v910
    %v975 = vsub.f32 %v847, %v911
    %v976 = vsub.f32 %v848, %v912
    %v977 = vsub.f32 %v849, %v913
    %v978 = vsub.f32 %v850, %v914
    %v979 = vsub.f32 %v851, %v915
    %v980 = vsub.f32 %v852, %v916
    %v981 = vsub.f32 %v853, %v917
    %v982 = vsub.f32 %v854, %v918
    %v983 = vsub.f32 %v855, %v919
    %v984 = vsub.f32 %v856, %v920
    %v985 = vsub.f32 %v857, %v921
    %v986 = vsub.f32 %v858, %v922
    %v987 = vsub.f32 %v859, %v923
    %v988 = vsub.f32 %v860, %v924
    %v989 = vsub.f32 %v861, %v925
    %v990 = vsub.f32 %v862, %v926
    %v991 = vsub.f32 %v863, %v927
    %v992 = vsub.f32 %v864, %v928
    %v993 = vsub.f32 %v865, %v929
    %v994 = vsub.f32 %v866, %v930
    %v995 = vsub.f32 %v867, %v931
    %v996 = vsub.f32 %v868, %v932
    %v997 = vsub.f32 %v869, %v933
    %v998 = vsub.f32 %v870, %v934
    %v999 = vsub.f32 %v871, %v935
    %v1000 = vsub.f32 %v872, %v936
    %v1001 = vsub.f32 %v873, %v937
    %v1002 = vmul.f32 %v938, %v938
    %v1003 = vmul.f32 %v939, %v939
    %v1004 = vmul.f32 %v940, %v940
    %v1005 = vmul.f32 %v941, %v941
    %v1006 = vmul.f32 %v942, %v942
    %v1007 = vmul.f32 %v943, %v943
    %v1008 = vmul.f32 %v944, %v944
    %v1009 = vmul.f32 %v945, %v945
    %v1010 = vmul.f32 %v946, %v946
    %v1011 = vmul.f32 %v947, %v947
    %v1012 = vmul.f32 %v948, %v948
    %v1013 = vmul.f32 %v949, %v949
    %v1014 = vmul.f32 %v950, %v950
    %v1015 = vmul.f32 %v951, %v951
    %v1016 = vmul.f32 %v952, %v952
    %v1017 = vmul.f32 %v953, %v953
    %v1018 = vmul.f32 %v954, %v954
    %v1019 = vmul.f32 %v955, %v955
    %v1020 = vmul.f32 %v956, %v956
    %v1021 = vmul.f32 %v957, %v957
    %v1022 = vmul.f32 %v958, %v958
    %v1023 = vmul.f32 %v959, %v959
    %v1024 = vmul.f32 %v960, %v960
    %v1025 = vmul.f32 %v961, %v961
    %v1026 = vmul.f32 %v962, %v962
    %v1027 = vmul.f32 %v963, %v963
    %v1028 = vmul.f32 %v964, %v964
    %v1029 = vmul.f32 %v965, %v965
    %v1030 = vmul.f32 %v966, %v966
    %v1031 = vmul.f32 %v967, %v967
    %v1032 = vmul.f32 %v968, %v968
    %v1033 = vmul.f32 %v969, %v969
    %v1034 = vmul.f32 %v970, %v970
    %v1035 = vmul.f32 %v971, %v971
    %v1036 = vmul.f32 %v972, %v972
    %v1037 = vmul.f32 %v973, %v973
    %v1038 = vmul.f32 %v974, %v974
    %v1039 = vmul.f32 %v975, %v975
    %v1040 = vmul.f32 %v976, %v976
    %v1041 = vmul.f32 %v977, %v977
    %v1042 = vmul.f32 %v978, %v978
    %v1043 = vmul.f32 %v979, %v979
    %v1044 = vmul.f32 %v980, %v980
    %v1045 = vmul.f32 %v981, %v981
    %v1046 = vmul.f32 %v982, %v982
    %v1047 = vmul.f32 %v983, %v983
    %v1048 = vmul.f32 %v984, %v984
    %v1049 = vmul.f32 %v985, %v985
    %v1050 = vmul.f32 %v986, %v986
    %v1051 = vmul.f32 %v987, %v987
    %v1052 = vmul.f32 %v988, %v988
    %v1053 = vmul.f32 %v989, %v989
    %v1054 = vmul.f32 %v990, %v990
    %v1055 = vmul.f32 %v991, %v991
    %v1056 = vmul.f32 %v992, %v992
    %v1057 = vmul.f32 %v993, %v993
    %v1058 = vmul.f32 %v994, %v994
    %v1059 = vmul.f32 %v995, %v995
    %v1060 = vmul.f32 %v996, %v996
    %v1061 = vmul.f32 %v997, %v997
    %v1062 = vmul.f32 %v998, %v998
    %v1063 = vmul.f32 %v999, %v999
    %v1064 = vmul.f32 %v1000, %v1000
    %v1065 = vmul.f32 %v1001, %v1001
    %v1066 = vmul.f32 %v1002, -0.00019515296
    %v1067 = vmul.f32 %v1003, -0.00019515296
    %v1068 = vmul.f32 %v1004, -0.00019515296
    %v1069 = vmul.f32 %v1005, -0.00019515296
    %v1070 = vmul.f32 %v1006, -0.00019515296
    %v1071 = vmul.f32 %v1007, -0.00019515296
    %v1072 = vmul.f32 %v1008, -0.00019515296
    %v1073 = vmul.f32 %v1009, -0.00019515296
    %v1074 = vmul.f32 %v1010, -0.00019515296
    %v1075 = vmul.f32 %v1011, -0.00019515296
    %v1076 = vmul.f32 %v1012, -0.00019515296
    %v1077 = vmul.f32 %v1013, -0.00019515296
    %v1078 = vmul.f32 %v1014, -0.00019515296
    %v1079 = vmul.f32 %v1015, -0.00019515296
    %v1080 = vmul.f32 %v1016, -0.00019515296
    %v1081 = vmul.f32 %v1017, -0.00019515296
    %v1082 = vmul.f32 %v1018, -0.00019515296
    %v1083 = vmul.f32 %v1019, -0.00019515296
    %v1084 = vmul.f32 %v1020, -0.00019515296
    %v1085 = vmul.f32 %v1021, -0.00019515296
    %v1086 = vmul.f32 %v1022, -0.00019515296
    %v1087 = vmul.f32 %v1023, -0.00019515296
    %v1088 = vmul.f32 %v1024, -0.00019515296
    %v1089 = vmul.f32 %v1025, -0.00019515296
    %v1090 = vmul.f32 %v1026, -0.00019515296
    %v1091 = vmul.f32 %v1027, -0.00019515296
    %v1092 = vmul.f32 %v1028, -0.00019515296
    %v1093 = vmul.f32 %v1029, -0.00019515296
    %v1094 = vmul.f32 %v1030, -0.00019515296
    %v1095 = vmul.f32 %v1031, -0.00019515296
    %v1096 = vmul.f32 %v1032, -0.00019515296
    %v1097 = vmul.f32 %v1033, -0.00019515296
    %v1098 = vmul.f32 %v1034, -0.00019515296
    %v1099 = vmul.f32 %v1035, -0.00019515296
    %v1100 = vmul.f32 %v1036, -0.00019515296
    %v1101 = vmul.f32 %v1037, -0.00019515296
    %v1102 = vmul.f32 %v1038, -0.00019515296
    %v1103 = vmul.f32 %v1039, -0.00019515296
    %v1104 = vmul.f32 %v1040, -0.00019515296
    %v1105 = vmul.f32 %v1041, -0.00019515296
    %v1106 = vmul.f32 %v1042, -0.00019515296
    %v1107 = vmul.f32 %v1043, -0.00019515296
    %v1108 = vmul.f32 %v1044, -0.00019515296
    %v1109 = vmul.f32 %v1045, -0.00019515296
    %v1110 = vmul.f32 %v1046, -0.00019515296
    %v1111 = vmul.f32 %v1047, -0.00019515296
    %v1112 = vmul.f32 %v1048, -0.00019515296
    %v1113 = vmul.f32 %v1049, -0.00019515296
    %v1114 = vmul.f32 %v1050, -0.00019515296
    %v1115 = vmul.f32 %v1051, -0.00019515296
    %v1116 = vmul.f32 %v1052, -0.00019515296
    %v1117 = vmul.f32 %v1053, -0.00019515296
    %v1118 = vmul.f32 %v1054, -0.00019515296
    %v1119 = vmul.f32 %v1055, -0.00019515296
    %v1120 = vmul.f32 %v1056, -0.00019515296
    %v1121 = vmul.f32 %v1057, -0.00019515296
    %v1122 = vmul.f32 %v1058, -0.00019515296
    %v1123 = vmul.f32 %v1059, -0.00019515296
    %v1124 = vmul.f32 %v1060, -0.00019515296
    %v1125 = vmul.f32 %v1061, -0.00019515296
    %v1126 = vmul.f32 %v1062, -0.00019515296
    %v1127 = vmul.f32 %v1063, -0.00019515296
    %v1128 = vmul.f32 %v1064, -0.00019515296
    %v1129 = vmul.f32 %v1065, -0.00019515296
    %v1130 = vadd.f32 %v1066, 0.008332161
    %v1131 = vadd.f32 %v1067, 0.008332161
    %v1132 = vadd.f32 %v1068, 0.008332161
    %v1133 = vadd.f32 %v1069, 0.008332161
    %v1134 = vadd.f32 %v1070, 0.008332161
    %v1135 = vadd.f32 %v1071, 0.008332161
    %v1136 = vadd.f32 %v1072, 0.008332161
    %v1137 = vadd.f32 %v1073, 0.008332161
    %v1138 = vadd.f32 %v1074, 0.008332161
    %v1139 = vadd.f32 %v1075, 0.008332161
    %v1140 = vadd.f32 %v1076, 0.008332161
    %v1141 = vadd.f32 %v1077, 0.008332161
    %v1142 = vadd.f32 %v1078, 0.008332161
    %v1143 = vadd.f32 %v1079, 0.008332161
    %v1144 = vadd.f32 %v1080, 0.008332161
    %v1145 = vadd.f32 %v1081, 0.008332161
    %v1146 = vadd.f32 %v1082, 0.008332161
    %v1147 = vadd.f32 %v1083, 0.008332161
    %v1148 = vadd.f32 %v1084, 0.008332161
    %v1149 = vadd.f32 %v1085, 0.008332161
    %v1150 = vadd.f32 %v1086, 0.008332161
    %v1151 = vadd.f32 %v1087, 0.008332161
    %v1152 = vadd.f32 %v1088, 0.008332161
    %v1153 = vadd.f32 %v1089, 0.008332161
    %v1154 = vadd.f32 %v1090, 0.008332161
    %v1155 = vadd.f32 %v1091, 0.008332161
    %v1156 = vadd.f32 %v1092, 0.008332161
    %v1157 = vadd.f32 %v1093, 0.008332161
    %v1158 = vadd.f32 %v1094, 0.008332161
    %v1159 = vadd.f32 %v1095, 0.008332161
    %v1160 = vadd.f32 %v1096, 0.008332161
    %v1161 = vadd.f32 %v1097, 0.008332161
    %v1162 = vadd.f32 %v1098, 0.008332161
    %v1163 = vadd.f32 %v1099, 0.008332161
    %v1164 = vadd.f32 %v1100, 0.008332161
    %v1165 = vadd.f32 %v1101, 0.008332161
    %v1166 = vadd.f32 %v1102, 0.008332161
    %v1167 = vadd.f32 %v1103, 0.008332161
    %v1168 = vadd.f32 %v1104, 0.008332161
    %v1169 = vadd.f32 %v1105, 0.008332161
    %v1170 = vadd.f32 %v1106, 0.008332161
    %v1171 = vadd.f32 %v1107, 0.008332161
    %v1172 = vadd.f32 %v1108, 0.008332161
    %v1173 = vadd.f32 %v1109, 0.008332161
    %v1174 = vadd.f32 %v1110, 0.008332161
    %v1175 = vadd.f32 %v1111, 0.008332161
    %v1176 = vadd.f32 %v1112, 0.008332161
    %v1177 = vadd.f32 %v1113, 0.008332161
    %v1178 = vadd.f32 %v1114, 0.008332161
    %v1179 = vadd.f32 %v1115, 0.008332161
    %v1180 = vadd.f32 %v1116, 0.008332161
    %v1181 = vadd.f32 %v1117, 0.008332161
    %v1182 = vadd.f32 %v1118, 0.008332161
    %v1183 = vadd.f32 %v1119, 0.008332161
    %v1184 = vadd.f32 %v1120, 0.008332161
    %v1185 = vadd.f32 %v1121, 0.008332161
    %v1186 = vadd.f32 %v1122, 0.008332161
    %v1187 = vadd.f32 %v1123, 0.008332161
    %v1188 = vadd.f32 %v1124, 0.008332161
    %v1189 = vadd.f32 %v1125, 0.008332161
    %v1190 = vadd.f32 %v1126, 0.008332161
    %v1191 = vadd.f32 %v1127, 0.008332161
    %v1192 = vadd.f32 %v1128, 0.008332161
    %v1193 = vadd.f32 %v1129, 0.008332161
    %v1194 = vmul.f32 %v1130, %v1002
    %v1195 = vmul.f32 %v1131, %v1003
    %v1196 = vmul.f32 %v1132, %v1004
    %v1197 = vmul.f32 %v1133, %v1005
    %v1198 = vmul.f32 %v1134, %v1006
    %v1199 = vmul.f32 %v1135, %v1007
    %v1200 = vmul.f32 %v1136, %v1008
    %v1201 = vmul.f32 %v1137, %v1009
    %v1202 = vmul.f32 %v1138, %v1010
    %v1203 = vmul.f32 %v1139, %v1011
    %v1204 = vmul.f32 %v1140, %v1012
    %v1205 = vmul.f32 %v1141, %v1013
    %v1206 = vmul.f32 %v1142, %v1014
    %v1207 = vmul.f32 %v1143, %v1015
    %v1208 = vmul.f32 %v1144, %v1016
    %v1209 = vmul.f32 %v1145, %v1017
    %v1210 = vmul.f32 %v1146, %v1018
    %v1211 = vmul.f32 %v1147, %v1019
    %v1212 = vmul.f32 %v1148, %v1020
    %v1213 = vmul.f32 %v1149, %v1021
    %v1214 = vmul.f32 %v1150, %v1022
    %v1215 = vmul.f32 %v1151, %v1023
    %v1216 = vmul.f32 %v1152, %v1024
    %v1217 = vmul.f32 %v1153, %v1025
    %v1218 = vmul.f32 %v1154, %v1026
    %v1219 = vmul.f32 %v1155, %v1027
    %v1220 = vmul.f32 %v1156, %v1028
    %v1221 = vmul.f32 %v1157, %v1029
    %v1222 = vmul.f32 %v1158, %v1030
    %v1223 = vmul.f32 %v1159, %v1031
    %v1224 = vmul.f32 %v1160, %v1032
    %v1225 = vmul.f32 %v1161, %v1033
    %v1226 = vmul.f32 %v1162, %v1034
    %v1227 = vmul.f32 %v1163, %v1035
    %v1228 = vmul.f32 %v1164, %v1036
    %v1229 = vmul.f32 %v1165, %v1037
    %v1230 = vmul.f32 %v1166, %v1038
    %v1231 = vmul.f32 %v1167, %v1039
    %v1232 = vmul.f32 %v1168, %v1040
    %v1233 = vmul.f32 %v1169, %v1041
    %v1234 = vmul.f32 %v1170, %v1042
    %v1235 = vmul.f32 %v1171, %v1043
    %v1236 = vmul.f32 %v1172, %v1044
    %v1237 = vmul.f32 %v1173, %v1045
    %v1238 = vmul.f32 %v1174, %v1046
    %v1239 = vmul.f32 %v1175, %v1047
    %v1240 = vmul.f32 %v1176, %v1048
    %v1241 = vmul.f32 %v1177, %v1049
    %v1242 = vmul.f32 %v1178, %v1050
    %v1243 = vmul.f32 %v1179, %v1051
    %v1244 = vmul.f32 %v1180, %v1052
    %v1245 = vmul.f32 %v1181, %v1053
    %v1246 = vmul.f32 %v1182, %v1054
    %v1247 = vmul.f32 %v1183, %v1055
    %v1248 = vmul.f32 %v1184, %v1056
    %v1249 = vmul.f32 %v1185, %v1057
    %v1250 = vmul.f32 %v1186, %v1058
    %v1251 = vmul.f32 %v1187, %v1059
    %v1252 = vmul.f32 %v1188, %v1060
    %v1253 = vmul.f32 %v1189, %v1061
    %v1254 = vmul.f32 %v1190, %v1062
    %v1255 = vmul.f32 %v1191, %v1063
    %v1256 = vmul.f32 %v1192, %v1064
    %v1257 = vmul.f32 %v1193, %v1065
    %v1258 = vadd.f32 %v1194, -0.16666655
    %v1259 = vadd.f32 %v1195, -0.16666655
    %v1260 = vadd.f32 %v1196, -0.16666655
    %v1261 = vadd.f32 %v1197, -0.16666655
    %v1262 = vadd.f32 %v1198, -0.16666655
    %v1263 = vadd.f32 %v1199, -0.16666655
    %v1264 = vadd.f32 %v1200, -0.16666655
    %v1265 = vadd.f32 %v1201, -0.16666655
    %v1266 = vadd.f32 %v1202, -0.16666655
    %v1267 = vadd.f32 %v1203, -0.16666655
    %v1268 = vadd.f32 %v1204, -0.16666655
    %v1269 = vadd.f32 %v1205, -0.16666655
    %v1270 = vadd.f32 %v1206, -0.16666655
    %v1271 = vadd.f32 %v1207, -0.16666655
    %v1272 = vadd.f32 %v1208, -0.16666655
    %v1273 = vadd.f32 %v1209, -0.16666655
    %v1274 = vadd.f32 %v1210, -0.16666655
    %v1275 = vadd.f32 %v1211, -0.16666655
    %v1276 = vadd.f32 %v1212, -0.16666655
    %v1277 = vadd.f32 %v1213, -0.16666655
    %v1278 = vadd.f32 %v1214, -0.16666655
    %v1279 = vadd.f32 %v1215, -0.16666655
    %v1280 = vadd.f32 %v1216, -0.16666655
    %v1281 = vadd.f32 %v1217, -0.16666655
    %v1282 = vadd.f32 %v1218, -0.16666655
    %v1283 = vadd.f32 %v1219, -0.16666655
    %v1284 = vadd.f32 %v1220, -0.16666655
    %v1285 = vadd.f32 %v1221, -0.16666655
    %v1286 = vadd.f32 %v1222, -0.16666655
    %v1287 = vadd.f32 %v1223, -0.16666655
    %v1288 = vadd.f32 %v1224, -0.16666655
    %v1289 = vadd.f32 %v1225, -0.16666655
    %v1290 = vadd.f32 %v1226, -0.16666655
    %v1291 = vadd.f32 %v1227, -0.16666655
    %v1292 = vadd.f32 %v1228, -0.16666655
    %v1293 = vadd.f32 %v1229, -0.16666655
    %v1294 = vadd.f32 %v1230, -0.16666655
    %v1295 = vadd.f32 %v1231, -0.16666655
    %v1296 = vadd.f32 %v1232, -0.16666655
    %v1297 = vadd.f32 %v1233, -0.16666655
    %v1298 = vadd.f32 %v1234, -0.16666655
    %v1299 = vadd.f32 %v1235, -0.16666655
    %v1300 = vadd.f32 %v1236, -0.16666655
    %v1301 = vadd.f32 %v1237, -0.16666655
    %v1302 = vadd.f32 %v1238, -0.16666655
    %v1303 = vadd.f32 %v1239, -0.16666655
    %v1304 = vadd.f32 %v1240, -0.16666655
    %v1305 = vadd.f32 %v1241, -0.16666655
    %v1306 = vadd.f32 %v1242, -0.16666655
    %v1307 = vadd.f32 %v1243, -0.16666655
    %v1308 = vadd.f32 %v1244, -0.16666655
    %v1309 = vadd.f32 %v1245, -0.16666655
    %v1310 = vadd.f32 %v1246, -0.16666655
    %v1311 = vadd.f32 %v1247, -0.16666655
    %v1312 = vadd.f32 %v1248, -0.16666655
    %v1313 = vadd.f32 %v1249, -0.16666655
    %v1314 = vadd.f32 %v1250, -0.16666655
    %v1315 = vadd.f32 %v1251, -0.16666655
    %v1316 = vadd.f32 %v1252, -0.16666655
    %v1317 = vadd.f32 %v1253, -0.16666655
    %v1318 = vadd.f32 %v1254, -0.16666655
    %v1319 = vadd.f32 %v1255, -0.16666655
    %v1320 = vadd.f32 %v1256, -0.16666655
    %v1321 = vadd.f32 %v1257, -0.16666655
    %v1322 = vmul.f32 %v1258, %v1002
    %v1323 = vmul.f32 %v1259, %v1003
    %v1324 = vmul.f32 %v1260, %v1004
    %v1325 = vmul.f32 %v1261, %v1005
    %v1326 = vmul.f32 %v1262, %v1006
    %v1327 = vmul.f32 %v1263, %v1007
    %v1328 = vmul.f32 %v1264, %v1008
    %v1329 = vmul.f32 %v1265, %v1009
    %v1330 = vmul.f32 %v1266, %v1010
    %v1331 = vmul.f32 %v1267, %v1011
    %v1332 = vmul.f32 %v1268, %v1012
    %v1333 = vmul.f32 %v1269, %v1013
    %v1334 = vmul.f32 %v1270, %v1014
    %v1335 = vmul.f32 %v1271, %v1015
    %v1336 = vmul.f32 %v1272, %v1016
    %v1337 = vmul.f32 %v1273, %v1017
    %v1338 = vmul.f32 %v1274, %v1018
    %v1339 = vmul.f32 %v1275, %v1019
    %v1340 = vmul.f32 %v1276, %v1020
    %v1341 = vmul.f32 %v1277, %v1021
    %v1342 = vmul.f32 %v1278, %v1022
    %v1343 = vmul.f32 %v1279, %v1023
    %v1344 = vmul.f32 %v1280, %v1024
    %v1345 = vmul.f32 %v1281, %v1025
    %v1346 = vmul.f32 %v1282, %v1026
    %v1347 = vmul.f32 %v1283, %v1027
    %v1348 = vmul.f32 %v1284, %v1028
    %v1349 = vmul.f32 %v1285, %v1029
    %v1350 = vmul.f32 %v1286, %v1030
    %v1351 = vmul.f32 %v1287, %v1031
    %v1352 = vmul.f32 %v1288, %v1032
    %v1353 = vmul.f32 %v1289, %v1033
    %v1354 = vmul.f32 %v1290, %v1034
    %v1355 = vmul.f32 %v1291, %v1035
    %v1356 = vmul.f32 %v1292, %v1036
    %v1357 = vmul.f32 %v1293, %v1037
    %v1358 = vmul.f32 %v1294, %v1038
    %v1359 = vmul.f32 %v1295, %v1039
    %v1360 = vmul.f32 %v1296, %v1040
    %v1361 = vmul.f32 %v1297, %v1041
    %v1362 = vmul.f32 %v1298, %v1042
    %v1363 = vmul.f32 %v1299, %v1043
    %v1364 = vmul.f32 %v1300, %v1044
    %v1365 = vmul.f32 %v1301, %v1045
    %v1366 = vmul.f32 %v1302, %v1046
    %v1367 = vmul.f32 %v1303, %v1047
    %v1368 = vmul.f32 %v1304, %v1048
    %v1369 = vmul.f32 %v1305, %v1049
    %v1370 = vmul.f32 %v1306, %v1050
    %v1371 = vmul.f32 %v1307, %v1051
    %v1372 = vmul.f32 %v1308, %v1052
    %v1373 = vmul.f32 %v1309, %v1053
    %v1374 = vmul.f32 %v1310, %v1054
    %v1375 = vmul.f32 %v1311, %v1055
    %v1376 = vmul.f32 %v1312, %v1056
    %v1377 = vmul.f32 %v1313, %v1057
    %v1378 = vmul.f32 %v1314, %v1058
    %v1379 = vmul.f32 %v1315, %v1059
    %v1380 = vmul.f32 %v1316, %v1060
    %v1381 = vmul.f32 %v1317, %v1061
    %v1382 = vmul.f32 %v1318, %v1062
    %v1383 = vmul.f32 %v1319, %v1063
    %v1384 = vmul.f32 %v1320, %v1064
    %v1385 = vmul.f32 %v1321, %v1065
    %v1386 = vmul.f32 %v1322, %v938
    %v1387 = vmul.f32 %v1323, %v939
    %v1388 = vmul.f32 %v1324, %v940
    %v1389 = vmul.f32 %v1325, %v941
    %v1390 = vmul.f32 %v1326, %v942
    %v1391 = vmul.f32 %v1327, %v943
    %v1392 = vmul.f32 %v1328, %v944
    %v1393 = vmul.f32 %v1329, %v945
    %v1394 = vmul.f32 %v1330, %v946
    %v1395 = vmul.f32 %v1331, %v947
    %v1396 = vmul.f32 %v1332, %v948
    %v1397 = vmul.f32 %v1333, %v949
    %v1398 = vmul.f32 %v1334, %v950
    %v1399 = vmul.f32 %v1335, %v951
    %v1400 = vmul.f32 %v1336, %v952
    %v1401 = vmul.f32 %v1337, %v953
    %v1402 = vmul.f32 %v1338, %v954
    %v1403 = vmul.f32 %v1339, %v955
    %v1404 = vmul.f32 %v1340, %v956
    %v1405 = vmul.f32 %v1341, %v957
    %v1406 = vmul.f32 %v1342, %v958
    %v1407 = vmul.f32 %v1343, %v959
    %v1408 = vmul.f32 %v1344, %v960
    %v1409 = vmul.f32 %v1345, %v961
    %v1410 = vmul.f32 %v1346, %v962
    %v1411 = vmul.f32 %v1347, %v963
    %v1412 = vmul.f32 %v1348, %v964
    %v1413 = vmul.f32 %v1349, %v965
    %v1414 = vmul.f32 %v1350, %v966
    %v1415 = vmul.f32 %v1351, %v967
    %v1416 = vmul.f32 %v1352, %v968
    %v1417 = vmul.f32 %v1353, %v969
    %v1418 = vmul.f32 %v1354, %v970
    %v1419 = vmul.f32 %v1355, %v971
    %v1420 = vmul.f32 %v1356, %v972
    %v1421 = vmul.f32 %v1357, %v973
    %v1422 = vmul.f32 %v1358, %v974
    %v1423 = vmul.f32 %v1359, %v975
    %v1424 = vmul.f32 %v1360, %v976
    %v1425 = vmul.f32 %v1361, %v977
    %v1426 = vmul.f32 %v1362, %v978
    %v1427 = vmul.f32 %v1363, %v979
    %v1428 = vmul.f32 %v1364, %v980
    %v1429 = vmul.f32 %v1365, %v981
    %v1430 = vmul.f32 %v1366, %v982
    %v1431 = vmul.f32 %v1367, %v983
    %v1432 = vmul.f32 %v1368, %v984
    %v1433 = vmul.f32 %v1369, %v985
    %v1434 = vmul.f32 %v1370, %v986
    %v1435 = vmul.f32 %v1371, %v987
    %v1436 = vmul.f32 %v1372, %v988
    %v1437 = vmul.f32 %v1373, %v989
    %v1438 = vmul.f32 %v1374, %v990
    %v1439 = vmul.f32 %v1375, %v991
    %v1440 = vmul.f32 %v1376, %v992
    %v1441 = vmul.f32 %v1377, %v993
    %v1442 = vmul.f32 %v1378, %v994
    %v1443 = vmul.f32 %v1379, %v995
    %v1444 = vmul.f32 %v1380, %v996
    %v1445 = vmul.f32 %v1381, %v997
    %v1446 = vmul.f32 %v1382, %v998
    %v1447 = vmul.f32 %v1383, %v999
    %v1448 = vmul.f32 %v1384, %v1000
    %v1449 = vmul.f32 %v1385, %v1001
    %v1450 = vadd.f32 %v1386, %v938
    %v1451 = vadd.f32 %v1387, %v939
    %v1452 = vadd.f32 %v1388, %v940
    %v1453 = vadd.f32 %v1389, %v941
    %v1454 = vadd.f32 %v1390, %v942
    %v1455 = vadd.f32 %v1391, %v943
    %v1456 = vadd.f32 %v1392, %v944
    %v1457 = vadd.f32 %v1393, %v945
    %v1458 = vadd.f32 %v1394, %v946
    %v1459 = vadd.f32 %v1395, %v947
    %v1460 = vadd.f32 %v1396, %v948
    %v1461 = vadd.f32 %v1397, %v949
    %v1462 = vadd.f32 %v1398, %v950
    %v1463 = vadd.f32 %v1399, %v951
    %v1464 = vadd.f32 %v1400, %v952
    %v1465 = vadd.f32 %v1401, %v953
    %v1466 = vadd.f32 %v1402, %v954
    %v1467 = vadd.f32 %v1403, %v955
    %v1468 = vadd.f32 %v1404, %v956
    %v1469 = vadd.f32 %v1405, %v957
    %v1470 = vadd.f32 %v1406, %v958
    %v1471 = vadd.f32 %v1407, %v959
    %v1472 = vadd.f32 %v1408, %v960
    %v1473 = vadd.f32 %v1409, %v961
    %v1474 = vadd.f32 %v1410, %v962
    %v1475 = vadd.f32 %v1411, %v963
    %v1476 = vadd.f32 %v1412, %v964
    %v1477 = vadd.f32 %v1413, %v965
    %v1478 = vadd.f32 %v1414, %v966
    %v1479 = vadd.f32 %v1415, %v967
    %v1480 = vadd.f32 %v1416, %v968
    %v1481 = vadd.f32 %v1417, %v969
    %v1482 = vadd.f32 %v1418, %v970
    %v1483 = vadd.f32 %v1419, %v971
    %v1484 = vadd.f32 %v1420, %v972
    %v1485 = vadd.f32 %v1421, %v973
    %v1486 = vadd.f32 %v1422, %v974
    %v1487 = vadd.f32 %v1423, %v975
    %v1488 = vadd.f32 %v1424, %v976
    %v1489 = vadd.f32 %v1425, %v977
    %v1490 = vadd.f32 %v1426, %v978
    %v1491 = vadd.f32 %v1427, %v979
    %v1492 = vadd.f32 %v1428, %v980
    %v1493 = vadd.f32 %v1429, %v981
    %v1494 = vadd.f32 %v1430, %v982
    %v1495 = vadd.f32 %v1431, %v983
    %v1496 = vadd.f32 %v1432, %v984
    %v1497 = vadd.f32 %v1433, %v985
    %v1498 = vadd.f32 %v1434, %v986
    %v1499 = vadd.f32 %v1435, %v987
    %v1500 = vadd.f32 %v1436, %v988
    %v1501 = vadd.f32 %v1437, %v989
    %v1502 = vadd.f32 %v1438, %v990
    %v1503 = vadd.f32 %v1439, %v991
    %v1504 = vadd.f32 %v1440, %v992
    %v1505 = vadd.f32 %v1441, %v993
    %v1506 = vadd.f32 %v1442, %v994
    %v1507 = vadd.f32 %v1443, %v995
    %v1508 = vadd.f32 %v1444, %v996
    %v1509 = vadd.f32 %v1445, %v997
    %v1510 = vadd.f32 %v1446, %v998
    %v1511 = vadd.f32 %v1447, %v999
    %v1512 = vadd.f32 %v1448, %v1000
    %v1513 = vadd.f32 %v1449, %v1001
    %v1514 = vmul.f32 %v1002, 2.4433157e-05
    %v1515 = vmul.f32 %v1003, 2.4433157e-05
    %v1516 = vmul.f32 %v1004, 2.4433157e-05
    %v1517 = vmul.f32 %v1005, 2.4433157e-05
    %v1518 = vmul.f32 %v1006, 2.4433157e-05
    %v1519 = vmul.f32 %v1007, 2.4433157e-05
    %v1520 = vmul.f32 %v1008, 2.4433157e-05
    %v1521 = vmul.f32 %v1009, 2.4433157e-05
    %v1522 = vmul.f32 %v1010, 2.4433157e-05
    %v1523 = vmul.f32 %v1011, 2.4433157e-05
    %v1524 = vmul.f32 %v1012, 2.4433157e-05
    %v1525 = vmul.f32 %v1013, 2.4433157e-05
    %v1526 = vmul.f32 %v1014, 2.4433157e-05
    %v1527 = vmul.f32 %v1015, 2.4433157e-05
    %v1528 = vmul.f32 %v1016, 2.4433157e-05
    %v1529 = vmul.f32 %v1017, 2.4433157e-05
    %v1530 = vmul.f32 %v1018, 2.4433157e-05
    %v1531 = vmul.f32 %v1019, 2.4433157e-05
    %v1532 = vmul.f32 %v1020, 2.4433157e-05
    %v1533 = vmul.f32 %v1021, 2.4433157e-05
    %v1534 = vmul.f32 %v1022, 2.4433157e-05
    %v1535 = vmul.f32 %v1023, 2.4433157e-05
    %v1536 = vmul.f32 %v1024, 2.4433157e-05
    %v1537 = vmul.f32 %v1025, 2.4433157e-05
    %v1538 = vmul.f32 %v1026, 2.4433157e-05
    %v1539 = vmul.f32 %v1027, 2.4433157e-05
    %v1540 = vmul.f32 %v1028, 2.4433157e-05
    %v1541 = vmul.f32 %v1029, 2.4433157e-05
    %v1542 = vmul.f32 %v1030, 2.4433157e-05
    %v1543 = vmul.f32 %v1031, 2.4433157e-05
    %v1544 = vmul.f32 %v1032, 2.4433157e-05
    %v1545 = vmul.f32 %v1033, 2.4433157e-05
    %v1546 = vmul.f32 %v1034, 2.4433157e-05
    %v1547 = vmul.f32 %v1035, 2.4433157e-05
    %v1548 = vmul.f32 %v1036, 2.4433157e-05
    %v1549 = vmul.f32 %v1037, 2.4433157e-05
    %v1550 = vmul.f32 %v1038, 2.4433157e-05
    %v1551 = vmul.f32 %v1039, 2.4433157e-05
    %v1552 = vmul.f32 %v1040, 2.4433157e-05
    %v1553 = vmul.f32 %v1041, 2.4433157e-05
    %v1554 = vmul.f32 %v1042, 2.4433157e-05
    %v1555 = vmul.f32 %v1043, 2.4433157e-05
    %v1556 = vmul.f32 %v1044, 2.4433157e-05
    %v1557 = vmul.f32 %v1045, 2.4433157e-05
    %v1558 = vmul.f32 %v1046, 2.4433157e-05
    %v1559 = vmul.f32 %v1047, 2.4433157e-05
    %v1560 = vmul.f32 %v1048, 2.4433157e-05
    %v1561 = vmul.f32 %v1049, 2.4433157e-05
    %v1562 = vmul.f32 %v1050, 2.4433157e-05
    %v1563 = vmul.f32 %v1051, 2.4433157e-05
    %v1564 = vmul.f32 %v1052, 2.4433157e-05
    %v1565 = vmul.f32 %v1053, 2.4433157e-05
    %v1566 = vmul.f32 %v1054, 2.4433157e-05
    %v1567 = vmul.f32 %v1055, 2.4433157e-05
    %v1568 = vmul.f32 %v1056, 2.4433157e-05
    %v1569 = vmul.f32 %v1057, 2.4433157e-05
    %v1570 = vmul.f32 %v1058, 2.4433157e-05
    %v1571 = vmul.f32 %v1059, 2.4433157e-05
    %v1572 = vmul.f32 %v1060, 2.4433157e-05
    %v1573 = vmul.f32 %v1061, 2.4433157e-05
    %v1574 = vmul.f32 %v1062, 2.4433157e-05
    %v1575 = vmul.f32 %v1063, 2.4433157e-05
    %v1576 = vmul.f32 %v1064, 2.4433157e-05
    %v1577 = vmul.f32 %v1065, 2.4433157e-05
    %v1578 = vadd.f32 %v1514, -0.0013887316
    %v1579 = vadd.f32 %v1515, -0.0013887316
    %v1580 = vadd.f32 %v1516, -0.0013887316
    %v1581 = vadd.f32 %v1517, -0.0013887316
    %v1582 = vadd.f32 %v1518, -0.0013887316
    %v1583 = vadd.f32 %v1519, -0.0013887316
    %v1584 = vadd.f32 %v1520, -0.0013887316
    %v1585 = vadd.f32 %v1521, -0.0013887316
    %v1586 = vadd.f32 %v1522, -0.0013887316
    %v1587 = vadd.f32 %v1523, -0.0013887316
    %v1588 = vadd.f32 %v1524, -0.0013887316
    %v1589 = vadd.f32 %v1525, -0.0013887316
    %v1590 = vadd.f32 %v1526, -0.0013887316
    %v1591 = vadd.f32 %v1527, -0.0013887316
    %v1592 = vadd.f32 %v1528, -0.0013887316
    %v1593 = vadd.f32 %v1529, -0.0013887316
    %v1594 = vadd.f32 %v1530, -0.0013887316
    %v1595 = vadd.f32 %v1531, -0.0013887316
    %v1596 = vadd.f32 %v1532, -0.0013887316
    %v1597 = vadd.f32 %v1533, -0.0013887316
    %v1598 = vadd.f32 %v1534, -0.0013887316
    %v1599 = vadd.f32 %v1535, -0.0013887316
    %v1600 = vadd.f32 %v1536, -0.0013887316
    %v1601 = vadd.f32 %v1537, -0.0013887316
    %v1602 = vadd.f32 %v1538, -0.0013887316
    %v1603 = vadd.f32 %v1539, -0.0013887316
    %v1604 = vadd.f32 %v1540, -0.0013887316
    %v1605 = vadd.f32 %v1541, -0.0013887316
    %v1606 = vadd.f32 %v1542, -0.0013887316
    %v1607 = vadd.f32 %v1543, -0.0013887316
    %v1608 = vadd.f32 %v1544, -0.0013887316
    %v1609 = vadd.f32 %v1545, -0.0013887316
    %v1610 = vadd.f32 %v1546, -0.0013887316
    %v1611 = vadd.f32 %v1547, -0.0013887316
    %v1612 = vadd.f32 %v1548, -0.0013887316
    %v1613 = vadd.f32 %v1549, -0.0013887316
    %v1614 = vadd.f32 %v1550, -0.0013887316
    %v1615 = vadd.f32 %v1551, -0.0013887316
    %v1616 = vadd.f32 %v1552, -0.0013887316
    %v1617 = vadd.f32 %v1553, -0.0013887316
    %v1618 = vadd.f32 %v1554, -0.0013887316
    %v1619 = vadd.f32 %v1555, -0.0013887316
    %v1620 = vadd.f32 %v1556, -0.0013887316
    %v1621 = vadd.f32 %v1557, -0.0013887316
    %v1622 = vadd.f32 %v1558, -0.0013887316
    %v1623 = vadd.f32 %v1559, -0.0013887316
    %v1624 = vadd.f32 %v1560, -0.0013887316
    %v1625 = vadd.f32 %v1561, -0.0013887316
    %v1626 = vadd.f32 %v1562, -0.0013887316
    %v1627 = vadd.f32 %v1563, -0.0013887316
    %v1628 = vadd.f32 %v1564, -0.0013887316
    %v1629 = vadd.f32 %v1565, -0.0013887316
    %v1630 = vadd.f32 %v1566, -0.0013887316
    %v1631 = vadd.f32 %v1567, -0.0013887316
    %v1632 = vadd.f32 %v1568, -0.0013887316
    %v1633 = vadd.f32 %v1569, -0.0013887316
    %v1634 = vadd.f32 %v1570, -0.0013887316
    %v1635 = vadd.f32 %v1571, -0.0013887316
    %v1636 = vadd.f32 %v1572, -0.0013887316
    %v1637 = vadd.f32 %v1573, -0.0013887316
    %v1638 = vadd.f32 %v1574, -0.0013887316
    %v1639 = vadd.f32 %v1575, -0.0013887316
    %v1640 = vadd.f32 %v1576, -0.0013887316
    %v1641 = vadd.f32 %v1577, -0.0013887316
    %v1642 = vmul.f32 %v1578, %v1002
    %v1643 = vmul.f32 %v1579, %v1003
    %v1644 = vmul.f32 %v1580, %v1004
    %v1645 = vmul.f32 %v1581, %v1005
    %v1646 = vmul.f32 %v1582, %v1006
    %v1647 = vmul.f32 %v1583, %v1007
    %v1648 = vmul.f32 %v1584, %v1008
    %v1649 = vmul.f32 %v1585, %v1009
    %v1650 = vmul.f32 %v1586, %v1010
    %v1651 = vmul.f32 %v1587, %v1011
    %v1652 = vmul.f32 %v1588, %v1012
    %v1653 = vmul.f32 %v1589, %v1013
    %v1654 = vmul.f32 %v1590, %v1014
    %v1655 = vmul.f32 %v1591, %v1015
    %v1656 = vmul.f32 %v1592, %v1016
    %v1657 = vmul.f32 %v1593, %v1017
    %v1658 = vmul.f32 %v1594, %v1018
    %v1659 = vmul.f32 %v1595, %v1019
    %v1660 = vmul.f32 %v1596, %v1020
    %v1661 = vmul.f32 %v1597, %v1021
    %v1662 = vmul.f32 %v1598, %v1022
    %v1663 = vmul.f32 %v1599, %v1023
    %v1664 = vmul.f32 %v1600, %v1024
    %v1665 = vmul.f32 %v1601, %v1025
    %v1666 = vmul.f32 %v1602, %v1026
    %v1667 = vmul.f32 %v1603, %v1027
    %v1668 = vmul.f32 %v1604, %v1028
    %v1669 = vmul.f32 %v1605, %v1029
    %v1670 = vmul.f32 %v1606, %v1030
    %v1671 = vmul.f32 %v1607, %v1031
    %v1672 = vmul.f32 %v1608, %v1032
    %v1673 = vmul.f32 %v1609, %v1033
    %v1674 = vmul.f32 %v1610, %v1034
    %v1675 = vmul.f32 %v1611, %v1035
    %v1676 = vmul.f32 %v1612, %v1036
    %v1677 = vmul.f32 %v1613, %v1037
    %v1678 = vmul.f32 %v1614, %v1038
    %v1679 = vmul.f32 %v1615, %v1039
    %v1680 = vmul.f32 %v1616, %v1040
    %v1681 = vmul.f32 %v1617, %v1041
    %v1682 = vmul.f32 %v1618, %v1042
    %v1683 = vmul.f32 %v1619, %v1043
    %v1684 = vmul.f32 %v1620, %v1044
    %v1685 = vmul.f32 %v1621, %v1045
    %v1686 = vmul.f32 %v1622, %v1046
    %v1687 = vmul.f32 %v1623, %v1047
    %v1688 = vmul.f32 %v1624, %v1048
    %v1689 = vmul.f32 %v1625, %v1049
    %v1690 = vmul.f32 %v1626, %v1050
    %v1691 = vmul.f32 %v1627, %v1051
    %v1692 = vmul.f32 %v1628, %v1052
    %v1693 = vmul.f32 %v1629, %v1053
    %v1694 = vmul.f32 %v1630, %v1054
    %v1695 = vmul.f32 %v1631, %v1055
    %v1696 = vmul.f32 %v1632, %v1056
    %v1697 = vmul.f32 %v1633, %v1057
    %v1698 = vmul.f32 %v1634, %v1058
    %v1699 = vmul.f32 %v1635, %v1059
    %v1700 = vmul.f32 %v1636, %v1060
    %v1701 = vmul.f32 %v1637, %v1061
    %v1702 = vmul.f32 %v1638, %v1062
    %v1703 = vmul.f32 %v1639, %v1063
    %v1704 = vmul.f32 %v1640, %v1064
    %v1705 = vmul.f32 %v1641, %v1065
    %v1706 = vadd.f32 %v1642, 0.041666646
    %v1707 = vadd.f32 %v1643, 0.041666646
    %v1708 = vadd.f32 %v1644, 0.041666646
    %v1709 = vadd.f32 %v1645, 0.041666646
    %v1710 = vadd.f32 %v1646, 0.041666646
    %v1711 = vadd.f32 %v1647, 0.041666646
    %v1712 = vadd.f32 %v1648, 0.041666646
    %v1713 = vadd.f32 %v1649, 0.041666646
    %v1714 = vadd.f32 %v1650, 0.041666646
    %v1715 = vadd.f32 %v1651, 0.041666646
    %v1716 = vadd.f32 %v1652, 0.041666646
    %v1717 = vadd.f32 %v1653, 0.041666646
    %v1718 = vadd.f32 %v1654, 0.041666646
    %v1719 = vadd.f32 %v1655, 0.041666646
    %v1720 = vadd.f32 %v1656, 0.041666646
    %v1721 = vadd.f32 %v1657, 0.041666646
    %v1722 = vadd.f32 %v1658, 0.041666646
    %v1723 = vadd.f32 %v1659, 0.041666646
    %v1724 = vadd.f32 %v1660, 0.041666646
    %v1725 = vadd.f32 %v1661, 0.041666646
    %v1726 = vadd.f32 %v1662, 0.041666646
    %v1727 = vadd.f32 %v1663, 0.041666646
    %v1728 = vadd.f32 %v1664, 0.041666646
    %v1729 = vadd.f32 %v1665, 0.041666646
    %v1730 = vadd.f32 %v1666, 0.041666646
    %v1731 = vadd.f32 %v1667, 0.041666646
    %v1732 = vadd.f32 %v1668, 0.041666646
    %v1733 = vadd.f32 %v1669, 0.041666646
    %v1734 = vadd.f32 %v1670, 0.041666646
    %v1735 = vadd.f32 %v1671, 0.041666646
    %v1736 = vadd.f32 %v1672, 0.041666646
    %v1737 = vadd.f32 %v1673, 0.041666646
    %v1738 = vadd.f32 %v1674, 0.041666646
    %v1739 = vadd.f32 %v1675, 0.041666646
    %v1740 = vadd.f32 %v1676, 0.041666646
    %v1741 = vadd.f32 %v1677, 0.041666646
    %v1742 = vadd.f32 %v1678, 0.041666646
    %v1743 = vadd.f32 %v1679, 0.041666646
    %v1744 = vadd.f32 %v1680, 0.041666646
    %v1745 = vadd.f32 %v1681, 0.041666646
    %v1746 = vadd.f32 %v1682, 0.041666646
    %v1747 = vadd.f32 %v1683, 0.041666646
    %v1748 = vadd.f32 %v1684, 0.041666646
    %v1749 = vadd.f32 %v1685, 0.041666646
    %v1750 = vadd.f32 %v1686, 0.041666646
    %v1751 = vadd.f32 %v1687, 0.041666646
    %v1752 = vadd.f32 %v1688, 0.041666646
    %v1753 = vadd.f32 %v1689, 0.041666646
    %v1754 = vadd.f32 %v1690, 0.041666646
    %v1755 = vadd.f32 %v1691, 0.041666646
    %v1756 = vadd.f32 %v1692, 0.041666646
    %v1757 = vadd.f32 %v1693, 0.041666646
    %v1758 = vadd.f32 %v1694, 0.041666646
    %v1759 = vadd.f32 %v1695, 0.041666646
    %v1760 = vadd.f32 %v1696, 0.041666646
    %v1761 = vadd.f32 %v1697, 0.041666646
    %v1762 = vadd.f32 %v1698, 0.041666646
    %v1763 = vadd.f32 %v1699, 0.041666646
    %v1764 = vadd.f32 %v1700, 0.041666646
    %v1765 = vadd.f32 %v1701, 0.041666646
    %v1766 = vadd.f32 %v1702, 0.041666646
    %v1767 = vadd.f32 %v1703, 0.041666646
    %v1768 = vadd.f32 %v1704, 0.041666646
    %v1769 = vadd.f32 %v1705, 0.041666646
    %v1770 = vmul.f32 %v1706, %v1002
    %v1771 = vmul.f32 %v1707, %v1003
    %v1772 = vmul.f32 %v1708, %v1004
    %v1773 = vmul.f32 %v1709, %v1005
    %v1774 = vmul.f32 %v1710, %v1006
    %v1775 = vmul.f32 %v1711, %v1007
    %v1776 = vmul.f32 %v1712, %v1008
    %v1777 = vmul.f32 %v1713, %v1009
    %v1778 = vmul.f32 %v1714, %v1010
    %v1779 = vmul.f32 %v1715, %v1011
    %v1780 = vmul.f32 %v1716, %v1012
    %v1781 = vmul.f32 %v1717, %v1013
    %v1782 = vmul.f32 %v1718, %v1014
    %v1783 = vmul.f32 %v1719, %v1015
    %v1784 = vmul.f32 %v1720, %v1016
    %v1785 = vmul.f32 %v1721, %v1017
    %v1786 = vmul.f32 %v1722, %v1018
    %v1787 = vmul.f32 %v1723, %v1019
    %v1788 = vmul.f32 %v1724, %v1020
    %v1789 = vmul.f32 %v1725, %v1021
    %v1790 = vmul.f32 %v1726, %v1022
    %v1791 = vmul.f32 %v1727, %v1023
    %v1792 = vmul.f32 %v1728, %v1024
    %v1793 = vmul.f32 %v1729, %v1025
    %v1794 = vmul.f32 %v1730, %v1026
    %v1795 = vmul.f32 %v1731, %v1027
    %v1796 = vmul.f32 %v1732, %v1028
    %v1797 = vmul.f32 %v1733, %v1029
    %v1798 = vmul.f32 %v1734, %v1030
    %v1799 = vmul.f32 %v1735, %v1031
    %v1800 = vmul.f32 %v1736, %v1032
    %v1801 = vmul.f32 %v1737, %v1033
    %v1802 = vmul.f32 %v1738, %v1034
    %v1803 = vmul.f32 %v1739, %v1035
    %v1804 = vmul.f32 %v1740, %v1036
    %v1805 = vmul.f32 %v1741, %v1037
    %v1806 = vmul.f32 %v1742, %v1038
    %v1807 = vmul.f32 %v1743, %v1039
    %v1808 = vmul.f32 %v1744, %v1040
    %v1809 = vmul.f32 %v1745, %v1041
    %v1810 = vmul.f32 %v1746, %v1042
    %v1811 = vmul.f32 %v1747, %v1043
    %v1812 = vmul.f32 %v1748, %v1044
    %v1813 = vmul.f32 %v1749, %v1045
    %v1814 = vmul.f32 %v1750, %v1046
    %v1815 = vmul.f32 %v1751, %v1047
    %v1816 = vmul.f32 %v1752, %v1048
    %v1817 = vmul.f32 %v1753, %v1049
    %v1818 = vmul.f32 %v1754, %v1050
    %v1819 = vmul.f32 %v1755, %v1051
    %v1820 = vmul.f32 %v1756, %v1052
    %v1821 = vmul.f32 %v1757, %v1053
    %v1822 = vmul.f32 %v1758, %v1054
    %v1823 = vmul.f32 %v1759, %v1055
    %v1824 = vmul.f32 %v1760, %v1056
    %v1825 = vmul.f32 %v1761, %v1057
    %v1826 = vmul.f32 %v1762, %v1058
    %v1827 = vmul.f32 %v1763, %v1059
    %v1828 = vmul.f32 %v1764, %v1060
    %v1829 = vmul.f32 %v1765, %v1061
    %v1830 = vmul.f32 %v1766, %v1062
    %v1831 = vmul.f32 %v1767, %v1063
    %v1832 = vmul.f32 %v1768, %v1064
    %v1833 = vmul.f32 %v1769, %v1065
    %v1834 = vmul.f32 %v1770, %v1002
    %v1835 = vmul.f32 %v1771, %v1003
    %v1836 = vmul.f32 %v1772, %v1004
    %v1837 = vmul.f32 %v1773, %v1005
    %v1838 = vmul.f32 %v1774, %v1006
    %v1839 = vmul.f32 %v1775, %v1007
    %v1840 = vmul.f32 %v1776, %v1008
    %v1841 = vmul.f32 %v1777, %v1009
    %v1842 = vmul.f32 %v1778, %v1010
    %v1843 = vmul.f32 %v1779, %v1011
    %v1844 = vmul.f32 %v1780, %v1012
    %v1845 = vmul.f32 %v1781, %v1013
    %v1846 = vmul.f32 %v1782, %v1014
    %v1847 = vmul.f32 %v1783, %v1015
    %v1848 = vmul.f32 %v1784, %v1016
    %v1849 = vmul.f32 %v1785, %v1017
    %v1850 = vmul.f32 %v1786, %v1018
    %v1851 = vmul.f32 %v1787, %v1019
    %v1852 = vmul.f32 %v1788, %v1020
    %v1853 = vmul.f32 %v1789, %v1021
    %v1854 = vmul.f32 %v1790, %v1022
    %v1855 = vmul.f32 %v1791, %v1023
    %v1856 = vmul.f32 %v1792, %v1024
    %v1857 = vmul.f32 %v1793, %v1025
    %v1858 = vmul.f32 %v1794, %v1026
    %v1859 = vmul.f32 %v1795, %v1027
    %v1860 = vmul.f32 %v1796, %v1028
    %v1861 = vmul.f32 %v1797, %v1029
    %v1862 = vmul.f32 %v1798, %v1030
    %v1863 = vmul.f32 %v1799, %v1031
    %v1864 = vmul.f32 %v1800, %v1032
    %v1865 = vmul.f32 %v1801, %v1033
    %v1866 = vmul.f32 %v1802, %v1034
    %v1867 = vmul.f32 %v1803, %v1035
    %v1868 = vmul.f32 %v1804, %v1036
    %v1869 = vmul.f32 %v1805, %v1037
    %v1870 = vmul.f32 %v1806, %v1038
    %v1871 = vmul.f32 %v1807, %v1039
    %v1872 = vmul.f32 %v1808, %v1040
    %v1873 = vmul.f32 %v1809, %v1041
    %v1874 = vmul.f32 %v1810, %v1042
    %v1875 = vmul.f32 %v1811, %v1043
    %v1876 = vmul.f32 %v1812, %v1044
    %v1877 = vmul.f32 %v1813, %v1045
    %v1878 = vmul.f32 %v1814, %v1046
    %v1879 = vmul.f32 %v1815, %v1047
    %v1880 = vmul.f32 %v1816, %v1048
    %v1881 = vmul.f32 %v1817, %v1049
    %v1882 = vmul.f32 %v1818, %v1050
    %v1883 = vmul.f32 %v1819, %v1051
    %v1884 = vmul.f32 %v1820, %v1052
    %v1885 = vmul.f32 %v1821, %v1053
    %v1886 = vmul.f32 %v1822, %v1054
    %v1887 = vmul.f32 %v1823, %v1055
    %v1888 = vmul.f32 %v1824, %v1056
    %v1889 = vmul.f32 %v1825, %v1057
    %v1890 = vmul.f32 %v1826, %v1058
    %v1891 = vmul.f32 %v1827, %v1059
    %v1892 = vmul.f32 %v1828, %v1060
    %v1893 = vmul.f32 %v1829, %v1061
    %v1894 = vmul.f32 %v1830, %v1062
    %v1895 = vmul.f32 %v1831, %v1063
    %v1896 = vmul.f32 %v1832, %v1064
    %v1897 = vmul.f32 %v1833, %v1065
    %v1898 = vmul.f32 %v1002, 0.5
    %v1899 = vmul.f32 %v1003, 0.5
    %v1900 = vmul.f32 %v1004, 0.5
    %v1901 = vmul.f32 %v1005, 0.5
    %v1902 = vmul.f32 %v1006, 0.5
    %v1903 = vmul.f32 %v1007, 0.5
    %v1904 = vmul.f32 %v1008, 0.5
    %v1905 = vmul.f32 %v1009, 0.5
    %v1906 = vmul.f32 %v1010, 0.5
    %v1907 = vmul.f32 %v1011, 0.5
    %v1908 = vmul.f32 %v1012, 0.5
    %v1909 = vmul.f32 %v1013, 0.5
    %v1910 = vmul.f32 %v1014, 0.5
    %v1911 = vmul.f32 %v1015, 0.5
    %v1912 = vmul.f32 %v1016, 0.5
    %v1913 = vmul.f32 %v1017, 0.5
    %v1914 = vmul.f32 %v1018, 0.5
    %v1915 = vmul.f32 %v1019, 0.5
    %v1916 = vmul.f32 %v1020, 0.5
    %v1917 = vmul.f32 %v1021, 0.5
    %v1918 = vmul.f32 %v1022, 0.5
    %v1919 = vmul.f32 %v1023, 0.5
    %v1920 = vmul.f32 %v1024, 0.5
    %v1921 = vmul.f32 %v1025, 0.5
    %v1922 = vmul.f32 %v1026, 0.5
    %v1923 = vmul.f32 %v1027, 0.5
    %v1924 = vmul.f32 %v1028, 0.5
    %v1925 = vmul.f32 %v1029, 0.5
    %v1926 = vmul.f32 %v1030, 0.5
    %v1927 = vmul.f32 %v1031, 0.5
    %v1928 = vmul.f32 %v1032, 0.5
    %v1929 = vmul.f32 %v1033, 0.5
    %v1930 = vmul.f32 %v1034, 0.5
    %v1931 = vmul.f32 %v1035, 0.5
    %v1932 = vmul.f32 %v1036, 0.5
    %v1933 = vmul.f32 %v1037, 0.5
    %v1934 = vmul.f32 %v1038, 0.5
    %v1935 = vmul.f32 %v1039, 0.5
    %v1936 = vmul.f32 %v1040, 0.5
    %v1937 = vmul.f32 %v1041, 0.5
    %v1938 = vmul.f32 %v1042, 0.5
    %v1939 = vmul.f32 %v1043, 0.5
    %v1940 = vmul.f32 %v1044, 0.5
    %v1941 = vmul.f32 %v1045, 0.5
    %v1942 = vmul.f32 %v1046, 0.5
    %v1943 = vmul.f32 %v1047, 0.5
    %v1944 = vmul.f32 %v1048, 0.5
    %v1945 = vmul.f32 %v1049, 0.5
    %v1946 = vmul.f32 %v1050, 0.5
    %v1947 = vmul.f32 %v1051, 0.5
    %v1948 = vmul.f32 %v1052, 0.5
    %v1949 = vmul.f32 %v1053, 0.5
    %v1950 = vmul.f32 %v1054, 0.5
    %v1951 = vmul.f32 %v1055, 0.5
    %v1952 = vmul.f32 %v1056, 0.5
    %v1953 = vmul.f32 %v1057, 0.5
    %v1954 = vmul.f32 %v1058, 0.5
    %v1955 = vmul.f32 %v1059, 0.5
    %v1956 = vmul.f32 %v1060, 0.5
    %v1957 = vmul.f32 %v1061, 0.5
    %v1958 = vmul.f32 %v1062, 0.5
    %v1959 = vmul.f32 %v1063, 0.5
    %v1960 = vmul.f32 %v1064, 0.5
    %v1961 = vmul.f32 %v1065, 0.5
    %v1962 = vsub.f32 %v1834, %v1898
    %v1963 = vsub.f32 %v1835, %v1899
    %v1964 = vsub.f32 %v1836, %v1900
    %v1965 = vsub.f32 %v1837, %v1901
    %v1966 = vsub.f32 %v1838, %v1902
    %v1967 = vsub.f32 %v1839, %v1903
    %v1968 = vsub.f32 %v1840, %v1904
    %v1969 = vsub.f32 %v1841, %v1905
    %v1970 = vsub.f32 %v1842, %v1906
    %v1971 = vsub.f32 %v1843, %v1907
    %v1972 = vsub.f32 %v1844, %v1908
    %v1973 = vsub.f32 %v1845, %v1909
    %v1974 = vsub.f32 %v1846, %v1910
    %v1975 = vsub.f32 %v1847, %v1911
    %v1976 = vsub.f32 %v1848, %v1912
    %v1977 = vsub.f32 %v1849, %v1913
    %v1978 = vsub.f32 %v1850, %v1914
    %v1979 = vsub.f32 %v1851, %v1915
    %v1980 = vsub.f32 %v1852, %v1916
    %v1981 = vsub.f32 %v1853, %v1917
    %v1982 = vsub.f32 %v1854, %v1918
    %v1983 = vsub.f32 %v1855, %v1919
    %v1984 = vsub.f32 %v1856, %v1920
    %v1985 = vsub.f32 %v1857, %v1921
    %v1986 = vsub.f32 %v1858, %v1922
    %v1987 = vsub.f32 %v1859, %v1923
    %v1988 = vsub.f32 %v1860, %v1924
    %v1989 = vsub.f32 %v1861, %v1925
    %v1990 = vsub.f32 %v1862, %v1926
    %v1991 = vsub.f32 %v1863, %v1927
    %v1992 = vsub.f32 %v1864, %v1928
    %v1993 = vsub.f32 %v1865, %v1929
    %v1994 = vsub.f32 %v1866, %v1930
    %v1995 = vsub.f32 %v1867, %v1931
    %v1996 = vsub.f32 %v1868, %v1932
    %v1997 = vsub.f32 %v1869, %v1933
    %v1998 = vsub.f32 %v1870, %v1934
    %v1999 = vsub.f32 %v1871, %v1935
    %v2000 = vsub.f32 %v1872, %v1936
    %v2001 = vsub.f32 %v1873, %v1937
    %v2002 = vsub.f32 %v1874, %v1938
    %v2003 = vsub.f32 %v1875, %v1939
    %v2004 = vsub.f32 %v1876, %v1940
    %v2005 = vsub.f32 %v1877, %v1941
    %v2006 = vsub.f32 %v1878, %v1942
    %v2007 = vsub.f32 %v1879, %v1943
    %v2008 = vsub.f32 %v1880, %v1944
    %v2009 = vsub.f32 %v1881, %v1945
    %v2010 = vsub.f32 %v1882, %v1946
    %v2011 = vsub.f32 %v1883, %v1947
    %v2012 = vsub.f32 %v1884, %v1948
    %v2013 = vsub.f32 %v1885, %v1949
    %v2014 = vsub.f32 %v1886, %v1950
    %v2015 = vsub.f32 %v1887, %v1951
    %v2016 = vsub.f32 %v1888, %v1952
    %v2017 = vsub.f32 %v1889, %v1953
    %v2018 = vsub.f32 %v1890, %v1954
    %v2019 = vsub.f32 %v1891, %v1955
    %v2020 = vsub.f32 %v1892, %v1956
    %v2021 = vsub.f32 %v1893, %v1957
    %v2022 = vsub.f32 %v1894, %v1958
    %v2023 = vsub.f32 %v1895, %v1959
    %v2024 = vsub.f32 %v1896, %v1960
    %v2025 = vsub.f32 %v1897, %v1961
    %v2026 = vadd.f32 %v1962, 1.0
    %v2027 = vadd.f32 %v1963, 1.0
    %v2028 = vadd.f32 %v1964, 1.0
    %v2029 = vadd.f32 %v1965, 1.0
    %v2030 = vadd.f32 %v1966, 1.0
    %v2031 = vadd.f32 %v1967, 1.0
    %v2032 = vadd.f32 %v1968, 1.0
    %v2033 = vadd.f32 %v1969, 1.0
    %v2034 = vadd.f32 %v1970, 1.0
    %v2035 = vadd.f32 %v1971, 1.0
    %v2036 = vadd.f32 %v1972, 1.0
    %v2037 = vadd.f32 %v1973, 1.0
    %v2038 = vadd.f32 %v1974, 1.0
    %v2039 = vadd.f32 %v1975, 1.0
    %v2040 = vadd.f32 %v1976, 1.0
    %v2041 = vadd.f32 %v1977, 1.0
    %v2042 = vadd.f32 %v1978, 1.0
    %v2043 = vadd.f32 %v1979, 1.0
    %v2044 = vadd.f32 %v1980, 1.0
    %v2045 = vadd.f32 %v1981, 1.0
    %v2046 = vadd.f32 %v1982, 1.0
    %v2047 = vadd.f32 %v1983, 1.0
    %v2048 = vadd.f32 %v1984, 1.0
    %v2049 = vadd.f32 %v1985, 1.0
    %v2050 = vadd.f32 %v1986, 1.0
    %v2051 = vadd.f32 %v1987, 1.0
    %v2052 = vadd.f32 %v1988, 1.0
    %v2053 = vadd.f32 %v1989, 1.0
    %v2054 = vadd.f32 %v1990, 1.0
    %v2055 = vadd.f32 %v1991, 1.0
    %v2056 = vadd.f32 %v1992, 1.0
    %v2057 = vadd.f32 %v1993, 1.0
    %v2058 = vadd.f32 %v1994, 1.0
    %v2059 = vadd.f32 %v1995, 1.0
    %v2060 = vadd.f32 %v1996, 1.0
    %v2061 = vadd.f32 %v1997, 1.0
    %v2062 = vadd.f32 %v1998, 1.0
    %v2063 = vadd.f32 %v1999, 1.0
    %v2064 = vadd.f32 %v2000, 1.0
    %v2065 = vadd.f32 %v2001, 1.0
    %v2066 = vadd.f32 %v2002, 1.0
    %v2067 = vadd.f32 %v2003, 1.0
    %v2068 = vadd.f32 %v2004, 1.0
    %v2069 = vadd.f32 %v2005, 1.0
    %v2070 = vadd.f32 %v2006, 1.0
    %v2071 = vadd.f32 %v2007, 1.0
    %v2072 = vadd.f32 %v2008, 1.0
    %v2073 = vadd.f32 %v2009, 1.0
    %v2074 = vadd.f32 %v2010, 1.0
    %v2075 = vadd.f32 %v2011, 1.0
    %v2076 = vadd.f32 %v2012, 1.0
    %v2077 = vadd.f32 %v2013, 1.0
    %v2078 = vadd.f32 %v2014, 1.0
    %v2079 = vadd.f32 %v2015, 1.0
    %v2080 = vadd.f32 %v2016, 1.0
    %v2081 = vadd.f32 %v2017, 1.0
    %v2082 = vadd.f32 %v2018, 1.0
    %v2083 = vadd.f32 %v2019, 1.0
    %v2084 = vadd.f32 %v2020, 1.0
    %v2085 = vadd.f32 %v2021, 1.0
    %v2086 = vadd.f32 %v2022, 1.0
    %v2087 = vadd.f32 %v2023, 1.0
    %v2088 = vadd.f32 %v2024, 1.0
    %v2089 = vadd.f32 %v2025, 1.0
    %v2090 = vcvt.f32.s32.to.zero.pseudo %v554
    %v2091 = vcvt.f32.s32.to.zero.pseudo %v555
    %v2092 = vcvt.f32.s32.to.zero.pseudo %v556
    %v2093 = vcvt.f32.s32.to.zero.pseudo %v557
    %v2094 = vcvt.f32.s32.to.zero.pseudo %v558
    %v2095 = vcvt.f32.s32.to.zero.pseudo %v559
    %v2096 = vcvt.f32.s32.to.zero.pseudo %v560
    %v2097 = vcvt.f32.s32.to.zero.pseudo %v561
    %v2098 = vcvt.f32.s32.to.zero.pseudo %v562
    %v2099 = vcvt.f32.s32.to.zero.pseudo %v563
    %v2100 = vcvt.f32.s32.to.zero.pseudo %v564
    %v2101 = vcvt.f32.s32.to.zero.pseudo %v565
    %v2102 = vcvt.f32.s32.to.zero.pseudo %v566
    %v2103 = vcvt.f32.s32.to.zero.pseudo %v567
    %v2104 = vcvt.f32.s32.to.zero.pseudo %v568
    %v2105 = vcvt.f32.s32.to.zero.pseudo %v569
    %v2106 = vcvt.f32.s32.to.zero.pseudo %v570
    %v2107 = vcvt.f32.s32.to.zero.pseudo %v571
    %v2108 = vcvt.f32.s32.to.zero.pseudo %v572
    %v2109 = vcvt.f32.s32.to.zero.pseudo %v573
    %v2110 = vcvt.f32.s32.to.zero.pseudo %v574
    %v2111 = vcvt.f32.s32.to.zero.pseudo %v575
    %v2112 = vcvt.f32.s32.to.zero.pseudo %v576
    %v2113 = vcvt.f32.s32.to.zero.pseudo %v577
    %v2114 = vcvt.f32.s32.to.zero.pseudo %v578
    %v2115 = vcvt.f32.s32.to.zero.pseudo %v579
    %v2116 = vcvt.f32.s32.to.zero.pseudo %v580
    %v2117 = vcvt.f32.s32.to.zero.pseudo %v581
    %v2118 = vcvt.f32.s32.to.zero.pseudo %v582
    %v2119 = vcvt.f32.s32.to.zero.pseudo %v583
    %v2120 = vcvt.f32.s32.to.zero.pseudo %v584
    %v2121 = vcvt.f32.s32.to.zero.pseudo %v585
    %v2122 = vcvt.f32.s32.to.zero.pseudo %v586
    %v2123 = vcvt.f32.s32.to.zero.pseudo %v587
    %v2124 = vcvt.f32.s32.to.zero.pseudo %v588
    %v2125 = vcvt.f32.s32.to.zero.pseudo %v589
    %v2126 = vcvt.f32.s32.to.zero.pseudo %v590
    %v2127 = vcvt.f32.s32.to.zero.pseudo %v591
    %v2128 = vcvt.f32.s32.to.zero.pseudo %v592
    %v2129 = vcvt.f32.s32.to.zero.pseudo %v593
    %v2130 = vcvt.f32.s32.to.zero.pseudo %v594
    %v2131 = vcvt.f32.s32.to.zero.pseudo %v595
    %v2132 = vcvt.f32.s32.to.zero.pseudo %v596
    %v2133 = vcvt.f32.s32.to.zero.pseudo %v597
    %v2134 = vcvt.f32.s32.to.zero.pseudo %v598
    %v2135 = vcvt.f32.s32.to.zero.pseudo %v599
    %v2136 = vcvt.f32.s32.to.zero.pseudo %v600
    %v2137 = vcvt.f32.s32.to.zero.pseudo %v601
    %v2138 = vcvt.f32.s32.to.zero.pseudo %v602
    %v2139 = vcvt.f32.s32.to.zero.pseudo %v603
    %v2140 = vcvt.f32.s32.to.zero.pseudo %v604
    %v2141 = vcvt.f32.s32.to.zero.pseudo %v605
    %v2142 = vcvt.f32.s32.to.zero.pseudo %v606
    %v2143 = vcvt.f32.s32.to.zero.pseudo %v607
    %v2144 = vcvt.f32.s32.to.zero.pseudo %v608
    %v2145 = vcvt.f32.s32.to.zero.pseudo %v609
    %v2146 = vcvt.f32.s32.to.zero.pseudo %v610
    %v2147 = vcvt.f32.s32.to.zero.pseudo %v611
    %v2148 = vcvt.f32.s32.to.zero.pseudo %v612
    %v2149 = vcvt.f32.s32.to.zero.pseudo %v613
    %v2150 = vcvt.f32.s32.to.zero.pseudo %v614
    %v2151 = vcvt.f32.s32.to.zero.pseudo %v615
    %v2152 = vcvt.f32.s32.to.zero.pseudo %v616
    %v2153 = vcvt.f32.s32.to.zero.pseudo %v617
    %v2154 = vand.u32 %v2090, 3
    %v2155 = vand.u32 %v2091, 3
    %v2156 = vand.u32 %v2092, 3
    %v2157 = vand.u32 %v2093, 3
    %v2158 = vand.u32 %v2094, 3
    %v2159 = vand.u32 %v2095, 3
    %v2160 = vand.u32 %v2096, 3
    %v2161 = vand.u32 %v2097, 3
    %v2162 = vand.u32 %v2098, 3
    %v2163 = vand.u32 %v2099, 3
    %v2164 = vand.u32 %v2100, 3
    %v2165 = vand.u32 %v2101, 3
    %v2166 = vand.u32 %v2102, 3
    %v2167 = vand.u32 %v2103, 3
    %v2168 = vand.u32 %v2104, 3
    %v2169 = vand.u32 %v2105, 3
    %v2170 = vand.u32 %v2106, 3
    %v2171 = vand.u32 %v2107, 3
    %v2172 = vand.u32 %v2108, 3
    %v2173 = vand.u32 %v2109, 3
    %v2174 = vand.u32 %v2110, 3
    %v2175 = vand.u32 %v2111, 3
    %v2176 = vand.u32 %v2112, 3
    %v2177 = vand.u32 %v2113, 3
    %v2178 = vand.u32 %v2114, 3
    %v2179 = vand.u32 %v2115, 3
    %v2180 = vand.u32 %v2116, 3
    %v2181 = vand.u32 %v2117, 3
    %v2182 = vand.u32 %v2118, 3
    %v2183 = vand.u32 %v2119, 3
    %v2184 = vand.u32 %v2120, 3
    %v2185 = vand.u32 %v2121, 3
    %v2186 = vand.u32 %v2122, 3
    %v2187 = vand.u32 %v2123, 3
    %v2188 = vand.u32 %v2124, 3
    %v2189 = vand.u32 %v2125, 3
    %v2190 = vand.u32 %v2126, 3
    %v2191 = vand.u32 %v2127, 3
    %v2192 = vand.u32 %v2128, 3
    %v2193 = vand.u32 %v2129, 3
    %v2194 = vand.u32 %v2130, 3
    %v2195 = vand.u32 %v2131, 3
    %v2196 = vand.u32 %v2132, 3
    %v2197 = vand.u32 %v2133, 3
    %v2198 = vand.u32 %v2134, 3
    %v2199 = vand.u32 %v2135, 3
    %v2200 = vand.u32 %v2136, 3
    %v2201 = vand.u32 %v2137, 3
    %v2202 = vand.u32 %v2138, 3
    %v2203 = vand.u32 %v2139, 3
    %v2204 = vand.u32 %v2140, 3
    %v2205 = vand.u32 %v2141, 3
    %v2206 = vand.u32 %v2142, 3
    %v2207 = vand.u32 %v2143, 3
    %v2208 = vand.u32 %v2144, 3
    %v2209 = vand.u32 %v2145, 3
    %v2210 = vand.u32 %v2146, 3
    %v2211 = vand.u32 %v2147, 3
    %v2212 = vand.u32 %v2148, 3
    %v2213 = vand.u32 %v2149, 3
    %v2214 = vand.u32 %v2150, 3
    %v2215 = vand.u32 %v2151, 3
    %v2216 = vand.u32 %v2152, 3
    %v2217 = vand.u32 %v2153, 3
    %v2218 = vand.u32 %v2154, 1
    %v2219 = vand.u32 %v2155, 1
    %v2220 = vand.u32 %v2156, 1
    %v2221 = vand.u32 %v2157, 1
    %v2222 = vand.u32 %v2158, 1
    %v2223 = vand.u32 %v2159, 1
    %v2224 = vand.u32 %v2160, 1
    %v2225 = vand.u32 %v2161, 1
    %v2226 = vand.u32 %v2162, 1
    %v2227 = vand.u32 %v2163, 1
    %v2228 = vand.u32 %v2164, 1
    %v2229 = vand.u32 %v2165, 1
    %v2230 = vand.u32 %v2166, 1
    %v2231 = vand.u32 %v2167, 1
    %v2232 = vand.u32 %v2168, 1
    %v2233 = vand.u32 %v2169, 1
    %v2234 = vand.u32 %v2170, 1
    %v2235 = vand.u32 %v2171, 1
    %v2236 = vand.u32 %v2172, 1
    %v2237 = vand.u32 %v2173, 1
    %v2238 = vand.u32 %v2174, 1
    %v2239 = vand.u32 %v2175, 1
    %v2240 = vand.u32 %v2176, 1
    %v2241 = vand.u32 %v2177, 1
    %v2242 = vand.u32 %v2178, 1
    %v2243 = vand.u32 %v2179, 1
    %v2244 = vand.u32 %v2180, 1
    %v2245 = vand.u32 %v2181, 1
    %v2246 = vand.u32 %v2182, 1
    %v2247 = vand.u32 %v2183, 1
    %v2248 = vand.u32 %v2184, 1
    %v2249 = vand.u32 %v2185, 1
    %v2250 = vand.u32 %v2186, 1
    %v2251 = vand.u32 %v2187, 1
    %v2252 = vand.u32 %v2188, 1
    %v2253 = vand.u32 %v2189, 1
    %v2254 = vand.u32 %v2190, 1
    %v2255 = vand.u32 %v2191, 1
    %v2256 = vand.u32 %v2192, 1
    %v2257 = vand.u32 %v2193, 1
    %v2258 = vand.u32 %v2194, 1
    %v2259 = vand.u32 %v2195, 1
    %v2260 = vand.u32 %v2196, 1
    %v2261 = vand.u32 %v2197, 1
    %v2262 = vand.u32 %v2198, 1
    %v2263 = vand.u32 %v2199, 1
    %v2264 = vand.u32 %v2200, 1
    %v2265 = vand.u32 %v2201, 1
    %v2266 = vand.u32 %v2202, 1
    %v2267 = vand.u32 %v2203, 1
    %v2268 = vand.u32 %v2204, 1
    %v2269 = vand.u32 %v2205, 1
    %v2270 = vand.u32 %v2206, 1
    %v2271 = vand.u32 %v2207, 1
    %v2272 = vand.u32 %v2208, 1
    %v2273 = vand.u32 %v2209, 1
    %v2274 = vand.u32 %v2210, 1
    %v2275 = vand.u32 %v2211, 1
    %v2276 = vand.u32 %v2212, 1
    %v2277 = vand.u32 %v2213, 1
    %v2278 = vand.u32 %v2214, 1
    %v2279 = vand.u32 %v2215, 1
    %v2280 = vand.u32 %v2216, 1
    %v2281 = vand.u32 %v2217, 1
    %vm2282 = vcmp.eq.s32.totalorder %v2218, 1
    %vm2283 = vcmp.eq.s32.totalorder %v2219, 1
    %vm2284 = vcmp.eq.s32.totalorder %v2220, 1
    %vm2285 = vcmp.eq.s32.totalorder %v2221, 1
    %vm2286 = vcmp.eq.s32.totalorder %v2222, 1
    %vm2287 = vcmp.eq.s32.totalorder %v2223, 1
    %vm2288 = vcmp.eq.s32.totalorder %v2224, 1
    %vm2289 = vcmp.eq.s32.totalorder %v2225, 1
    %vm2290 = vcmp.eq.s32.totalorder %v2226, 1
    %vm2291 = vcmp.eq.s32.totalorder %v2227, 1
    %vm2292 = vcmp.eq.s32.totalorder %v2228, 1
    %vm2293 = vcmp.eq.s32.totalorder %v2229, 1
    %vm2294 = vcmp.eq.s32.totalorder %v2230, 1
    %vm2295 = vcmp.eq.s32.totalorder %v2231, 1
    %vm2296 = vcmp.eq.s32.totalorder %v2232, 1
    %vm2297 = vcmp.eq.s32.totalorder %v2233, 1
    %vm2298 = vcmp.eq.s32.totalorder %v2234, 1
    %vm2299 = vcmp.eq.s32.totalorder %v2235, 1
    %vm2300 = vcmp.eq.s32.totalorder %v2236, 1
    %vm2301 = vcmp.eq.s32.totalorder %v2237, 1
    %vm2302 = vcmp.eq.s32.totalorder %v2238, 1
    %vm2303 = vcmp.eq.s32.totalorder %v2239, 1
    %vm2304 = vcmp.eq.s32.totalorder %v2240, 1
    %vm2305 = vcmp.eq.s32.totalorder %v2241, 1
    %vm2306 = vcmp.eq.s32.totalorder %v2242, 1
    %vm2307 = vcmp.eq.s32.totalorder %v2243, 1
    %vm2308 = vcmp.eq.s32.totalorder %v2244, 1
    %vm2309 = vcmp.eq.s32.totalorder %v2245, 1
    %vm2310 = vcmp.eq.s32.totalorder %v2246, 1
    %vm2311 = vcmp.eq.s32.totalorder %v2247, 1
    %vm2312 = vcmp.eq.s32.totalorder %v2248, 1
    %vm2313 = vcmp.eq.s32.totalorder %v2249, 1
    %vm2314 = vcmp.eq.s32.totalorder %v2250, 1
    %vm2315 = vcmp.eq.s32.totalorder %v2251, 1
    %vm2316 = vcmp.eq.s32.totalorder %v2252, 1
    %vm2317 = vcmp.eq.s32.totalorder %v2253, 1
    %vm2318 = vcmp.eq.s32.totalorder %v2254, 1
    %vm2319 = vcmp.eq.s32.totalorder %v2255, 1
    %vm2320 = vcmp.eq.s32.totalorder %v2256, 1
    %vm2321 = vcmp.eq.s32.totalorder %v2257, 1
    %vm2322 = vcmp.eq.s32.totalorder %v2258, 1
    %vm2323 = vcmp.eq.s32.totalorder %v2259, 1
    %vm2324 = vcmp.eq.s32.totalorder %v2260, 1
    %vm2325 = vcmp.eq.s32.totalorder %v2261, 1
    %vm2326 = vcmp.eq.s32.totalorder %v2262, 1
    %vm2327 = vcmp.eq.s32.totalorder %v2263, 1
    %vm2328 = vcmp.eq.s32.totalorder %v2264, 1
    %vm2329 = vcmp.eq.s32.totalorder %v2265, 1
    %vm2330 = vcmp.eq.s32.totalorder %v2266, 1
    %vm2331 = vcmp.eq.s32.totalorder %v2267, 1
    %vm2332 = vcmp.eq.s32.totalorder %v2268, 1
    %vm2333 = vcmp.eq.s32.totalorder %v2269, 1
    %vm2334 = vcmp.eq.s32.totalorder %v2270, 1
    %vm2335 = vcmp.eq.s32.totalorder %v2271, 1
    %vm2336 = vcmp.eq.s32.totalorder %v2272, 1
    %vm2337 = vcmp.eq.s32.totalorder %v2273, 1
    %vm2338 = vcmp.eq.s32.totalorder %v2274, 1
    %vm2339 = vcmp.eq.s32.totalorder %v2275, 1
    %vm2340 = vcmp.eq.s32.totalorder %v2276, 1
    %vm2341 = vcmp.eq.s32.totalorder %v2277, 1
    %vm2342 = vcmp.eq.s32.totalorder %v2278, 1
    %vm2343 = vcmp.eq.s32.totalorder %v2279, 1
    %vm2344 = vcmp.eq.s32.totalorder %v2280, 1
    %vm2345 = vcmp.eq.s32.totalorder %v2281, 1
    %v2346 = vsel %vm2282, %v2026, %v1450
    %v2347 = vsel %vm2283, %v2027, %v1451
    %v2348 = vsel %vm2284, %v2028, %v1452
    %v2349 = vsel %vm2285, %v2029, %v1453
    %v2350 = vsel %vm2286, %v2030, %v1454
    %v2351 = vsel %vm2287, %v2031, %v1455
    %v2352 = vsel %vm2288, %v2032, %v1456
    %v2353 = vsel %vm2289, %v2033, %v1457
    %v2354 = vsel %vm2290, %v2034, %v1458
    %v2355 = vsel %vm2291, %v2035, %v1459
    %v2356 = vsel %vm2292, %v2036, %v1460
    %v2357 = vsel %vm2293, %v2037, %v1461
    %v2358 = vsel %vm2294, %v2038, %v1462
    %v2359 = vsel %vm2295, %v2039, %v1463
    %v2360 = vsel %vm2296, %v2040, %v1464
    %v2361 = vsel %vm2297, %v2041, %v1465
    %v2362 = vsel %vm2298, %v2042, %v1466
    %v2363 = vsel %vm2299, %v2043, %v1467
    %v2364 = vsel %vm2300, %v2044, %v1468
    %v2365 = vsel %vm2301, %v2045, %v1469
    %v2366 = vsel %vm2302, %v2046, %v1470
    %v2367 = vsel %vm2303, %v2047, %v1471
    %v2368 = vsel %vm2304, %v2048, %v1472
    %v2369 = vsel %vm2305, %v2049, %v1473
    %v2370 = vsel %vm2306, %v2050, %v1474
    %v2371 = vsel %vm2307, %v2051, %v1475
    %v2372 = vsel %vm2308, %v2052, %v1476
    %v2373 = vsel %vm2309, %v2053, %v1477
    %v2374 = vsel %vm2310, %v2054, %v1478
    %v2375 = vsel %vm2311, %v2055, %v1479
    %v2376 = vsel %vm2312, %v2056, %v1480
    %v2377 = vsel %vm2313, %v2057, %v1481
    %v2378 = vsel %vm2314, %v2058, %v1482
    %v2379 = vsel %vm2315, %v2059, %v1483
    %v2380 = vsel %vm2316, %v2060, %v1484
    %v2381 = vsel %vm2317, %v2061, %v1485
    %v2382 = vsel %vm2318, %v2062, %v1486
    %v2383 = vsel %vm2319, %v2063, %v1487
    %v2384 = vsel %vm2320, %v2064, %v1488
    %v2385 = vsel %vm2321, %v2065, %v1489
    %v2386 = vsel %vm2322, %v2066, %v1490
    %v2387 = vsel %vm2323, %v2067, %v1491
    %v2388 = vsel %vm2324, %v2068, %v1492
    %v2389 = vsel %vm2325, %v2069, %v1493
    %v2390 = vsel %vm2326, %v2070, %v1494
    %v2391 = vsel %vm2327, %v2071, %v1495
    %v2392 = vsel %vm2328, %v2072, %v1496
    %v2393 = vsel %vm2329, %v2073, %v1497
    %v2394 = vsel %vm2330, %v2074, %v1498
    %v2395 = vsel %vm2331, %v2075, %v1499
    %v2396 = vsel %vm2332, %v2076, %v1500
    %v2397 = vsel %vm2333, %v2077, %v1501
    %v2398 = vsel %vm2334, %v2078, %v1502
    %v2399 = vsel %vm2335, %v2079, %v1503
    %v2400 = vsel %vm2336, %v2080, %v1504
    %v2401 = vsel %vm2337, %v2081, %v1505
    %v2402 = vsel %vm2338, %v2082, %v1506
    %v2403 = vsel %vm2339, %v2083, %v1507
    %v2404 = vsel %vm2340, %v2084, %v1508
    %v2405 = vsel %vm2341, %v2085, %v1509
    %v2406 = vsel %vm2342, %v2086, %v1510
    %v2407 = vsel %vm2343, %v2087, %v1511
    %v2408 = vsel %vm2344, %v2088, %v1512
    %v2409 = vsel %vm2345, %v2089, %v1513
    %v2410 = vsel %vm2282, %v1450, %v2026
    %v2411 = vsel %vm2283, %v1451, %v2027
    %v2412 = vsel %vm2284, %v1452, %v2028
    %v2413 = vsel %vm2285, %v1453, %v2029
    %v2414 = vsel %vm2286, %v1454, %v2030
    %v2415 = vsel %vm2287, %v1455, %v2031
    %v2416 = vsel %vm2288, %v1456, %v2032
    %v2417 = vsel %vm2289, %v1457, %v2033
    %v2418 = vsel %vm2290, %v1458, %v2034
    %v2419 = vsel %vm2291, %v1459, %v2035
    %v2420 = vsel %vm2292, %v1460, %v2036
    %v2421 = vsel %vm2293, %v1461, %v2037
    %v2422 = vsel %vm2294, %v1462, %v2038
    %v2423 = vsel %vm2295, %v1463, %v2039
    %v2424 = vsel %vm2296, %v1464, %v2040
    %v2425 = vsel %vm2297, %v1465, %v2041
    %v2426 = vsel %vm2298, %v1466, %v2042
    %v2427 = vsel %vm2299, %v1467, %v2043
    %v2428 = vsel %vm2300, %v1468, %v2044
    %v2429 = vsel %vm2301, %v1469, %v2045
    %v2430 = vsel %vm2302, %v1470, %v2046
    %v2431 = vsel %vm2303, %v1471, %v2047
    %v2432 = vsel %vm2304, %v1472, %v2048
    %v2433 = vsel %vm2305, %v1473, %v2049
    %v2434 = vsel %vm2306, %v1474, %v2050
    %v2435 = vsel %vm2307, %v1475, %v2051
    %v2436 = vsel %vm2308, %v1476, %v2052
    %v2437 = vsel %vm2309, %v1477, %v2053
    %v2438 = vsel %vm2310, %v1478, %v2054
    %v2439 = vsel %vm2311, %v1479, %v2055
    %v2440 = vsel %vm2312, %v1480, %v2056
    %v2441 = vsel %vm2313, %v1481, %v2057
    %v2442 = vsel %vm2314, %v1482, %v2058
    %v2443 = vsel %vm2315, %v1483, %v2059
    %v2444 = vsel %vm2316, %v1484, %v2060
    %v2445 = vsel %vm2317, %v1485, %v2061
    %v2446 = vsel %vm2318, %v1486, %v2062
    %v2447 = vsel %vm2319, %v1487, %v2063
    %v2448 = vsel %vm2320, %v1488, %v2064
    %v2449 = vsel %vm2321, %v1489, %v2065
    %v2450 = vsel %vm2322, %v1490, %v2066
    %v2451 = vsel %vm2323, %v1491, %v2067
    %v2452 = vsel %vm2324, %v1492, %v2068
    %v2453 = vsel %vm2325, %v1493, %v2069
    %v2454 = vsel %vm2326, %v1494, %v2070
    %v2455 = vsel %vm2327, %v1495, %v2071
    %v2456 = vsel %vm2328, %v1496, %v2072
    %v2457 = vsel %vm2329, %v1497, %v2073
    %v2458 = vsel %vm2330, %v1498, %v2074
    %v2459 = vsel %vm2331, %v1499, %v2075
    %v2460 = vsel %vm2332, %v1500, %v2076
    %v2461 = vsel %vm2333, %v1501, %v2077
    %v2462 = vsel %vm2334, %v1502, %v2078
    %v2463 = vsel %vm2335, %v1503, %v2079
    %v2464 = vsel %vm2336, %v1504, %v2080
    %v2465 = vsel %vm2337, %v1505, %v2081
    %v2466 = vsel %vm2338, %v1506, %v2082
    %v2467 = vsel %vm2339, %v1507, %v2083
    %v2468 = vsel %vm2340, %v1508, %v2084
    %v2469 = vsel %vm2341, %v1509, %v2085
    %v2470 = vsel %vm2342, %v1510, %v2086
    %v2471 = vsel %vm2343, %v1511, %v2087
    %v2472 = vsel %vm2344, %v1512, %v2088
    %v2473 = vsel %vm2345, %v1513, %v2089
    %vm2474 = vcmp.ge.s32.totalorder %v2154, 2
    %vm2475 = vcmp.ge.s32.totalorder %v2155, 2
    %vm2476 = vcmp.ge.s32.totalorder %v2156, 2
    %vm2477 = vcmp.ge.s32.totalorder %v2157, 2
    %vm2478 = vcmp.ge.s32.totalorder %v2158, 2
    %vm2479 = vcmp.ge.s32.totalorder %v2159, 2
    %vm2480 = vcmp.ge.s32.totalorder %v2160, 2
    %vm2481 = vcmp.ge.s32.totalorder %v2161, 2
    %vm2482 = vcmp.ge.s32.totalorder %v2162, 2
    %vm2483 = vcmp.ge.s32.totalorder %v2163, 2
    %vm2484 = vcmp.ge.s32.totalorder %v2164, 2
    %vm2485 = vcmp.ge.s32.totalorder %v2165, 2
    %vm2486 = vcmp.ge.s32.totalorder %v2166, 2
    %vm2487 = vcmp.ge.s32.totalorder %v2167, 2
    %vm2488 = vcmp.ge.s32.totalorder %v2168, 2
    %vm2489 = vcmp.ge.s32.totalorder %v2169, 2
    %vm2490 = vcmp.ge.s32.totalorder %v2170, 2
    %vm2491 = vcmp.ge.s32.totalorder %v2171, 2
    %vm2492 = vcmp.ge.s32.totalorder %v2172, 2
    %vm2493 = vcmp.ge.s32.totalorder %v2173, 2
    %vm2494 = vcmp.ge.s32.totalorder %v2174, 2
    %vm2495 = vcmp.ge.s32.totalorder %v2175, 2
    %vm2496 = vcmp.ge.s32.totalorder %v2176, 2
    %vm2497 = vcmp.ge.s32.totalorder %v2177, 2
    %vm2498 = vcmp.ge.s32.totalorder %v2178, 2
    %vm2499 = vcmp.ge.s32.totalorder %v2179, 2
    %vm2500 = vcmp.ge.s32.totalorder %v2180, 2
    %vm2501 = vcmp.ge.s32.totalorder %v2181, 2
    %vm2502 = vcmp.ge.s32.totalorder %v2182, 2
    %vm2503 = vcmp.ge.s32.totalorder %v2183, 2
    %vm2504 = vcmp.ge.s32.totalorder %v2184, 2
    %vm2505 = vcmp.ge.s32.totalorder %v2185, 2
    %vm2506 = vcmp.ge.s32.totalorder %v2186, 2
    %vm2507 = vcmp.ge.s32.totalorder %v2187, 2
    %vm2508 = vcmp.ge.s32.totalorder %v2188, 2
    %vm2509 = vcmp.ge.s32.totalorder %v2189, 2
    %vm2510 = vcmp.ge.s32.totalorder %v2190, 2
    %vm2511 = vcmp.ge.s32.totalorder %v2191, 2
    %vm2512 = vcmp.ge.s32.totalorder %v2192, 2
    %vm2513 = vcmp.ge.s32.totalorder %v2193, 2
    %vm2514 = vcmp.ge.s32.totalorder %v2194, 2
    %vm2515 = vcmp.ge.s32.totalorder %v2195, 2
    %vm2516 = vcmp.ge.s32.totalorder %v2196, 2
    %vm2517 = vcmp.ge.s32.totalorder %v2197, 2
    %vm2518 = vcmp.ge.s32.totalorder %v2198, 2
    %vm2519 = vcmp.ge.s32.totalorder %v2199, 2
    %vm2520 = vcmp.ge.s32.totalorder %v2200, 2
    %vm2521 = vcmp.ge.s32.totalorder %v2201, 2
    %vm2522 = vcmp.ge.s32.totalorder %v2202, 2
    %vm2523 = vcmp.ge.s32.totalorder %v2203, 2
    %vm2524 = vcmp.ge.s32.totalorder %v2204, 2
    %vm2525 = vcmp.ge.s32.totalorder %v2205, 2
    %vm2526 = vcmp.ge.s32.totalorder %v2206, 2
    %vm2527 = vcmp.ge.s32.totalorder %v2207, 2
    %vm2528 = vcmp.ge.s32.totalorder %v2208, 2
    %vm2529 = vcmp.ge.s32.totalorder %v2209, 2
    %vm2530 = vcmp.ge.s32.totalorder %v2210, 2
    %vm2531 = vcmp.ge.s32.totalorder %v2211, 2
    %vm2532 = vcmp.ge.s32.totalorder %v2212, 2
    %vm2533 = vcmp.ge.s32.totalorder %v2213, 2
    %vm2534 = vcmp.ge.s32.totalorder %v2214, 2
    %vm2535 = vcmp.ge.s32.totalorder %v2215, 2
    %vm2536 = vcmp.ge.s32.totalorder %v2216, 2
    %vm2537 = vcmp.ge.s32.totalorder %v2217, 2
    %v2538 = vsub.f32 0.0, %v2346
    %v2539 = vsub.f32 0.0, %v2347
    %v2540 = vsub.f32 0.0, %v2348
    %v2541 = vsub.f32 0.0, %v2349
    %v2542 = vsub.f32 0.0, %v2350
    %v2543 = vsub.f32 0.0, %v2351
    %v2544 = vsub.f32 0.0, %v2352
    %v2545 = vsub.f32 0.0, %v2353
    %v2546 = vsub.f32 0.0, %v2354
    %v2547 = vsub.f32 0.0, %v2355
    %v2548 = vsub.f32 0.0, %v2356
    %v2549 = vsub.f32 0.0, %v2357
    %v2550 = vsub.f32 0.0, %v2358
    %v2551 = vsub.f32 0.0, %v2359
    %v2552 = vsub.f32 0.0, %v2360
    %v2553 = vsub.f32 0.0, %v2361
    %v2554 = vsub.f32 0.0, %v2362
    %v2555 = vsub.f32 0.0, %v2363
    %v2556 = vsub.f32 0.0, %v2364
    %v2557 = vsub.f32 0.0, %v2365
    %v2558 = vsub.f32 0.0, %v2366
    %v2559 = vsub.f32 0.0, %v2367
    %v2560 = vsub.f32 0.0, %v2368
    %v2561 = vsub.f32 0.0, %v2369
    %v2562 = vsub.f32 0.0, %v2370
    %v2563 = vsub.f32 0.0, %v2371
    %v2564 = vsub.f32 0.0, %v2372
    %v2565 = vsub.f32 0.0, %v2373
    %v2566 = vsub.f32 0.0, %v2374
    %v2567 = vsub.f32 0.0, %v2375
    %v2568 = vsub.f32 0.0, %v2376
    %v2569 = vsub.f32 0.0, %v2377
    %v2570 = vsub.f32 0.0, %v2378
    %v2571 = vsub.f32 0.0, %v2379
    %v2572 = vsub.f32 0.0, %v2380
    %v2573 = vsub.f32 0.0, %v2381
    %v2574 = vsub.f32 0.0, %v2382
    %v2575 = vsub.f32 0.0, %v2383
    %v2576 = vsub.f32 0.0, %v2384
    %v2577 = vsub.f32 0.0, %v2385
    %v2578 = vsub.f32 0.0, %v2386
    %v2579 = vsub.f32 0.0, %v2387
    %v2580 = vsub.f32 0.0, %v2388
    %v2581 = vsub.f32 0.0, %v2389
    %v2582 = vsub.f32 0.0, %v2390
    %v2583 = vsub.f32 0.0, %v2391
    %v2584 = vsub.f32 0.0, %v2392
    %v2585 = vsub.f32 0.0, %v2393
    %v2586 = vsub.f32 0.0, %v2394
    %v2587 = vsub.f32 0.0, %v2395
    %v2588 = vsub.f32 0.0, %v2396
    %v2589 = vsub.f32 0.0, %v2397
    %v2590 = vsub.f32 0.0, %v2398
    %v2591 = vsub.f32 0.0, %v2399
    %v2592 = vsub.f32 0.0, %v2400
    %v2593 = vsub.f32 0.0, %v2401
    %v2594 = vsub.f32 0.0, %v2402
    %v2595 = vsub.f32 0.0, %v2403
    %v2596 = vsub.f32 0.0, %v2404
    %v2597 = vsub.f32 0.0, %v2405
    %v2598 = vsub.f32 0.0, %v2406
    %v2599 = vsub.f32 0.0, %v2407
    %v2600 = vsub.f32 0.0, %v2408
    %v2601 = vsub.f32 0.0, %v2409
    %v2602 = vsel %vm2474, %v2538, %v2346
    %v2603 = vsel %vm2475, %v2539, %v2347
    %v2604 = vsel %vm2476, %v2540, %v2348
    %v2605 = vsel %vm2477, %v2541, %v2349
    %v2606 = vsel %vm2478, %v2542, %v2350
    %v2607 = vsel %vm2479, %v2543, %v2351
    %v2608 = vsel %vm2480, %v2544, %v2352
    %v2609 = vsel %vm2481, %v2545, %v2353
    %v2610 = vsel %vm2482, %v2546, %v2354
    %v2611 = vsel %vm2483, %v2547, %v2355
    %v2612 = vsel %vm2484, %v2548, %v2356
    %v2613 = vsel %vm2485, %v2549, %v2357
    %v2614 = vsel %vm2486, %v2550, %v2358
    %v2615 = vsel %vm2487, %v2551, %v2359
    %v2616 = vsel %vm2488, %v2552, %v2360
    %v2617 = vsel %vm2489, %v2553, %v2361
    %v2618 = vsel %vm2490, %v2554, %v2362
    %v2619 = vsel %vm2491, %v2555, %v2363
    %v2620 = vsel %vm2492, %v2556, %v2364
    %v2621 = vsel %vm2493, %v2557, %v2365
    %v2622 = vsel %vm2494, %v2558, %v2366
    %v2623 = vsel %vm2495, %v2559, %v2367
    %v2624 = vsel %vm2496, %v2560, %v2368
    %v2625 = vsel %vm2497, %v2561, %v2369
    %v2626 = vsel %vm2498, %v2562, %v2370
    %v2627 = vsel %vm2499, %v2563, %v2371
    %v2628 = vsel %vm2500, %v2564, %v2372
    %v2629 = vsel %vm2501, %v2565, %v2373
    %v2630 = vsel %vm2502, %v2566, %v2374
    %v2631 = vsel %vm2503, %v2567, %v2375
    %v2632 = vsel %vm2504, %v2568, %v2376
    %v2633 = vsel %vm2505, %v2569, %v2377
    %v2634 = vsel %vm2506, %v2570, %v2378
    %v2635 = vsel %vm2507, %v2571, %v2379
    %v2636 = vsel %vm2508, %v2572, %v2380
    %v2637 = vsel %vm2509, %v2573, %v2381
    %v2638 = vsel %vm2510, %v2574, %v2382
    %v2639 = vsel %vm2511, %v2575, %v2383
    %v2640 = vsel %vm2512, %v2576, %v2384
    %v2641 = vsel %vm2513, %v2577, %v2385
    %v2642 = vsel %vm2514, %v2578, %v2386
    %v2643 = vsel %vm2515, %v2579, %v2387
    %v2644 = vsel %vm2516, %v2580, %v2388
    %v2645 = vsel %vm2517, %v2581, %v2389
    %v2646 = vsel %vm2518, %v2582, %v2390
    %v2647 = vsel %vm2519, %v2583, %v2391
    %v2648 = vsel %vm2520, %v2584, %v2392
    %v2649 = vsel %vm2521, %v2585, %v2393
    %v2650 = vsel %vm2522, %v2586, %v2394
    %v2651 = vsel %vm2523, %v2587, %v2395
    %v2652 = vsel %vm2524, %v2588, %v2396
    %v2653 = vsel %vm2525, %v2589, %v2397
    %v2654 = vsel %vm2526, %v2590, %v2398
    %v2655 = vsel %vm2527, %v2591, %v2399
    %v2656 = vsel %vm2528, %v2592, %v2400
    %v2657 = vsel %vm2529, %v2593, %v2401
    %v2658 = vsel %vm2530, %v2594, %v2402
    %v2659 = vsel %vm2531, %v2595, %v2403
    %v2660 = vsel %vm2532, %v2596, %v2404
    %v2661 = vsel %vm2533, %v2597, %v2405
    %v2662 = vsel %vm2534, %v2598, %v2406
    %v2663 = vsel %vm2535, %v2599, %v2407
    %v2664 = vsel %vm2536, %v2600, %v2408
    %v2665 = vsel %vm2537, %v2601, %v2409
    %vm2666 = vcmp.eq.s32.totalorder %v2154, 1
    %vm2667 = vcmp.eq.s32.totalorder %v2155, 1
    %vm2668 = vcmp.eq.s32.totalorder %v2156, 1
    %vm2669 = vcmp.eq.s32.totalorder %v2157, 1
    %vm2670 = vcmp.eq.s32.totalorder %v2158, 1
    %vm2671 = vcmp.eq.s32.totalorder %v2159, 1
    %vm2672 = vcmp.eq.s32.totalorder %v2160, 1
    %vm2673 = vcmp.eq.s32.totalorder %v2161, 1
    %vm2674 = vcmp.eq.s32.totalorder %v2162, 1
    %vm2675 = vcmp.eq.s32.totalorder %v2163, 1
    %vm2676 = vcmp.eq.s32.totalorder %v2164, 1
    %vm2677 = vcmp.eq.s32.totalorder %v2165, 1
    %vm2678 = vcmp.eq.s32.totalorder %v2166, 1
    %vm2679 = vcmp.eq.s32.totalorder %v2167, 1
    %vm2680 = vcmp.eq.s32.totalorder %v2168, 1
    %vm2681 = vcmp.eq.s32.totalorder %v2169, 1
    %vm2682 = vcmp.eq.s32.totalorder %v2170, 1
    %vm2683 = vcmp.eq.s32.totalorder %v2171, 1
    %vm2684 = vcmp.eq.s32.totalorder %v2172, 1
    %vm2685 = vcmp.eq.s32.totalorder %v2173, 1
    %vm2686 = vcmp.eq.s32.totalorder %v2174, 1
    %vm2687 = vcmp.eq.s32.totalorder %v2175, 1
    %vm2688 = vcmp.eq.s32.totalorder %v2176, 1
    %vm2689 = vcmp.eq.s32.totalorder %v2177, 1
    %vm2690 = vcmp.eq.s32.totalorder %v2178, 1
    %vm2691 = vcmp.eq.s32.totalorder %v2179, 1
    %vm2692 = vcmp.eq.s32.totalorder %v2180, 1
    %vm2693 = vcmp.eq.s32.totalorder %v2181, 1
    %vm2694 = vcmp.eq.s32.totalorder %v2182, 1
    %vm2695 = vcmp.eq.s32.totalorder %v2183, 1
    %vm2696 = vcmp.eq.s32.totalorder %v2184, 1
    %vm2697 = vcmp.eq.s32.totalorder %v2185, 1
    %vm2698 = vcmp.eq.s32.totalorder %v2186, 1
    %vm2699 = vcmp.eq.s32.totalorder %v2187, 1
    %vm2700 = vcmp.eq.s32.totalorder %v2188, 1
    %vm2701 = vcmp.eq.s32.totalorder %v2189, 1
    %vm2702 = vcmp.eq.s32.totalorder %v2190, 1
    %vm2703 = vcmp.eq.s32.totalorder %v2191, 1
    %vm2704 = vcmp.eq.s32.totalorder %v2192, 1
    %vm2705 = vcmp.eq.s32.totalorder %v2193, 1
    %vm2706 = vcmp.eq.s32.totalorder %v2194, 1
    %vm2707 = vcmp.eq.s32.totalorder %v2195, 1
    %vm2708 = vcmp.eq.s32.totalorder %v2196, 1
    %vm2709 = vcmp.eq.s32.totalorder %v2197, 1
    %vm2710 = vcmp.eq.s32.totalorder %v2198, 1
    %vm2711 = vcmp.eq.s32.totalorder %v2199, 1
    %vm2712 = vcmp.eq.s32.totalorder %v2200, 1
    %vm2713 = vcmp.eq.s32.totalorder %v2201, 1
    %vm2714 = vcmp.eq.s32.totalorder %v2202, 1
    %vm2715 = vcmp.eq.s32.totalorder %v2203, 1
    %vm2716 = vcmp.eq.s32.totalorder %v2204, 1
    %vm2717 = vcmp.eq.s32.totalorder %v2205, 1
    %vm2718 = vcmp.eq.s32.totalorder %v2206, 1
    %vm2719 = vcmp.eq.s32.totalorder %v2207, 1
    %vm2720 = vcmp.eq.s32.totalorder %v2208, 1
    %vm2721 = vcmp.eq.s32.totalorder %v2209, 1
    %vm2722 = vcmp.eq.s32.totalorder %v2210, 1
    %vm2723 = vcmp.eq.s32.totalorder %v2211, 1
    %vm2724 = vcmp.eq.s32.totalorder %v2212, 1
    %vm2725 = vcmp.eq.s32.totalorder %v2213, 1
    %vm2726 = vcmp.eq.s32.totalorder %v2214, 1
    %vm2727 = vcmp.eq.s32.totalorder %v2215, 1
    %vm2728 = vcmp.eq.s32.totalorder %v2216, 1
    %vm2729 = vcmp.eq.s32.totalorder %v2217, 1
    %vm2730 = vcmp.eq.s32.totalorder %v2154, 2
    %vm2731 = vcmp.eq.s32.totalorder %v2155, 2
    %vm2732 = vcmp.eq.s32.totalorder %v2156, 2
    %vm2733 = vcmp.eq.s32.totalorder %v2157, 2
    %vm2734 = vcmp.eq.s32.totalorder %v2158, 2
    %vm2735 = vcmp.eq.s32.totalorder %v2159, 2
    %vm2736 = vcmp.eq.s32.totalorder %v2160, 2
    %vm2737 = vcmp.eq.s32.totalorder %v2161, 2
    %vm2738 = vcmp.eq.s32.totalorder %v2162, 2
    %vm2739 = vcmp.eq.s32.totalorder %v2163, 2
    %vm2740 = vcmp.eq.s32.totalorder %v2164, 2
    %vm2741 = vcmp.eq.s32.totalorder %v2165, 2
    %vm2742 = vcmp.eq.s32.totalorder %v2166, 2
    %vm2743 = vcmp.eq.s32.totalorder %v2167, 2
    %vm2744 = vcmp.eq.s32.totalorder %v2168, 2
    %vm2745 = vcmp.eq.s32.totalorder %v2169, 2
    %vm2746 = vcmp.eq.s32.totalorder %v2170, 2
    %vm2747 = vcmp.eq.s32.totalorder %v2171, 2
    %vm2748 = vcmp.eq.s32.totalorder %v2172, 2
    %vm2749 = vcmp.eq.s32.totalorder %v2173, 2
    %vm2750 = vcmp.eq.s32.totalorder %v2174, 2
    %vm2751 = vcmp.eq.s32.totalorder %v2175, 2
    %vm2752 = vcmp.eq.s32.totalorder %v2176, 2
    %vm2753 = vcmp.eq.s32.totalorder %v2177, 2
    %vm2754 = vcmp.eq.s32.totalorder %v2178, 2
    %vm2755 = vcmp.eq.s32.totalorder %v2179, 2
    %vm2756 = vcmp.eq.s32.totalorder %v2180, 2
    %vm2757 = vcmp.eq.s32.totalorder %v2181, 2
    %vm2758 = vcmp.eq.s32.totalorder %v2182, 2
    %vm2759 = vcmp.eq.s32.totalorder %v2183, 2
    %vm2760 = vcmp.eq.s32.totalorder %v2184, 2
    %vm2761 = vcmp.eq.s32.totalorder %v2185, 2
    %vm2762 = vcmp.eq.s32.totalorder %v2186, 2
    %vm2763 = vcmp.eq.s32.totalorder %v2187, 2
    %vm2764 = vcmp.eq.s32.totalorder %v2188, 2
    %vm2765 = vcmp.eq.s32.totalorder %v2189, 2
    %vm2766 = vcmp.eq.s32.totalorder %v2190, 2
    %vm2767 = vcmp.eq.s32.totalorder %v2191, 2
    %vm2768 = vcmp.eq.s32.totalorder %v2192, 2
    %vm2769 = vcmp.eq.s32.totalorder %v2193, 2
    %vm2770 = vcmp.eq.s32.totalorder %v2194, 2
    %vm2771 = vcmp.eq.s32.totalorder %v2195, 2
    %vm2772 = vcmp.eq.s32.totalorder %v2196, 2
    %vm2773 = vcmp.eq.s32.totalorder %v2197, 2
    %vm2774 = vcmp.eq.s32.totalorder %v2198, 2
    %vm2775 = vcmp.eq.s32.totalorder %v2199, 2
    %vm2776 = vcmp.eq.s32.totalorder %v2200, 2
    %vm2777 = vcmp.eq.s32.totalorder %v2201, 2
    %vm2778 = vcmp.eq.s32.totalorder %v2202, 2
    %vm2779 = vcmp.eq.s32.totalorder %v2203, 2
    %vm2780 = vcmp.eq.s32.totalorder %v2204, 2
    %vm2781 = vcmp.eq.s32.totalorder %v2205, 2
    %vm2782 = vcmp.eq.s32.totalorder %v2206, 2
    %vm2783 = vcmp.eq.s32.totalorder %v2207, 2
    %vm2784 = vcmp.eq.s32.totalorder %v2208, 2
    %vm2785 = vcmp.eq.s32.totalorder %v2209, 2
    %vm2786 = vcmp.eq.s32.totalorder %v2210, 2
    %vm2787 = vcmp.eq.s32.totalorder %v2211, 2
    %vm2788 = vcmp.eq.s32.totalorder %v2212, 2
    %vm2789 = vcmp.eq.s32.totalorder %v2213, 2
    %vm2790 = vcmp.eq.s32.totalorder %v2214, 2
    %vm2791 = vcmp.eq.s32.totalorder %v2215, 2
    %vm2792 = vcmp.eq.s32.totalorder %v2216, 2
    %vm2793 = vcmp.eq.s32.totalorder %v2217, 2
    %vm2794 = vmor %vm2666, %vm2730
    %vm2795 = vmor %vm2667, %vm2731
    %vm2796 = vmor %vm2668, %vm2732
    %vm2797 = vmor %vm2669, %vm2733
    %vm2798 = vmor %vm2670, %vm2734
    %vm2799 = vmor %vm2671, %vm2735
    %vm2800 = vmor %vm2672, %vm2736
    %vm2801 = vmor %vm2673, %vm2737
    %vm2802 = vmor %vm2674, %vm2738
    %vm2803 = vmor %vm2675, %vm2739
    %vm2804 = vmor %vm2676, %vm2740
    %vm2805 = vmor %vm2677, %vm2741
    %vm2806 = vmor %vm2678, %vm2742
    %vm2807 = vmor %vm2679, %vm2743
    %vm2808 = vmor %vm2680, %vm2744
    %vm2809 = vmor %vm2681, %vm2745
    %vm2810 = vmor %vm2682, %vm2746
    %vm2811 = vmor %vm2683, %vm2747
    %vm2812 = vmor %vm2684, %vm2748
    %vm2813 = vmor %vm2685, %vm2749
    %vm2814 = vmor %vm2686, %vm2750
    %vm2815 = vmor %vm2687, %vm2751
    %vm2816 = vmor %vm2688, %vm2752
    %vm2817 = vmor %vm2689, %vm2753
    %vm2818 = vmor %vm2690, %vm2754
    %vm2819 = vmor %vm2691, %vm2755
    %vm2820 = vmor %vm2692, %vm2756
    %vm2821 = vmor %vm2693, %vm2757
    %vm2822 = vmor %vm2694, %vm2758
    %vm2823 = vmor %vm2695, %vm2759
    %vm2824 = vmor %vm2696, %vm2760
    %vm2825 = vmor %vm2697, %vm2761
    %vm2826 = vmor %vm2698, %vm2762
    %vm2827 = vmor %vm2699, %vm2763
    %vm2828 = vmor %vm2700, %vm2764
    %vm2829 = vmor %vm2701, %vm2765
    %vm2830 = vmor %vm2702, %vm2766
    %vm2831 = vmor %vm2703, %vm2767
    %vm2832 = vmor %vm2704, %vm2768
    %vm2833 = vmor %vm2705, %vm2769
    %vm2834 = vmor %vm2706, %vm2770
    %vm2835 = vmor %vm2707, %vm2771
    %vm2836 = vmor %vm2708, %vm2772
    %vm2837 = vmor %vm2709, %vm2773
    %vm2838 = vmor %vm2710, %vm2774
    %vm2839 = vmor %vm2711, %vm2775
    %vm2840 = vmor %vm2712, %vm2776
    %vm2841 = vmor %vm2713, %vm2777
    %vm2842 = vmor %vm2714, %vm2778
    %vm2843 = vmor %vm2715, %vm2779
    %vm2844 = vmor %vm2716, %vm2780
    %vm2845 = vmor %vm2717, %vm2781
    %vm2846 = vmor %vm2718, %vm2782
    %vm2847 = vmor %vm2719, %vm2783
    %vm2848 = vmor %vm2720, %vm2784
    %vm2849 = vmor %vm2721, %vm2785
    %vm2850 = vmor %vm2722, %vm2786
    %vm2851 = vmor %vm2723, %vm2787
    %vm2852 = vmor %vm2724, %vm2788
    %vm2853 = vmor %vm2725, %vm2789
    %vm2854 = vmor %vm2726, %vm2790
    %vm2855 = vmor %vm2727, %vm2791
    %vm2856 = vmor %vm2728, %vm2792
    %vm2857 = vmor %vm2729, %vm2793
    %v2858 = vsub.f32 0.0, %v2410
    %v2859 = vsub.f32 0.0, %v2411
    %v2860 = vsub.f32 0.0, %v2412
    %v2861 = vsub.f32 0.0, %v2413
    %v2862 = vsub.f32 0.0, %v2414
    %v2863 = vsub.f32 0.0, %v2415
    %v2864 = vsub.f32 0.0, %v2416
    %v2865 = vsub.f32 0.0, %v2417
    %v2866 = vsub.f32 0.0, %v2418
    %v2867 = vsub.f32 0.0, %v2419
    %v2868 = vsub.f32 0.0, %v2420
    %v2869 = vsub.f32 0.0, %v2421
    %v2870 = vsub.f32 0.0, %v2422
    %v2871 = vsub.f32 0.0, %v2423
    %v2872 = vsub.f32 0.0, %v2424
    %v2873 = vsub.f32 0.0, %v2425
    %v2874 = vsub.f32 0.0, %v2426
    %v2875 = vsub.f32 0.0, %v2427
    %v2876 = vsub.f32 0.0, %v2428
    %v2877 = vsub.f32 0.0, %v2429
    %v2878 = vsub.f32 0.0, %v2430
    %v2879 = vsub.f32 0.0, %v2431
    %v2880 = vsub.f32 0.0, %v2432
    %v2881 = vsub.f32 0.0, %v2433
    %v2882 = vsub.f32 0.0, %v2434
    %v2883 = vsub.f32 0.0, %v2435
    %v2884 = vsub.f32 0.0, %v2436
    %v2885 = vsub.f32 0.0, %v2437
    %v2886 = vsub.f32 0.0, %v2438
    %v2887 = vsub.f32 0.0, %v2439
    %v2888 = vsub.f32 0.0, %v2440
    %v2889 = vsub.f32 0.0, %v2441
    %v2890 = vsub.f32 0.0, %v2442
    %v2891 = vsub.f32 0.0, %v2443
    %v2892 = vsub.f32 0.0, %v2444
    %v2893 = vsub.f32 0.0, %v2445
    %v2894 = vsub.f32 0.0, %v2446
    %v2895 = vsub.f32 0.0, %v2447
    %v2896 = vsub.f32 0.0, %v2448
    %v2897 = vsub.f32 0.0, %v2449
    %v2898 = vsub.f32 0.0, %v2450
    %v2899 = vsub.f32 0.0, %v2451
    %v2900 = vsub.f32 0.0, %v2452
    %v2901 = vsub.f32 0.0, %v2453
    %v2902 = vsub.f32 0.0, %v2454
    %v2903 = vsub.f32 0.0, %v2455
    %v2904 = vsub.f32 0.0, %v2456
    %v2905 = vsub.f32 0.0, %v2457
    %v2906 = vsub.f32 0.0, %v2458
    %v2907 = vsub.f32 0.0, %v2459
    %v2908 = vsub.f32 0.0, %v2460
    %v2909 = vsub.f32 0.0, %v2461
    %v2910 = vsub.f32 0.0, %v2462
    %v2911 = vsub.f32 0.0, %v2463
    %v2912 = vsub.f32 0.0, %v2464
    %v2913 = vsub.f32 0.0, %v2465
    %v2914 = vsub.f32 0.0, %v2466
    %v2915 = vsub.f32 0.0, %v2467
    %v2916 = vsub.f32 0.0, %v2468
    %v2917 = vsub.f32 0.0, %v2469
    %v2918 = vsub.f32 0.0, %v2470
    %v2919 = vsub.f32 0.0, %v2471
    %v2920 = vsub.f32 0.0, %v2472
    %v2921 = vsub.f32 0.0, %v2473
    %v2922 = vsel %vm2794, %v2858, %v2410
    %v2923 = vsel %vm2795, %v2859, %v2411
    %v2924 = vsel %vm2796, %v2860, %v2412
    %v2925 = vsel %vm2797, %v2861, %v2413
    %v2926 = vsel %vm2798, %v2862, %v2414
    %v2927 = vsel %vm2799, %v2863, %v2415
    %v2928 = vsel %vm2800, %v2864, %v2416
    %v2929 = vsel %vm2801, %v2865, %v2417
    %v2930 = vsel %vm2802, %v2866, %v2418
    %v2931 = vsel %vm2803, %v2867, %v2419
    %v2932 = vsel %vm2804, %v2868, %v2420
    %v2933 = vsel %vm2805, %v2869, %v2421
    %v2934 = vsel %vm2806, %v2870, %v2422
    %v2935 = vsel %vm2807, %v2871, %v2423
    %v2936 = vsel %vm2808, %v2872, %v2424
    %v2937 = vsel %vm2809, %v2873, %v2425
    %v2938 = vsel %vm2810, %v2874, %v2426
    %v2939 = vsel %vm2811, %v2875, %v2427
    %v2940 = vsel %vm2812, %v2876, %v2428
    %v2941 = vsel %vm2813, %v2877, %v2429
    %v2942 = vsel %vm2814, %v2878, %v2430
    %v2943 = vsel %vm2815, %v2879, %v2431
    %v2944 = vsel %vm2816, %v2880, %v2432
    %v2945 = vsel %vm2817, %v2881, %v2433
    %v2946 = vsel %vm2818, %v2882, %v2434
    %v2947 = vsel %vm2819, %v2883, %v2435
    %v2948 = vsel %vm2820, %v2884, %v2436
    %v2949 = vsel %vm2821, %v2885, %v2437
    %v2950 = vsel %vm2822, %v2886, %v2438
    %v2951 = vsel %vm2823, %v2887, %v2439
    %v2952 = vsel %vm2824, %v2888, %v2440
    %v2953 = vsel %vm2825, %v2889, %v2441
    %v2954 = vsel %vm2826, %v2890, %v2442
    %v2955 = vsel %vm2827, %v2891, %v2443
    %v2956 = vsel %vm2828, %v2892, %v2444
    %v2957 = vsel %vm2829, %v2893, %v2445
    %v2958 = vsel %vm2830, %v2894, %v2446
    %v2959 = vsel %vm2831, %v2895, %v2447
    %v2960 = vsel %vm2832, %v2896, %v2448
    %v2961 = vsel %vm2833, %v2897, %v2449
    %v2962 = vsel %vm2834, %v2898, %v2450
    %v2963 = vsel %vm2835, %v2899, %v2451
    %v2964 = vsel %vm2836, %v2900, %v2452
    %v2965 = vsel %vm2837, %v2901, %v2453
    %v2966 = vsel %vm2838, %v2902, %v2454
    %v2967 = vsel %vm2839, %v2903, %v2455
    %v2968 = vsel %vm2840, %v2904, %v2456
    %v2969 = vsel %vm2841, %v2905, %v2457
    %v2970 = vsel %vm2842, %v2906, %v2458
    %v2971 = vsel %vm2843, %v2907, %v2459
    %v2972 = vsel %vm2844, %v2908, %v2460
    %v2973 = vsel %vm2845, %v2909, %v2461
    %v2974 = vsel %vm2846, %v2910, %v2462
    %v2975 = vsel %vm2847, %v2911, %v2463
    %v2976 = vsel %vm2848, %v2912, %v2464
    %v2977 = vsel %vm2849, %v2913, %v2465
    %v2978 = vsel %vm2850, %v2914, %v2466
    %v2979 = vsel %vm2851, %v2915, %v2467
    %v2980 = vsel %vm2852, %v2916, %v2468
    %v2981 = vsel %vm2853, %v2917, %v2469
    %v2982 = vsel %vm2854, %v2918, %v2470
    %v2983 = vsel %vm2855, %v2919, %v2471
    %v2984 = vsel %vm2856, %v2920, %v2472
    %v2985 = vsel %vm2857, %v2921, %v2473
    %2986 = vst [vmem:[#allocation5] sm:$0xff] %v2922
    %2987 = vst [vmem:[#allocation5 + $0x8] sm:$0xff] %v2923
    %2988 = vst [vmem:[#allocation5 + $0x10] sm:$0xff] %v2924
    %2989 = vst [vmem:[#allocation5 + $0x18] sm:$0xff] %v2925
    %2990 = vst [vmem:[#allocation5 + $0x20] sm:$0xff] %v2926
    %2991 = vst [vmem:[#allocation5 + $0x28] sm:$0xff] %v2927
    %2992 = vst [vmem:[#allocation5 + $0x30] sm:$0xff] %v2928
    %2993 = vst [vmem:[#allocation5 + $0x38] sm:$0xff] %v2929
    %2994 = vst [vmem:[#allocation5 + $0x40] sm:$0xff] %v2930
    %2995 = vst [vmem:[#allocation5 + $0x48] sm:$0xff] %v2931
    %2996 = vst [vmem:[#allocation5 + $0x50] sm:$0xff] %v2932
    %2997 = vst [vmem:[#allocation5 + $0x58] sm:$0xff] %v2933
    %2998 = vst [vmem:[#allocation5 + $0x60] sm:$0xff] %v2934
    %2999 = vst [vmem:[#allocation5 + $0x68] sm:$0xff] %v2935
    %3000 = vst [vmem:[#allocation5 + $0x70] sm:$0xff] %v2936
    %3001 = vst [vmem:[#allocation5 + $0x78] sm:$0xff] %v2937
    %3002 = vst [vmem:[#allocation5 + $0x80] sm:$0xff] %v2938
    %3003 = vst [vmem:[#allocation5 + $0x88] sm:$0xff] %v2939
    %3004 = vst [vmem:[#allocation5 + $0x90] sm:$0xff] %v2940
    %3005 = vst [vmem:[#allocation5 + $0x98] sm:$0xff] %v2941
    %3006 = vst [vmem:[#allocation5 + $0xa0] sm:$0xff] %v2942
    %3007 = vst [vmem:[#allocation5 + $0xa8] sm:$0xff] %v2943
    %3008 = vst [vmem:[#allocation5 + $0xb0] sm:$0xff] %v2944
    %3009 = vst [vmem:[#allocation5 + $0xb8] sm:$0xff] %v2945
    %3010 = vst [vmem:[#allocation5 + $0xc0] sm:$0xff] %v2946
    %3011 = vst [vmem:[#allocation5 + $0xc8] sm:$0xff] %v2947
    %3012 = vst [vmem:[#allocation5 + $0xd0] sm:$0xff] %v2948
    %3013 = vst [vmem:[#allocation5 + $0xd8] sm:$0xff] %v2949
    %3014 = vst [vmem:[#allocation5 + $0xe0] sm:$0xff] %v2950
    %3015 = vst [vmem:[#allocation5 + $0xe8] sm:$0xff] %v2951
    %3016 = vst [vmem:[#allocation5 + $0xf0] sm:$0xff] %v2952
    %3017 = vst [vmem:[#allocation5 + $0xf8] sm:$0xff] %v2953
    %3018 = vst [vmem:[#allocation5 + $0x100] sm:$0xff] %v2954
    %3019 = vst [vmem:[#allocation5 + $0x108] sm:$0xff] %v2955
    %3020 = vst [vmem:[#allocation5 + $0x110] sm:$0xff] %v2956
    %3021 = vst [vmem:[#allocation5 + $0x118] sm:$0xff] %v2957
    %3022 = vst [vmem:[#allocation5 + $0x120] sm:$0xff] %v2958
    %3023 = vst [vmem:[#allocation5 + $0x128] sm:$0xff] %v2959
    %3024 = vst [vmem:[#allocation5 + $0x130] sm:$0xff] %v2960
    %3025 = vst [vmem:[#allocation5 + $0x138] sm:$0xff] %v2961
    %3026 = vst [vmem:[#allocation5 + $0x140] sm:$0xff] %v2962
    %3027 = vst [vmem:[#allocation5 + $0x148] sm:$0xff] %v2963
    %3028 = vst [vmem:[#allocation5 + $0x150] sm:$0xff] %v2964
    %3029 = vst [vmem:[#allocation5 + $0x158] sm:$0xff] %v2965
    %3030 = vst [vmem:[#allocation5 + $0x160] sm:$0xff] %v2966
    %3031 = vst [vmem:[#allocation5 + $0x168] sm:$0xff] %v2967
    %3032 = vst [vmem:[#allocation5 + $0x170] sm:$0xff] %v2968
    %3033 = vst [vmem:[#allocation5 + $0x178] sm:$0xff] %v2969
    %3034 = vst [vmem:[#allocation5 + $0x180] sm:$0xff] %v2970
    %3035 = vst [vmem:[#allocation5 + $0x188] sm:$0xff] %v2971
    %3036 = vst [vmem:[#allocation5 + $0x190] sm:$0xff] %v2972
    %3037 = vst [vmem:[#allocation5 + $0x198] sm:$0xff] %v2973
    %3038 = vst [vmem:[#allocation5 + $0x1a0] sm:$0xff] %v2974
    %3039 = vst [vmem:[#allocation5 + $0x1a8] sm:$0xff] %v2975
    %3040 = vst [vmem:[#allocation5 + $0x1b0] sm:$0xff] %v2976
    %3041 = vst [vmem:[#allocation5 + $0x1b8] sm:$0xff] %v2977
    %3042 = vst [vmem:[#allocation5 + $0x1c0] sm:$0xff] %v2978
    %3043 = vst [vmem:[#allocation5 + $0x1c8] sm:$0xff] %v2979
    %3044 = vst [vmem:[#allocation5 + $0x1d0] sm:$0xff] %v2980
    %3045 = vst [vmem:[#allocation5 + $0x1d8] sm:$0xff] %v2981
    %3046 = vst [vmem:[#allocation5 + $0x1e0] sm:$0xff] %v2982
    %3047 = vst [vmem:[#allocation5 + $0x1e8] sm:$0xff] %v2983
    %3048 = vst [vmem:[#allocation5 + $0x1f0] sm:$0xff] %v2984
    %3049 = vst [vmem:[#allocation5 + $0x1f8] sm:$0xff] %v2985
    %3050 = vst [vmem:[#allocation6] sm:$0xff] %v2602
    %3051 = vst [vmem:[#allocation6 + $0x8] sm:$0xff] %v2603
    %3052 = vst [vmem:[#allocation6 + $0x10] sm:$0xff] %v2604
    %3053 = vst [vmem:[#allocation6 + $0x18] sm:$0xff] %v2605
    %3054 = vst [vmem:[#allocation6 + $0x20] sm:$0xff] %v2606
    %3055 = vst [vmem:[#allocation6 + $0x28] sm:$0xff] %v2607
    %3056 = vst [vmem:[#allocation6 + $0x30] sm:$0xff] %v2608
    %3057 = vst [vmem:[#allocation6 + $0x38] sm:$0xff] %v2609
    %3058 = vst [vmem:[#allocation6 + $0x40] sm:$0xff] %v2610
    %3059 = vst [vmem:[#allocation6 + $0x48] sm:$0xff] %v2611
    %3060 = vst [vmem:[#allocation6 + $0x50] sm:$0xff] %v2612
    %3061 = vst [vmem:[#allocation6 + $0x58] sm:$0xff] %v2613
    %3062 = vst [vmem:[#allocation6 + $0x60] sm:$0xff] %v2614
    %3063 = vst [vmem:[#allocation6 + $0x68] sm:$0xff] %v2615
    %3064 = vst [vmem:[#allocation6 + $0x70] sm:$0xff] %v2616
    %3065 = vst [vmem:[#allocation6 + $0x78] sm:$0xff] %v2617
    %3066 = vst [vmem:[#allocation6 + $0x80] sm:$0xff] %v2618
    %3067 = vst [vmem:[#allocation6 + $0x88] sm:$0xff] %v2619
    %3068 = vst [vmem:[#allocation6 + $0x90] sm:$0xff] %v2620
    %3069 = vst [vmem:[#allocation6 + $0x98] sm:$0xff] %v2621
    %3070 = vst [vmem:[#allocation6 + $0xa0] sm:$0xff] %v2622
    %3071 = vst [vmem:[#allocation6 + $0xa8] sm:$0xff] %v2623
    %3072 = vst [vmem:[#allocation6 + $0xb0] sm:$0xff] %v2624
    %3073 = vst [vmem:[#allocation6 + $0xb8] sm:$0xff] %v2625
    %3074 = vst [vmem:[#allocation6 + $0xc0] sm:$0xff] %v2626
    %3075 = vst [vmem:[#allocation6 + $0xc8] sm:$0xff] %v2627
    %3076 = vst [vmem:[#allocation6 + $0xd0] sm:$0xff] %v2628
    %3077 = vst [vmem:[#allocation6 + $0xd8] sm:$0xff] %v2629
    %3078 = vst [vmem:[#allocation6 + $0xe0] sm:$0xff] %v2630
    %3079 = vst [vmem:[#allocation6 + $0xe8] sm:$0xff] %v2631
    %3080 = vst [vmem:[#allocation6 + $0xf0] sm:$0xff] %v2632
    %3081 = vst [vmem:[#allocation6 + $0xf8] sm:$0xff] %v2633
    %3082 = vst [vmem:[#allocation6 + $0x100] sm:$0xff] %v2634
    %3083 = vst [vmem:[#allocation6 + $0x108] sm:$0xff] %v2635
    %3084 = vst [vmem:[#allocation6 + $0x110] sm:$0xff] %v2636
    %3085 = vst [vmem:[#allocation6 + $0x118] sm:$0xff] %v2637
    %3086 = vst [vmem:[#allocation6 + $0x120] sm:$0xff] %v2638
    %3087 = vst [vmem:[#allocation6 + $0x128] sm:$0xff] %v2639
    %3088 = vst [vmem:[#allocation6 + $0x130] sm:$0xff] %v2640
    %3089 = vst [vmem:[#allocation6 + $0x138] sm:$0xff] %v2641
    %3090 = vst [vmem:[#allocation6 + $0x140] sm:$0xff] %v2642
    %3091 = vst [vmem:[#allocation6 + $0x148] sm:$0xff] %v2643
    %3092 = vst [vmem:[#allocation6 + $0x150] sm:$0xff] %v2644
    %3093 = vst [vmem:[#allocation6 + $0x158] sm:$0xff] %v2645
    %3094 = vst [vmem:[#allocation6 + $0x160] sm:$0xff] %v2646
    %3095 = vst [vmem:[#allocation6 + $0x168] sm:$0xff] %v2647
    %3096 = vst [vmem:[#allocation6 + $0x170] sm:$0xff] %v2648
    %3097 = vst [vmem:[#allocation6 + $0x178] sm:$0xff] %v2649
    %3098 = vst [vmem:[#allocation6 + $0x180] sm:$0xff] %v2650
    %3099 = vst [vmem:[#allocation6 + $0x188] sm:$0xff] %v2651
    %3100 = vst [vmem:[#allocation6 + $0x190] sm:$0xff] %v2652
    %3101 = vst [vmem:[#allocation6 + $0x198] sm:$0xff] %v2653
    %3102 = vst [vmem:[#allocation6 + $0x1a0] sm:$0xff] %v2654
    %3103 = vst [vmem:[#allocation6 + $0x1a8] sm:$0xff] %v2655
    %3104 = vst [vmem:[#allocation6 + $0x1b0] sm:$0xff] %v2656
    %3105 = vst [vmem:[#allocation6 + $0x1b8] sm:$0xff] %v2657
    %3106 = vst [vmem:[#allocation6 + $0x1c0] sm:$0xff] %v2658
    %3107 = vst [vmem:[#allocation6 + $0x1c8] sm:$0xff] %v2659
    %3108 = vst [vmem:[#allocation6 + $0x1d0] sm:$0xff] %v2660
    %3109 = vst [vmem:[#allocation6 + $0x1d8] sm:$0xff] %v2661
    %3110 = vst [vmem:[#allocation6 + $0x1e0] sm:$0xff] %v2662
    %3111 = vst [vmem:[#allocation6 + $0x1e8] sm:$0xff] %v2663
    %3112 = vst [vmem:[#allocation6 + $0x1f0] sm:$0xff] %v2664
    %3113 = vst [vmem:[#allocation6 + $0x1f8] sm:$0xff] %v2665
    // Predicated region
    $region14: #{tpu_custom_call.1} parent=1 // pred_check
      _
    $region15: #{tpu_custom_call.1} parent=1 // pred_check_branch
      %3115 = sbr.rel (0) target = $region17
    $region16: #{tpu_custom_call.1} parent=1 // pred_region
      %s3117 = ssub.s32 8192, 8192
      %3118 = vsyncadd [#allocation4], %s3117
      %s3119 = sshll.u32 [#allocation5], 4
      %s3120 = int_to_ptr.vmem [resolvable:$true] %s3119
      %3125 = dma.vmem_to_hbm [thread:$0]  %s3120, 8192, %s2, [#allocation4], 128, 128, 8
    $region17: #{tpu_custom_call.1} parent=1 // pred_fallthru
      _
    // Predicated region
    $region18: #{tpu_custom_call.1} parent=1 // pred_check
      _
    $region19: #{tpu_custom_call.1} parent=1 // pred_check_branch
      %3127 = sbr.rel (0) target = $region21
    $region20: #{tpu_custom_call.1} parent=1 // pred_region
      %s3129 = ssub.s32 8192, 8192
      %3130 = vsyncadd [#allocation7], %s3129
      %s3131 = sshll.u32 [#allocation6], 4
      %s3132 = int_to_ptr.vmem [resolvable:$true] %s3131
      %3137 = dma.vmem_to_hbm [thread:$0]  %s3132, 8192, %s3, [#allocation7], 128, 128, 8
    $region21: #{tpu_custom_call.1} parent=1 // pred_fallthru
      _
    // Predicated region
    $region22: #{tpu_custom_call.1} parent=1 // pred_check
      _
    $region23: #{tpu_custom_call.1} parent=1 // pred_check_branch
      %3139 = sbr.rel (0) target = $region25
    $region24: #{tpu_custom_call.1} parent=1 // pred_region
      %3140 = dma.done [#allocation4], 8192
    $region25: #{tpu_custom_call.1} parent=1 // pred_fallthru
      _
    // Predicated region
    $region26: #{tpu_custom_call.1} parent=1 // pred_check
      _
    $region27: #{tpu_custom_call.1} parent=1 // pred_check_branch
      %3142 = sbr.rel (0) target = $region29
    $region28: #{tpu_custom_call.1} parent=1 // pred_region
      %3143 = dma.done [#allocation7], 8192
    $region29: #{tpu_custom_call.1} parent=1 // pred_fallthru
      _
    %3144 = vsyncpa [#allocation3], 1
    %3145 = vsyncpa [#allocation4], 1
    %3146 = vsyncpa [#allocation7], 1

</llo_original>
